<compile_context>
chip_gen: v7x
topology: tpu7x:2x2x1
jax: 0.10.0
libtpu: 0.0.40
codegen_flags: <defaults>
</compile_context>

<pallas_src>
import jax
import jax.numpy as jnp
from jax.experimental import pallas as pl
from jax.experimental.pallas import tpu as pltpu
import numpy as np

ADAPT_LAYERS = (3, 6, 9, 12)  # 1-indexed, as in the PyTorch module


def _adapter_kernel(x_ref, h0_ref, h1_ref, h2_ref, h3_ref, wd_ref, wu_ref,
                    o_ref, cat_ref):
    """Fused multi-level adapter.

    x_ref      : (tm, C)        residual input tile
    h0..h3_ref : (1, tm, C)     hidden-state tile of each adapted layer
    wd_ref     : (L, C, Ch)     down-projection weights, bf16
    wu_ref     : (L*Ch, C)      up-projection weight, bf16
    o_ref      : (tm, C)        output tile
    cat_ref    : (tm, L*Ch)     bf16 VMEM scratch holding the concat of latents
    """
    f32 = jnp.float32
    Ch = wd_ref.shape[-1]
    for i, h_ref in enumerate((h0_ref, h1_ref, h2_ref, h3_ref)):  # static unroll, L=4
        h = h_ref[0]
        if h.dtype != jnp.bfloat16:
            h = h.astype(jnp.bfloat16)                 # cast in VMEM only if needed
        latent = jnp.dot(h, wd_ref[i], preferred_element_type=f32)
        latent = jnp.maximum(latent, 0.0)              # DownSampler ReLU (f32 epilogue)
        cat_ref[:, i * Ch:(i + 1) * Ch] = latent.astype(jnp.bfloat16)
    # Single K = L*Ch up-projection matmul over the concatenated latents.
    up = jnp.dot(cat_ref[...], wu_ref[...], preferred_element_type=f32)
    up = jnp.maximum(up, 0.0)                          # UpSampler ReLU (f32)
    o_ref[...] = (x_ref[...].astype(f32) + up).astype(o_ref.dtype)


def _h_index_map(layer_idx):
    def im(i):
        return (layer_idx, i, 0)
    return im


def _round_to(v, q):
    return max(q, (v // q) * q)


def multi_level_adapter(x, hidden, w_down, w_up, *, tm=512,
                        vmem_budget_bytes=None):
    """x: (B, N, C); hidden: (num_layers, B, N, C); w_down: (4, C, C//2);
    w_up: (2C, C). Returns (B, N, C)."""
    B, N, C = x.shape
    M = B * N
    L = len(ADAPT_LAYERS)
    Ch = w_down.shape[-1]
    num_layers = hidden.shape[0]
    assert hidden.shape == (num_layers, B, N, C)
    assert w_down.shape == (L, C, Ch)
    assert w_up.shape == (L * Ch, C)
    assert num_layers >= max(ADAPT_LAYERS)
    # NOTE: C should be a multiple of 128 for lane-dense (unmasked) stores.

    x_bytes = jnp.dtype(x.dtype).itemsize
    h_bytes = jnp.dtype(hidden.dtype).itemsize
    # bf16 operands pack 16 sublanes per vreg; keep the tile a multiple of 16.
    quantum = 16 if min(x_bytes, h_bytes) < 4 else 8

    # Generation-aware VMEM budgeting (v7x has only 64 MiB per TC).
    try:
        vmem_cap = int(getattr(pltpu.get_tpu_info(), "vmem_capacity_bytes",
                               64 * 2**20))
    except Exception:                                   # conservative fallback
        vmem_cap = 64 * 2**20
    if vmem_budget_bytes is None:
        vmem_budget_bytes = min(40 * 2**20, int(0.42 * vmem_cap))

    def footprint(t):
        # Per-grid-step VMEM estimate (double-buffered blocks + scratch + temps).
        return (2 * t * C * x_bytes              # x tiles
                + 2 * L * t * C * h_bytes        # 4 hidden tiles
                + 2 * t * C * x_bytes            # output tiles
                + 2 * 2 * (2 * L * C * Ch)       # bf16 weights (wd + wu), 2-buffered
                + t * L * Ch * 2                 # bf16 cat scratch (single)
                + t * C * 4 + t * Ch * 4)        # f32 temporaries (up, latent)

    # Tile selection: big tiles amortize the ~0.35us per-step overhead; the cdiv
    # grid tolerates a padded last block, so no M % tm requirement.
    tm = _round_to(min(tm, max(M, quantum)), quantum)
    if tm >= M and M > quantum:
        # Keep >= 2 grid steps so both v7x TensorCores get work (no-op on v5e/v6e).
        tm = _round_to(-(-M // 2), quantum)
    while footprint(tm) > vmem_budget_bytes and tm > quantum:
        tm = _round_to(tm // 2, quantum)

    grid_m = pl.cdiv(M, tm)

    # Glue (plain JAX, no HBM copies of hidden): flatten tokens, cast the tiny
    # weights to bf16 once.  hidden should already be bf16 upstream if reused.
    hidden_flat = hidden.reshape(num_layers, M, C)
    x2 = x.reshape(M, C)
    wd = w_down.astype(jnp.bfloat16)      # (L, C, Ch)
    wu = w_up.astype(jnp.bfloat16)        # (L*Ch, C) -- kept whole: one K=2C matmul

    h_specs = [pl.BlockSpec((1, tm, C), _h_index_map(layer - 1))
               for layer in ADAPT_LAYERS]

    vmem_limit = int(min(0.9 * vmem_cap, max(32 * 2**20, 2 * footprint(tm))))

    out = pl.pallas_call(
        _adapter_kernel,
        out_shape=jax.ShapeDtypeStruct((M, C), x.dtype),
        grid_spec=pltpu.PrefetchScalarGridSpec(
            num_scalar_prefetch=0,
            grid=(grid_m,),
            in_specs=[pl.BlockSpec((tm, C), lambda i: (i, 0))] + h_specs + [
                pl.BlockSpec((L, C, Ch), lambda i: (0, 0, 0)),   # fetched once
                pl.BlockSpec((L * Ch, C), lambda i: (0, 0)),     # fetched once
            ],
            out_specs=pl.BlockSpec((tm, C), lambda i: (i, 0)),
            scratch_shapes=[pltpu.VMEM((tm, L * Ch), jnp.bfloat16)],
        ),
        compiler_params=pltpu.CompilerParams(
            dimension_semantics=("parallel",),
            vmem_limit_bytes=vmem_limit,
        ),
    )(x2, hidden_flat, hidden_flat, hidden_flat, hidden_flat, wd, wu)
    return out.reshape(B, N, C)


def reference(x, hidden, w_down, w_up):
    """Pure-JAX f32 reference matching the PyTorch forward exactly."""
    latents = [jnp.maximum(hidden[l - 1] @ w_down[i], 0.0)
               for i, l in enumerate(ADAPT_LAYERS)]
    cat = jnp.concatenate(latents, axis=2)
    return x + jnp.maximum(cat @ w_up, 0.0)


if __name__ == "__main__":
    B, N, C = 2, 256, 256        # batch, seq, c_in (C multiple of 128)
    reduction = 2
    Ch = C // reduction          # 128
    num_hidden = 12              # need at least 12 hidden states
    L = len(ADAPT_LAYERS)

    key = jax.random.PRNGKey(0)
    kx, kh, kd, ku = jax.random.split(key, 4)

    x = jax.random.normal(kx, (B, N, C), dtype=jnp.float32)
    # hidden streamed in bf16 (dominant HBM stream); kernel handles f32 too.
    hidden = jax.random.normal(kh, (num_hidden, B, N, C),
                               dtype=jnp.float32).astype(jnp.bfloat16)
    # torch Linear stores (out, in); we keep (in, out) layout for row-major matmul.
    w_down = jax.random.normal(kd, (L, C, Ch), dtype=jnp.float32) * 0.05
    w_up = jax.random.normal(ku, (L * Ch, C), dtype=jnp.float32) * 0.05

    out = multi_level_adapter(x, hidden, w_down, w_up)
    out = jax.block_until_ready(out)

    ref = reference(x, hidden.astype(jnp.float32), w_down, w_up)
    # bf16 MXU operands / bf16-rounded weights with f32 accumulation
    # -> relaxed tolerance vs the f32 reference.
    np.testing.assert_allclose(np.asarray(out), np.asarray(ref),
                               rtol=5e-2, atol=5e-2)
    print("KERNEL_OK")
</pallas_src>

<mosaic_0001>
module attributes {stable_mosaic.version = 11 : i64} {
  func.func @_adapter_kernel(%arg0: i32, %arg1: memref<256x256xf32, #tpu.memory_space<vmem>>, %arg2: memref<1x256x256xbf16, #tpu.memory_space<vmem>>, %arg3: memref<1x256x256xbf16, #tpu.memory_space<vmem>>, %arg4: memref<1x256x256xbf16, #tpu.memory_space<vmem>>, %arg5: memref<1x256x256xbf16, #tpu.memory_space<vmem>>, %arg6: memref<4x256x128xbf16, #tpu.memory_space<vmem>>, %arg7: memref<512x256xbf16, #tpu.memory_space<vmem>>, %arg8: memref<256x256xf32, #tpu.memory_space<vmem>>, %arg9: memref<256x512xbf16, #tpu.memory_space<vmem>>) attributes {dimension_semantics = [#tpu.dimension_semantics<parallel>], iteration_bounds = array<i64: 2>, scalar_prefetch = 0 : i64, scratch_operands = 1 : i64, tpu.core_type = #tpu.core_type<tc>, window_params = [{transform_indices = @transform_0, window_bounds = array<i64: 256, 256>}, {transform_indices = @transform_1, window_bounds = array<i64: 1, 256, 256>}, {transform_indices = @transform_2, window_bounds = array<i64: 1, 256, 256>}, {transform_indices = @transform_3, window_bounds = array<i64: 1, 256, 256>}, {transform_indices = @transform_4, window_bounds = array<i64: 1, 256, 256>}, {pipeline_mode = #tpu.pipeline_mode<synchronous>, transform_indices = @transform_5, window_bounds = array<i64: 4, 256, 128>}, {pipeline_mode = #tpu.pipeline_mode<synchronous>, transform_indices = @transform_6, window_bounds = array<i64: 512, 256>}, {transform_indices = @transform_7, window_bounds = array<i64: 256, 256>}]} {
    %c0 = arith.constant 0 : index
    %c0_0 = arith.constant 0 : index
    %c0_1 = arith.constant 0 : index
    %0 = vector.load %arg2[%c0, %c0_0, %c0_1] : memref<1x256x256xbf16, #tpu.memory_space<vmem>>, vector<1x256x256xbf16>
    %1 = vector.shape_cast %0 : vector<1x256x256xbf16> to vector<256x256xbf16>
    %c0_2 = arith.constant 0 : index
    %c0_3 = arith.constant 0 : index
    %c0_4 = arith.constant 0 : index
    %2 = vector.load %arg6[%c0_2, %c0_3, %c0_4] : memref<4x256x128xbf16, #tpu.memory_space<vmem>>, vector<1x256x128xbf16>
    %3 = vector.shape_cast %2 : vector<1x256x128xbf16> to vector<256x128xbf16>
    %cst = arith.constant dense<0.000000e+00> : vector<256x128xf32>
    %4 = tpu.matmul %1, %3, %cst {dimension_numbers = #tpu.dot_dimension_numbers<[1], [0], [0], [1], [0, 0, 1, 1], [], []>} : vector<256x256xbf16>, vector<256x128xbf16>, vector<256x128xf32> -> vector<256x128xf32>
    %cst_5 = arith.constant 0.000000e+00 : f32
    %5 = vector.broadcast %cst_5 : f32 to vector<256x128xf32>
    %6 = arith.maximumf %4, %5 : vector<256x128xf32>
    %7 = arith.truncf %6 : vector<256x128xf32> to vector<256x128xbf16>
    %c0_6 = arith.constant 0 : index
    %c0_7 = arith.constant 0 : index
    %8 = vector.load %arg9[%c0_6, %c0_7] : memref<256x512xbf16, #tpu.memory_space<vmem>>, vector<256x128xbf16>
    tpu.vector_store %arg9[%c0_6, %c0_7], %7 {strides = array<i32>} : memref<256x512xbf16, #tpu.memory_space<vmem>>, vector<256x128xbf16>,
    %c0_8 = arith.constant 0 : index
    %c0_9 = arith.constant 0 : index
    %c0_10 = arith.constant 0 : index
    %9 = vector.load %arg3[%c0_8, %c0_9, %c0_10] : memref<1x256x256xbf16, #tpu.memory_space<vmem>>, vector<1x256x256xbf16>
    %10 = vector.shape_cast %9 : vector<1x256x256xbf16> to vector<256x256xbf16>
    %c1 = arith.constant 1 : index
    %c0_11 = arith.constant 0 : index
    %c0_12 = arith.constant 0 : index
    %11 = vector.load %arg6[%c1, %c0_11, %c0_12] : memref<4x256x128xbf16, #tpu.memory_space<vmem>>, vector<1x256x128xbf16>
    %12 = vector.shape_cast %11 : vector<1x256x128xbf16> to vector<256x128xbf16>
    %cst_13 = arith.constant dense<0.000000e+00> : vector<256x128xf32>
    %13 = tpu.matmul %10, %12, %cst_13 {dimension_numbers = #tpu.dot_dimension_numbers<[1], [0], [0], [1], [0, 0, 1, 1], [], []>} : vector<256x256xbf16>, vector<256x128xbf16>, vector<256x128xf32> -> vector<256x128xf32>
    %cst_14 = arith.constant 0.000000e+00 : f32
    %14 = vector.broadcast %cst_14 : f32 to vector<256x128xf32>
    %15 = arith.maximumf %13, %14 : vector<256x128xf32>
    %16 = arith.truncf %15 : vector<256x128xf32> to vector<256x128xbf16>
    %c0_15 = arith.constant 0 : index
    %c128 = arith.constant 128 : index
    %17 = vector.load %arg9[%c0_15, %c128] : memref<256x512xbf16, #tpu.memory_space<vmem>>, vector<256x128xbf16>
    tpu.vector_store %arg9[%c0_15, %c128], %16 {strides = array<i32>} : memref<256x512xbf16, #tpu.memory_space<vmem>>, vector<256x128xbf16>,
    %c0_16 = arith.constant 0 : index
    %c0_17 = arith.constant 0 : index
    %c0_18 = arith.constant 0 : index
    %18 = vector.load %arg4[%c0_16, %c0_17, %c0_18] : memref<1x256x256xbf16, #tpu.memory_space<vmem>>, vector<1x256x256xbf16>
    %19 = vector.shape_cast %18 : vector<1x256x256xbf16> to vector<256x256xbf16>
    %c2 = arith.constant 2 : index
    %c0_19 = arith.constant 0 : index
    %c0_20 = arith.constant 0 : index
    %20 = vector.load %arg6[%c2, %c0_19, %c0_20] : memref<4x256x128xbf16, #tpu.memory_space<vmem>>, vector<1x256x128xbf16>
    %21 = vector.shape_cast %20 : vector<1x256x128xbf16> to vector<256x128xbf16>
    %cst_21 = arith.constant dense<0.000000e+00> : vector<256x128xf32>
    %22 = tpu.matmul %19, %21, %cst_21 {dimension_numbers = #tpu.dot_dimension_numbers<[1], [0], [0], [1], [0, 0, 1, 1], [], []>} : vector<256x256xbf16>, vector<256x128xbf16>, vector<256x128xf32> -> vector<256x128xf32>
    %cst_22 = arith.constant 0.000000e+00 : f32
    %23 = vector.broadcast %cst_22 : f32 to vector<256x128xf32>
    %24 = arith.maximumf %22, %23 : vector<256x128xf32>
    %25 = arith.truncf %24 : vector<256x128xf32> to vector<256x128xbf16>
    %c0_23 = arith.constant 0 : index
    %c256 = arith.constant 256 : index
    %26 = vector.load %arg9[%c0_23, %c256] : memref<256x512xbf16, #tpu.memory_space<vmem>>, vector<256x128xbf16>
    tpu.vector_store %arg9[%c0_23, %c256], %25 {strides = array<i32>} : memref<256x512xbf16, #tpu.memory_space<vmem>>, vector<256x128xbf16>,
    %c0_24 = arith.constant 0 : index
    %c0_25 = arith.constant 0 : index
    %c0_26 = arith.constant 0 : index
    %27 = vector.load %arg5[%c0_24, %c0_25, %c0_26] : memref<1x256x256xbf16, #tpu.memory_space<vmem>>, vector<1x256x256xbf16>
    %28 = vector.shape_cast %27 : vector<1x256x256xbf16> to vector<256x256xbf16>
    %c3 = arith.constant 3 : index
    %c0_27 = arith.constant 0 : index
    %c0_28 = arith.constant 0 : index
    %29 = vector.load %arg6[%c3, %c0_27, %c0_28] : memref<4x256x128xbf16, #tpu.memory_space<vmem>>, vector<1x256x128xbf16>
    %30 = vector.shape_cast %29 : vector<1x256x128xbf16> to vector<256x128xbf16>
    %cst_29 = arith.constant dense<0.000000e+00> : vector<256x128xf32>
    %31 = tpu.matmul %28, %30, %cst_29 {dimension_numbers = #tpu.dot_dimension_numbers<[1], [0], [0], [1], [0, 0, 1, 1], [], []>} : vector<256x256xbf16>, vector<256x128xbf16>, vector<256x128xf32> -> vector<256x128xf32>
    %cst_30 = arith.constant 0.000000e+00 : f32
    %32 = vector.broadcast %cst_30 : f32 to vector<256x128xf32>
    %33 = arith.maximumf %31, %32 : vector<256x128xf32>
    %34 = arith.truncf %33 : vector<256x128xf32> to vector<256x128xbf16>
    %c0_31 = arith.constant 0 : index
    %c384 = arith.constant 384 : index
    %35 = vector.load %arg9[%c0_31, %c384] : memref<256x512xbf16, #tpu.memory_space<vmem>>, vector<256x128xbf16>
    tpu.vector_store %arg9[%c0_31, %c384], %34 {strides = array<i32>} : memref<256x512xbf16, #tpu.memory_space<vmem>>, vector<256x128xbf16>,
    %c0_32 = arith.constant 0 : index
    %c0_33 = arith.constant 0 : index
    %36 = vector.load %arg9[%c0_32, %c0_33] : memref<256x512xbf16, #tpu.memory_space<vmem>>, vector<256x512xbf16>
    %c0_34 = arith.constant 0 : index
    %c0_35 = arith.constant 0 : index
    %37 = vector.load %arg7[%c0_34, %c0_35] : memref<512x256xbf16, #tpu.memory_space<vmem>>, vector<512x256xbf16>
    %cst_36 = arith.constant dense<0.000000e+00> : vector<256x256xf32>
    %38 = tpu.matmul %36, %37, %cst_36 {dimension_numbers = #tpu.dot_dimension_numbers<[1], [0], [0], [1], [0, 0, 1, 1], [], []>} : vector<256x512xbf16>, vector<512x256xbf16>, vector<256x256xf32> -> vector<256x256xf32>
    %cst_37 = arith.constant 0.000000e+00 : f32
    %39 = vector.broadcast %cst_37 : f32 to vector<256x256xf32>
    %40 = arith.maximumf %38, %39 : vector<256x256xf32>
    %c0_38 = arith.constant 0 : index
    %c0_39 = arith.constant 0 : index
    %41 = vector.load %arg1[%c0_38, %c0_39] : memref<256x256xf32, #tpu.memory_space<vmem>>, vector<256x256xf32>
    %42 = arith.addf %41, %40 : vector<256x256xf32>
    %c0_40 = arith.constant 0 : index
    %c0_41 = arith.constant 0 : index
    %43 = vector.load %arg8[%c0_40, %c0_41] : memref<256x256xf32, #tpu.memory_space<vmem>>, vector<256x256xf32>
    tpu.vector_store %arg8[%c0_40, %c0_41], %42 {strides = array<i32>} : memref<256x256xf32, #tpu.memory_space<vmem>>, vector<256x256xf32>,
    return
  }
  func.func @transform_0(%arg0: i32) -> (i32, i32) {
    %c0_i32 = arith.constant 0 : i32
    %c0_i32_0 = arith.constant 0 : i32
    return %arg0, %c0_i32 : i32, i32
  }
  func.func @transform_1(%arg0: i32) -> (i32, i32, i32) {
    %c2_i32 = arith.constant 2 : i32
    %c0_i32 = arith.constant 0 : i32
    %c0_i32_0 = arith.constant 0 : i32
    return %c2_i32, %arg0, %c0_i32 : i32, i32, i32
  }
  func.func @transform_2(%arg0: i32) -> (i32, i32, i32) {
    %c5_i32 = arith.constant 5 : i32
    %c0_i32 = arith.constant 0 : i32
    %c0_i32_0 = arith.constant 0 : i32
    return %c5_i32, %arg0, %c0_i32 : i32, i32, i32
  }
  func.func @transform_3(%arg0: i32) -> (i32, i32, i32) {
    %c8_i32 = arith.constant 8 : i32
    %c0_i32 = arith.constant 0 : i32
    %c0_i32_0 = arith.constant 0 : i32
    return %c8_i32, %arg0, %c0_i32 : i32, i32, i32
  }
  func.func @transform_4(%arg0: i32) -> (i32, i32, i32) {
    %c11_i32 = arith.constant 11 : i32
    %c0_i32 = arith.constant 0 : i32
    %c0_i32_0 = arith.constant 0 : i32
    return %c11_i32, %arg0, %c0_i32 : i32, i32, i32
  }
  func.func @transform_5(%arg0: i32) -> (i32, i32, i32) {
    %c0_i32 = arith.constant 0 : i32
    %c0_i32_0 = arith.constant 0 : i32
    %c0_i32_1 = arith.constant 0 : i32
    %c0_i32_2 = arith.constant 0 : i32
    return %c0_i32, %c0_i32_0, %c0_i32_1 : i32, i32, i32
  }
  func.func @transform_6(%arg0: i32) -> (i32, i32) {
    %c0_i32 = arith.constant 0 : i32
    %c0_i32_0 = arith.constant 0 : i32
    %c0_i32_1 = arith.constant 0 : i32
    return %c0_i32, %c0_i32_0 : i32, i32
  }
  func.func @transform_7(%arg0: i32) -> (i32, i32) {
    %c0_i32 = arith.constant 0 : i32
    %c0_i32_0 = arith.constant 0 : i32
    return %arg0, %c0_i32 : i32, i32
  }
}

</mosaic_0001>

<llo_original>
// kernel: tpu_custom_call.1
$region0: #{tpu_custom_call.1}
  #allocation0 [shape = 'u32[]', space=smem, size = 0x4, offset = 0x4, fixed_abs, tag = 'smem constant byte address 0x4 - core index']
  #allocation1 [shape = 'u32[144,128]{1,0:T(1,128)}', space=vmem, size = 0x12000, scoped, tag = 'internal scratch']
  #allocation2 [shape = 'bf16[256,512]{1,0:T(16,128)(2,1)}', space=vmem, size = 0x40000, scoped, tag = 'scratch operand']
  %s0 = inlined_call_operand.hbm [shape: f32[512,256], index: 0, kind: input, shape index: {}]
  %s1 = inlined_call_operand.hbm [shape: bf16[12,512,256], index: 1, kind: input, shape index: {}]
  %s2 = inlined_call_operand.hbm [shape: bf16[12,512,256], index: 2, kind: input, shape index: {}]
  %s3 = inlined_call_operand.hbm [shape: bf16[12,512,256], index: 3, kind: input, shape index: {}]
  %s4 = inlined_call_operand.hbm [shape: bf16[12,512,256], index: 4, kind: input, shape index: {}]
  %s5 = inlined_call_operand.hbm [shape: bf16[4,256,128], index: 5, kind: input, shape index: {}]
  %s6 = inlined_call_operand.hbm [shape: bf16[512,256], index: 6, kind: input, shape index: {}]
  %s7 = inlined_call_operand.hbm [shape: f32[512,256], index: 7, kind: output, shape index: {}]
  %s8 = sld [smem:[#allocation0]]
  $region89: #{tpu_custom_call.1} parent=0
    _
  %s10 = ssub.s32 1, %s8
  %s11 = scalar_select 0, %s10, %s8
  $region1: #{tpu_custom_call.1} parent=0
    #allocation3 [shape = 'u8[524288]{0}', space=vmem, size = 0x80000, scoped, tag = 'input window, operand 0']
    #allocation4 [shape = 's32[2]{0}', space=sflag, size = 0x8, scoped, tag = 'scoped memory for tpu_custom_call.1']
    #allocation5 [shape = 's32[2]{0}', space=sflag, size = 0x8, scoped, tag = 'scoped memory for tpu_custom_call.1']
    #allocation6 [shape = 'u8[262144]{0}', space=vmem, size = 0x40000, scoped, tag = 'input window, operand 1']
    #allocation7 [shape = 's32[2]{0}', space=sflag, size = 0x8, scoped, tag = 'scoped memory for tpu_custom_call.1']
    #allocation8 [shape = 'u8[262144]{0}', space=vmem, size = 0x40000, scoped, tag = 'input window, operand 2']
    #allocation9 [shape = 'u8[262144]{0}', space=vmem, size = 0x40000, scoped, tag = 'input window, operand 3']
    #allocation10 [shape = 's32[2]{0}', space=sflag, size = 0x8, scoped, tag = 'scoped memory for tpu_custom_call.1']
    #allocation11 [shape = 'u8[262144]{0}', space=vmem, size = 0x40000, scoped, tag = 'input window, operand 4']
    #allocation12 [shape = 'u8[262144]{0}', space=vmem, size = 0x40000, scoped, tag = 'input window, operand 5, single buffered']
    #allocation13 [shape = 's32[1]{0}', space=sflag, size = 0x4, scoped, tag = 'scoped memory for tpu_custom_call.1']
    #allocation14 [shape = 'u8[262144]{0}', space=vmem, size = 0x40000, scoped, tag = 'input window, operand 6, single buffered']
    #allocation15 [shape = 'u8[524288]{0}', space=vmem, size = 0x80000, scoped, tag = 'output window, operand 0']
    %12 = vsyncpa [#allocation4], 0
    %s13 = scalar_lea.sflag [#allocation4], 1
    %14 = vsyncpa %s13, 0
    %15 = vsyncpa [#allocation7], 0
    %s16 = scalar_lea.sflag [#allocation7], 1
    %17 = vsyncpa %s16, 0
    %18 = vsyncpa [#allocation10], 0
    %s19 = scalar_lea.sflag [#allocation10], 1
    %20 = vsyncpa %s19, 0
    %21 = vsyncpa [#allocation13], 0
    %22 = vsyncpa [#allocation5], 0
    %s23 = scalar_lea.sflag [#allocation5], 1
    %24 = vsyncpa %s23, 0
    loop: start=0, step=1, limit=4
    $region2: #{tpu_custom_call.1} parent=1 // loop_pre_header
      _
    $region3: #{tpu_custom_call.1} parent=1 // loop_header
      %s26 = sphi 0, %s30
      %p27 = scmp.ge.s32.totalorder %s26, 4
      %s36 = sphi 0, %s38
      %s39 = sphi 0, %s36
      %s40 = sphi 0, %s39
      %s56 = sphi 0, %s40
      %s62 = sphi 0, %s64
      %s65 = sphi 0, %s62
      %s66 = sphi 0, %s65
      %s82 = sphi 0, %s66
      %s88 = sphi 0, %s90
      %s91 = sphi 0, %s88
      %s92 = sphi 0, %s91
      %s108 = sphi 0, %s92
      %s114 = sphi 0, %s116
      %s117 = sphi 0, %s114
      %s118 = sphi 0, %s117
      %s134 = sphi 0, %s118
      %s140 = sphi 0, %s142
      %s143 = sphi 0, %s140
      %s144 = sphi 0, %s143
      %s160 = sphi 0, %s144
      %s164 = sphi 0, %s164
      %s166 = sphi 0, %s164
      %s167 = sphi 0, %s166
      %s181 = sphi 0, %s167
      %s185 = sphi 0, %s185
      %s187 = sphi 0, %s185
      %s188 = sphi 0, %s187
      %s202 = sphi 0, %s188
      %s208 = sphi 0, %s210
      %s211 = sphi 0, %s208
      %s212 = sphi 0, %s211
      %s228 = sphi 0, %s212
    $region4: #{tpu_custom_call.1} parent=1 // loop_header_branch
      %29 = sbr.rel (%p27) target = $region8
    $region5: #{tpu_custom_call.1} parent=1 // loop_body
      %s31 = ssub.s32 %s26, 1
      %s32 = ssub.s32 %s26, 2
      %s33 = sadd.s32 %s26, 1
      %s34 = ssub.s32 %s26, %s33
      %p35 = scmp.eq.s32.totalorder %s34, 0
      %s37 = sadd.s32 %s36, 1
      %s38 = scalar_select %p35, %s36, %s37
      %p41 = pneg %p35
      %p42 = scmp.eq.s32.totalorder %s26, 1
      %p43 = por %p41, %p42
      %p44 = scmp.ne.s32.totalorder %s36, %s39
      %p45 = scmp.eq.s32.totalorder %s26, 0
      %p46 = por %p44, %p45
      %p47 = scmp.ne.s32.totalorder %s36, %s39
      %p48 = scmp.eq.s32.totalorder %s31, 1
      %p49 = por %p47, %p48
      %p50 = scmp.ne.s32.totalorder %s39, %s40
      %p51 = scmp.eq.s32.totalorder %s31, 0
      %p52 = por %p50, %p51
      %p53 = scmp.ne.s32.totalorder %s39, %s40
      %p54 = scmp.eq.s32.totalorder %s32, 1
      %p55 = por %p53, %p54
      %p57 = scmp.ne.s32.totalorder %s40, %s56
      %p58 = scmp.eq.s32.totalorder %s32, 0
      %p59 = por %p57, %p58
      %s60 = ssub.s32 %s26, %s33
      %p61 = scmp.eq.s32.totalorder %s60, 0
      %s63 = sadd.s32 %s62, 1
      %s64 = scalar_select %p61, %s62, %s63
      %p67 = pneg %p61
      %p68 = scmp.eq.s32.totalorder %s26, 1
      %p69 = por %p67, %p68
      %p70 = scmp.ne.s32.totalorder %s62, %s65
      %p71 = scmp.eq.s32.totalorder %s26, 0
      %p72 = por %p70, %p71
      %p73 = scmp.ne.s32.totalorder %s62, %s65
      %p74 = scmp.eq.s32.totalorder %s31, 1
      %p75 = por %p73, %p74
      %p76 = scmp.ne.s32.totalorder %s65, %s66
      %p77 = scmp.eq.s32.totalorder %s31, 0
      %p78 = por %p76, %p77
      %p79 = scmp.ne.s32.totalorder %s65, %s66
      %p80 = scmp.eq.s32.totalorder %s32, 1
      %p81 = por %p79, %p80
      %p83 = scmp.ne.s32.totalorder %s66, %s82
      %p84 = scmp.eq.s32.totalorder %s32, 0
      %p85 = por %p83, %p84
      %s86 = ssub.s32 %s26, %s33
      %p87 = scmp.eq.s32.totalorder %s86, 0
      %s89 = sadd.s32 %s88, 1
      %s90 = scalar_select %p87, %s88, %s89
      %p93 = pneg %p87
      %p94 = scmp.eq.s32.totalorder %s26, 1
      %p95 = por %p93, %p94
      %p96 = scmp.ne.s32.totalorder %s88, %s91
      %p97 = scmp.eq.s32.totalorder %s26, 0
      %p98 = por %p96, %p97
      %p99 = scmp.ne.s32.totalorder %s88, %s91
      %p100 = scmp.eq.s32.totalorder %s31, 1
      %p101 = por %p99, %p100
      %p102 = scmp.ne.s32.totalorder %s91, %s92
      %p103 = scmp.eq.s32.totalorder %s31, 0
      %p104 = por %p102, %p103
      %p105 = scmp.ne.s32.totalorder %s91, %s92
      %p106 = scmp.eq.s32.totalorder %s32, 1
      %p107 = por %p105, %p106
      %p109 = scmp.ne.s32.totalorder %s92, %s108
      %p110 = scmp.eq.s32.totalorder %s32, 0
      %p111 = por %p109, %p110
      %s112 = ssub.s32 %s26, %s33
      %p113 = scmp.eq.s32.totalorder %s112, 0
      %s115 = sadd.s32 %s114, 1
      %s116 = scalar_select %p113, %s114, %s115
      %p119 = pneg %p113
      %p120 = scmp.eq.s32.totalorder %s26, 1
      %p121 = por %p119, %p120
      %p122 = scmp.ne.s32.totalorder %s114, %s117
      %p123 = scmp.eq.s32.totalorder %s26, 0
      %p124 = por %p122, %p123
      %p125 = scmp.ne.s32.totalorder %s114, %s117
      %p126 = scmp.eq.s32.totalorder %s31, 1
      %p127 = por %p125, %p126
      %p128 = scmp.ne.s32.totalorder %s117, %s118
      %p129 = scmp.eq.s32.totalorder %s31, 0
      %p130 = por %p128, %p129
      %p131 = scmp.ne.s32.totalorder %s117, %s118
      %p132 = scmp.eq.s32.totalorder %s32, 1
      %p133 = por %p131, %p132
      %p135 = scmp.ne.s32.totalorder %s118, %s134
      %p136 = scmp.eq.s32.totalorder %s32, 0
      %p137 = por %p135, %p136
      %s138 = ssub.s32 %s26, %s33
      %p139 = scmp.eq.s32.totalorder %s138, 0
      %s141 = sadd.s32 %s140, 1
      %s142 = scalar_select %p139, %s140, %s141
      %p145 = pneg %p139
      %p146 = scmp.eq.s32.totalorder %s26, 1
      %p147 = por %p145, %p146
      %p148 = scmp.ne.s32.totalorder %s140, %s143
      %p149 = scmp.eq.s32.totalorder %s26, 0
      %p150 = por %p148, %p149
      %p151 = scmp.ne.s32.totalorder %s140, %s143
      %p152 = scmp.eq.s32.totalorder %s31, 1
      %p153 = por %p151, %p152
      %p154 = scmp.ne.s32.totalorder %s143, %s144
      %p155 = scmp.eq.s32.totalorder %s31, 0
      %p156 = por %p154, %p155
      %p157 = scmp.ne.s32.totalorder %s143, %s144
      %p158 = scmp.eq.s32.totalorder %s32, 1
      %p159 = por %p157, %p158
      %p161 = scmp.ne.s32.totalorder %s144, %s160
      %p162 = scmp.eq.s32.totalorder %s32, 0
      %p163 = por %p161, %p162
      %s165 = sadd.s32 %s164, 1
      %p168 = scmp.eq.s32.totalorder %s26, 1
      %p169 = scmp.ne.s32.totalorder %s164, %s166
      %p170 = scmp.eq.s32.totalorder %s26, 0
      %p171 = por %p169, %p170
      %p172 = scmp.ne.s32.totalorder %s164, %s166
      %p173 = scmp.eq.s32.totalorder %s31, 1
      %p174 = por %p172, %p173
      %p175 = scmp.ne.s32.totalorder %s166, %s167
      %p176 = scmp.eq.s32.totalorder %s31, 0
      %p177 = por %p175, %p176
      %p178 = scmp.ne.s32.totalorder %s166, %s167
      %p179 = scmp.eq.s32.totalorder %s32, 1
      %p180 = por %p178, %p179
      %p182 = scmp.ne.s32.totalorder %s167, %s181
      %p183 = scmp.eq.s32.totalorder %s32, 0
      %p184 = por %p182, %p183
      %s186 = sadd.s32 %s185, 1
      %p189 = scmp.eq.s32.totalorder %s26, 1
      %p190 = scmp.ne.s32.totalorder %s185, %s187
      %p191 = scmp.eq.s32.totalorder %s26, 0
      %p192 = por %p190, %p191
      %p193 = scmp.ne.s32.totalorder %s185, %s187
      %p194 = scmp.eq.s32.totalorder %s31, 1
      %p195 = por %p193, %p194
      %p196 = scmp.ne.s32.totalorder %s187, %s188
      %p197 = scmp.eq.s32.totalorder %s31, 0
      %p198 = por %p196, %p197
      %p199 = scmp.ne.s32.totalorder %s187, %s188
      %p200 = scmp.eq.s32.totalorder %s32, 1
      %p201 = por %p199, %p200
      %p203 = scmp.ne.s32.totalorder %s188, %s202
      %p204 = scmp.eq.s32.totalorder %s32, 0
      %p205 = por %p203, %p204
      %s206 = ssub.s32 %s26, %s33
      %p207 = scmp.eq.s32.totalorder %s206, 0
      %s209 = sadd.s32 %s208, 1
      %s210 = scalar_select %p207, %s208, %s209
      %p213 = pneg %p207
      %p214 = scmp.eq.s32.totalorder %s26, 1
      %p215 = por %p213, %p214
      %p216 = scmp.ne.s32.totalorder %s208, %s211
      %p217 = scmp.eq.s32.totalorder %s26, 0
      %p218 = por %p216, %p217
      %p219 = scmp.ne.s32.totalorder %s208, %s211
      %p220 = scmp.eq.s32.totalorder %s31, 1
      %p221 = por %p219, %p220
      %p222 = scmp.ne.s32.totalorder %s211, %s212
      %p223 = scmp.eq.s32.totalorder %s31, 0
      %p224 = por %p222, %p223
      %p225 = scmp.ne.s32.totalorder %s211, %s212
      %p226 = scmp.eq.s32.totalorder %s32, 1
      %p227 = por %p225, %p226
      %p229 = scmp.ne.s32.totalorder %s212, %s228
      %p230 = scmp.eq.s32.totalorder %s32, 0
      %p231 = por %p229, %p230
      %p232 = scmp.le.s32.totalorder 1, %s26
      %p233 = scmp.lt.s32.totalorder %s26, 3
      %p234 = pnand %p232, %p233
      %p235 = pneg %p234
      // Predicated region
      $region9: #{tpu_custom_call.1} parent=5 // pred_check
        _
      $region10: #{tpu_custom_call.1} parent=5 // pred_check_branch
        %237 = sbr.rel (%p234) target = $region12
      $region11: #{tpu_custom_call.1} parent=5 // pred_region
        %s238 = ssub.s32 %s26, 1
        // Predicated region
        $region13: #{tpu_custom_call.1} parent=11 // pred_check
          %p239 = pneg %p177
        $region14: #{tpu_custom_call.1} parent=11 // pred_check_branch
          %241 = sbr.rel (%p239) target = $region16
        $region15: #{tpu_custom_call.1} parent=11 // pred_region
          %s243 = ssub.s32 8192, 8192
          %244 = vsyncadd [#allocation13], %s243
          %s245 = sshll.u32 [#allocation12], 4
          %s246 = int_to_ptr.vmem [resolvable:$true] %s245
          %251 = dma.hbm_to_vmem [thread:$0]  %s5, 8192, %s246, [#allocation13], 64, 64, 4
        $region16: #{tpu_custom_call.1} parent=11 // pred_fallthru
          _
        // Predicated region
        $region17: #{tpu_custom_call.1} parent=11 // pred_check
          %p252 = pneg %p198
        $region18: #{tpu_custom_call.1} parent=11 // pred_check_branch
          %254 = sbr.rel (%p252) target = $region20
        $region19: #{tpu_custom_call.1} parent=11 // pred_region
          %s256 = ssub.s32 8192, 8192
          %257 = vsyncadd [#allocation13], %s256
          %s258 = sshll.u32 [#allocation14], 4
          %s259 = int_to_ptr.vmem [resolvable:$true] %s258
          %264 = dma.hbm_to_vmem [thread:$0]  %s6, 8192, %s259, [#allocation13], 128, 128, 8
        $region20: #{tpu_custom_call.1} parent=11 // pred_fallthru
          _
      $region12: #{tpu_custom_call.1} parent=5 // pred_fallthru
        _
      %p265 = scmp.lt.s32.totalorder %s26, 2
      // Predicated region
      $region21: #{tpu_custom_call.1} parent=5 // pred_check
        %p266 = pneg %p265
      $region22: #{tpu_custom_call.1} parent=5 // pred_check_branch
        %268 = sbr.rel (%p266) target = $region24
      $region23: #{tpu_custom_call.1} parent=5 // pred_region
        // Predicated region
        $region25: #{tpu_custom_call.1} parent=23 // pred_check
          %p269 = pneg %p46
        $region26: #{tpu_custom_call.1} parent=23 // pred_check_branch
          %271 = sbr.rel (%p269) target = $region28
        $region27: #{tpu_custom_call.1} parent=23 // pred_region
          %s272 = sand.u32 %s36, 1
          %s273 = scalar_lea.sflag [#allocation4], %s272
          %s274 = sand.u32 %s36, 1
          %s275 = smul.addr %s274, 512
          %s276 = scalar_lea.vmem [#allocation3], %s275
          %s277 = smul.u32 32, %s26
          %s279 = ssub.s32 8192, 8192
          %280 = vsyncadd %s273, %s279
          %s281 = smul.addr %s277, 2
          %s282 = smul.addr %s281, 128
          %s283 = scalar_lea.hbm %s0, %s282
          %s284 = sshll.u32 %s276, 4
          %s285 = int_to_ptr.vmem [resolvable:$true] %s284
          %290 = dma.hbm_to_vmem [thread:$0]  %s283, 8192, %s285, %s273, 256, 256, 16
        $region28: #{tpu_custom_call.1} parent=23 // pred_fallthru
          _
        // Predicated region
        $region29: #{tpu_custom_call.1} parent=23 // pred_check
          %p291 = pneg %p72
        $region30: #{tpu_custom_call.1} parent=23 // pred_check_branch
          %293 = sbr.rel (%p291) target = $region32
        $region31: #{tpu_custom_call.1} parent=23 // pred_region
          %s294 = sand.u32 %s26, 1
          %s295 = scalar_lea.sflag [#allocation7], %s294
          %s296 = sand.u32 %s62, 1
          %s297 = smul.addr %s296, 256
          %s298 = scalar_lea.vmem [#allocation6], %s297
          %s299 = smul.u32 32, %s26
          %s301 = ssub.s32 4096, 4096
          %302 = vsyncadd %s295, %s301
          %s303 = smul.addr %s299, 2
          %s304 = sadd.s32 %s303, 256
          %s305 = smul.addr %s304, 64
          %s306 = scalar_lea.hbm %s1, %s305
          %s307 = sshll.u32 %s298, 4
          %s308 = int_to_ptr.vmem [resolvable:$true] %s307
          %313 = dma.hbm_to_vmem [thread:$0]  %s306, 4096, %s308, %s295, 128, 128, 8
        $region32: #{tpu_custom_call.1} parent=23 // pred_fallthru
          _
        // Predicated region
        $region33: #{tpu_custom_call.1} parent=23 // pred_check
          %p314 = pneg %p98
        $region34: #{tpu_custom_call.1} parent=23 // pred_check_branch
          %316 = sbr.rel (%p314) target = $region36
        $region35: #{tpu_custom_call.1} parent=23 // pred_region
          %s317 = sand.u32 %s26, 1
          %s318 = scalar_lea.sflag [#allocation7], %s317
          %s319 = sand.u32 %s88, 1
          %s320 = smul.addr %s319, 256
          %s321 = scalar_lea.vmem [#allocation8], %s320
          %s322 = smul.u32 32, %s26
          %s324 = ssub.s32 4096, 4096
          %325 = vsyncadd %s318, %s324
          %s326 = smul.addr %s322, 2
          %s327 = sadd.s32 %s326, 640
          %s328 = smul.addr %s327, 64
          %s329 = scalar_lea.hbm %s2, %s328
          %s330 = sshll.u32 %s321, 4
          %s331 = int_to_ptr.vmem [resolvable:$true] %s330
          %336 = dma.hbm_to_vmem [thread:$0]  %s329, 4096, %s331, %s318, 128, 128, 8
        $region36: #{tpu_custom_call.1} parent=23 // pred_fallthru
          _
        // Predicated region
        $region37: #{tpu_custom_call.1} parent=23 // pred_check
          %p337 = pneg %p124
        $region38: #{tpu_custom_call.1} parent=23 // pred_check_branch
          %339 = sbr.rel (%p337) target = $region40
        $region39: #{tpu_custom_call.1} parent=23 // pred_region
          %s340 = sand.u32 %s26, 1
          %s341 = scalar_lea.sflag [#allocation10], %s340
          %s342 = sand.u32 %s114, 1
          %s343 = smul.addr %s342, 256
          %s344 = scalar_lea.vmem [#allocation9], %s343
          %s345 = smul.u32 32, %s26
          %s347 = ssub.s32 4096, 4096
          %348 = vsyncadd %s341, %s347
          %s349 = smul.addr %s345, 2
          %s350 = sadd.s32 %s349, 1024
          %s351 = smul.addr %s350, 64
          %s352 = scalar_lea.hbm %s3, %s351
          %s353 = sshll.u32 %s344, 4
          %s354 = int_to_ptr.vmem [resolvable:$true] %s353
          %359 = dma.hbm_to_vmem [thread:$0]  %s352, 4096, %s354, %s341, 128, 128, 8
        $region40: #{tpu_custom_call.1} parent=23 // pred_fallthru
          _
        // Predicated region
        $region41: #{tpu_custom_call.1} parent=23 // pred_check
          %p360 = pneg %p150
        $region42: #{tpu_custom_call.1} parent=23 // pred_check_branch
          %362 = sbr.rel (%p360) target = $region44
        $region43: #{tpu_custom_call.1} parent=23 // pred_region
          %s363 = sand.u32 %s26, 1
          %s364 = scalar_lea.sflag [#allocation10], %s363
          %s365 = sand.u32 %s140, 1
          %s366 = smul.addr %s365, 256
          %s367 = scalar_lea.vmem [#allocation11], %s366
          %s368 = smul.u32 32, %s26
          %s370 = ssub.s32 4096, 4096
          %371 = vsyncadd %s364, %s370
          %s372 = smul.addr %s368, 2
          %s373 = sadd.s32 %s372, 1408
          %s374 = smul.addr %s373, 64
          %s375 = scalar_lea.hbm %s4, %s374
          %s376 = sshll.u32 %s367, 4
          %s377 = int_to_ptr.vmem [resolvable:$true] %s376
          %382 = dma.hbm_to_vmem [thread:$0]  %s375, 4096, %s377, %s364, 128, 128, 8
        $region44: #{tpu_custom_call.1} parent=23 // pred_fallthru
          _
      $region24: #{tpu_custom_call.1} parent=5 // pred_fallthru
        _
      %p383 = scmp.le.s32.totalorder 1, %s26
      %p384 = scmp.lt.s32.totalorder %s26, 3
      %p385 = pnand %p383, %p384
      %p386 = pneg %p385
      // Predicated region
      $region45: #{tpu_custom_call.1} parent=5 // pred_check
        _
      $region46: #{tpu_custom_call.1} parent=5 // pred_check_branch
        %388 = sbr.rel (%p385) target = $region48
      $region47: #{tpu_custom_call.1} parent=5 // pred_region
        %s389 = ssub.s32 %s26, 1
        %s390 = sand.u32 %s39, 1
        %s391 = scalar_lea.sflag [#allocation4], %s390
        %s392 = sand.u32 %s39, 1
        %s393 = smul.addr %s392, 512
        %s394 = scalar_lea.vmem [#allocation3], %s393
        // Predicated region
        $region49: #{tpu_custom_call.1} parent=47 // pred_check
          %p395 = pneg %p52
        $region50: #{tpu_custom_call.1} parent=47 // pred_check_branch
          %397 = sbr.rel (%p395) target = $region52
        $region51: #{tpu_custom_call.1} parent=47 // pred_region
          %398 = dma.done %s391, 8192
        $region52: #{tpu_custom_call.1} parent=47 // pred_fallthru
          _
        %s399 = sand.u32 %s31, 1
        %s400 = scalar_lea.sflag [#allocation7], %s399
        %s401 = sand.u32 %s65, 1
        %s402 = smul.addr %s401, 256
        %s403 = scalar_lea.vmem [#allocation6], %s402
        // Predicated region
        $region53: #{tpu_custom_call.1} parent=47 // pred_check
          %p404 = pneg %p78
        $region54: #{tpu_custom_call.1} parent=47 // pred_check_branch
          %406 = sbr.rel (%p404) target = $region56
        $region55: #{tpu_custom_call.1} parent=47 // pred_region
          %407 = dma.done %s400, 4096
        $region56: #{tpu_custom_call.1} parent=47 // pred_fallthru
          _
        %s408 = sand.u32 %s31, 1
        %s409 = scalar_lea.sflag [#allocation7], %s408
        %s410 = sand.u32 %s91, 1
        %s411 = smul.addr %s410, 256
        %s412 = scalar_lea.vmem [#allocation8], %s411
        // Predicated region
        $region57: #{tpu_custom_call.1} parent=47 // pred_check
          %p413 = pneg %p104
        $region58: #{tpu_custom_call.1} parent=47 // pred_check_branch
          %415 = sbr.rel (%p413) target = $region60
        $region59: #{tpu_custom_call.1} parent=47 // pred_region
          %416 = dma.done %s409, 4096
        $region60: #{tpu_custom_call.1} parent=47 // pred_fallthru
          _
        %s417 = sand.u32 %s31, 1
        %s418 = scalar_lea.sflag [#allocation10], %s417
        %s419 = sand.u32 %s117, 1
        %s420 = smul.addr %s419, 256
        %s421 = scalar_lea.vmem [#allocation9], %s420
        // Predicated region
        $region61: #{tpu_custom_call.1} parent=47 // pred_check
          %p422 = pneg %p130
        $region62: #{tpu_custom_call.1} parent=47 // pred_check_branch
          %424 = sbr.rel (%p422) target = $region64
        $region63: #{tpu_custom_call.1} parent=47 // pred_region
          %425 = dma.done %s418, 4096
        $region64: #{tpu_custom_call.1} parent=47 // pred_fallthru
          _
        %s426 = sand.u32 %s31, 1
        %s427 = scalar_lea.sflag [#allocation10], %s426
        %s428 = sand.u32 %s143, 1
        %s429 = smul.addr %s428, 256
        %s430 = scalar_lea.vmem [#allocation11], %s429
        // Predicated region
        $region65: #{tpu_custom_call.1} parent=47 // pred_check
          %p431 = pneg %p156
        $region66: #{tpu_custom_call.1} parent=47 // pred_check_branch
          %433 = sbr.rel (%p431) target = $region68
        $region67: #{tpu_custom_call.1} parent=47 // pred_region
          %434 = dma.done %s427, 4096
        $region68: #{tpu_custom_call.1} parent=47 // pred_fallthru
          _
        // Predicated region
        $region69: #{tpu_custom_call.1} parent=47 // pred_check
          %p435 = pneg %p177
        $region70: #{tpu_custom_call.1} parent=47 // pred_check_branch
          %437 = sbr.rel (%p435) target = $region72
        $region71: #{tpu_custom_call.1} parent=47 // pred_region
          %438 = dma.done [#allocation13], 8192
        $region72: #{tpu_custom_call.1} parent=47 // pred_fallthru
          _
        // Predicated region
        $region73: #{tpu_custom_call.1} parent=47 // pred_check
          %p439 = pneg %p198
        $region74: #{tpu_custom_call.1} parent=47 // pred_check_branch
          %441 = sbr.rel (%p439) target = $region76
        $region75: #{tpu_custom_call.1} parent=47 // pred_region
          %442 = dma.done [#allocation13], 8192
        $region76: #{tpu_custom_call.1} parent=47 // pred_fallthru
          _
        %s443 = sand.u32 %s39, 1
        %s444 = scalar_lea.sflag [#allocation4], %s443
        %s445 = sand.u32 %s39, 1
        %s446 = smul.addr %s445, 512
        %s447 = scalar_lea.vmem [#allocation3], %s446
        %p448 = pneg %p52
        %p449 = pneg %p49
        %s450 = sand.u32 %s31, 1
        %s451 = scalar_lea.sflag [#allocation7], %s450
        %s452 = sand.u32 %s65, 1
        %s453 = smul.addr %s452, 256
        %s454 = scalar_lea.vmem [#allocation6], %s453
        %p455 = pneg %p78
        %p456 = pneg %p75
        %s457 = sand.u32 %s31, 1
        %s458 = scalar_lea.sflag [#allocation7], %s457
        %s459 = sand.u32 %s91, 1
        %s460 = smul.addr %s459, 256
        %s461 = scalar_lea.vmem [#allocation8], %s460
        %p462 = pneg %p104
        %p463 = pneg %p101
        %s464 = sand.u32 %s31, 1
        %s465 = scalar_lea.sflag [#allocation10], %s464
        %s466 = sand.u32 %s117, 1
        %s467 = smul.addr %s466, 256
        %s468 = scalar_lea.vmem [#allocation9], %s467
        %p469 = pneg %p130
        %p470 = pneg %p127
        %s471 = sand.u32 %s31, 1
        %s472 = scalar_lea.sflag [#allocation10], %s471
        %s473 = sand.u32 %s143, 1
        %s474 = smul.addr %s473, 256
        %s475 = scalar_lea.vmem [#allocation11], %s474
        %p476 = pneg %p156
        %p477 = pneg %p153
        %p478 = pneg %p177
        %p479 = pneg %p174
        %p480 = pneg %p198
        %p481 = pneg %p195
        %p482 = pneg %p224
        %p483 = pneg %p221
        %s484 = sand.u32 %s211, 1
        %s485 = scalar_lea.sflag [#allocation5], %s484
        %s486 = sand.u32 %s211, 1
        %s487 = smul.addr %s486, 512
        %s488 = scalar_lea.vmem [#allocation15], %s487
        %s489 = smul.u32 32, %s31
        %s490 = smul.u32 32, %s31
        %s491 = smul.u32 32, %s31
        %s492 = smul.u32 32, %s31
        %s493 = smul.u32 32, %s31
        %s494 = smul.u32 32, %s31
        %v496 = vld [vmem:[%s403] sm:$0xff]
        %v497 = vld [vmem:[%s403 + $0x8] sm:$0xff]
        %v498 = vld [vmem:[%s403 + $0x10] sm:$0xff]
        %v499 = vld [vmem:[%s403 + $0x18] sm:$0xff]
        %v500 = vld [vmem:[%s403 + $0x20] sm:$0xff]
        %v501 = vld [vmem:[%s403 + $0x28] sm:$0xff]
        %v502 = vld [vmem:[%s403 + $0x30] sm:$0xff]
        %v503 = vld [vmem:[%s403 + $0x38] sm:$0xff]
        %v504 = vld [vmem:[%s403 + $0x40] sm:$0xff]
        %v505 = vld [vmem:[%s403 + $0x48] sm:$0xff]
        %v506 = vld [vmem:[%s403 + $0x50] sm:$0xff]
        %v507 = vld [vmem:[%s403 + $0x58] sm:$0xff]
        %v508 = vld [vmem:[%s403 + $0x60] sm:$0xff]
        %v509 = vld [vmem:[%s403 + $0x68] sm:$0xff]
        %v510 = vld [vmem:[%s403 + $0x70] sm:$0xff]
        %v511 = vld [vmem:[%s403 + $0x78] sm:$0xff]
        %v512 = vld [vmem:[%s403 + $0x80] sm:$0xff]
        %v513 = vld [vmem:[%s403 + $0x88] sm:$0xff]
        %v514 = vld [vmem:[%s403 + $0x90] sm:$0xff]
        %v515 = vld [vmem:[%s403 + $0x98] sm:$0xff]
        %v516 = vld [vmem:[%s403 + $0xa0] sm:$0xff]
        %v517 = vld [vmem:[%s403 + $0xa8] sm:$0xff]
        %v518 = vld [vmem:[%s403 + $0xb0] sm:$0xff]
        %v519 = vld [vmem:[%s403 + $0xb8] sm:$0xff]
        %v520 = vld [vmem:[%s403 + $0xc0] sm:$0xff]
        %v521 = vld [vmem:[%s403 + $0xc8] sm:$0xff]
        %v522 = vld [vmem:[%s403 + $0xd0] sm:$0xff]
        %v523 = vld [vmem:[%s403 + $0xd8] sm:$0xff]
        %v524 = vld [vmem:[%s403 + $0xe0] sm:$0xff]
        %v525 = vld [vmem:[%s403 + $0xe8] sm:$0xff]
        %v526 = vld [vmem:[%s403 + $0xf0] sm:$0xff]
        %v527 = vld [vmem:[%s403 + $0xf8] sm:$0xff]
        %v528 = vld [vmem:[#allocation12] sm:$0xf]
        %v529 = vld [vmem:[#allocation12 + $0x4] sm:$0xf]
        %v530 = vld [vmem:[#allocation12 + $0x8] sm:$0xf]
        %v531 = vld [vmem:[#allocation12 + $0xc] sm:$0xf]
        %v532 = vld [vmem:[#allocation12 + $0x10] sm:$0xf]
        %v533 = vld [vmem:[#allocation12 + $0x14] sm:$0xf]
        %v534 = vld [vmem:[#allocation12 + $0x18] sm:$0xf]
        %v535 = vld [vmem:[#allocation12 + $0x1c] sm:$0xf]
        %v536 = vld [vmem:[#allocation12 + $0x20] sm:$0xf]
        %v537 = vld [vmem:[#allocation12 + $0x24] sm:$0xf]
        %v538 = vld [vmem:[#allocation12 + $0x28] sm:$0xf]
        %v539 = vld [vmem:[#allocation12 + $0x2c] sm:$0xf]
        %v540 = vld [vmem:[#allocation12 + $0x30] sm:$0xf]
        %v541 = vld [vmem:[#allocation12 + $0x34] sm:$0xf]
        %v542 = vld [vmem:[#allocation12 + $0x38] sm:$0xf]
        %v543 = vld [vmem:[#allocation12 + $0x3c] sm:$0xf]
        %v544 = vld [vmem:[#allocation12 + $0x40] sm:$0xf]
        %v545 = vld [vmem:[#allocation12 + $0x44] sm:$0xf]
        %v546 = vld [vmem:[#allocation12 + $0x48] sm:$0xf]
        %v547 = vld [vmem:[#allocation12 + $0x4c] sm:$0xf]
        %v548 = vld [vmem:[#allocation12 + $0x50] sm:$0xf]
        %v549 = vld [vmem:[#allocation12 + $0x54] sm:$0xf]
        %v550 = vld [vmem:[#allocation12 + $0x58] sm:$0xf]
        %v551 = vld [vmem:[#allocation12 + $0x5c] sm:$0xf]
        %v552 = vld [vmem:[#allocation12 + $0x60] sm:$0xf]
        %v553 = vld [vmem:[#allocation12 + $0x64] sm:$0xf]
        %v554 = vld [vmem:[#allocation12 + $0x68] sm:$0xf]
        %v555 = vld [vmem:[#allocation12 + $0x6c] sm:$0xf]
        %v556 = vld [vmem:[#allocation12 + $0x70] sm:$0xf]
        %v557 = vld [vmem:[#allocation12 + $0x74] sm:$0xf]
        %v558 = vld [vmem:[#allocation12 + $0x78] sm:$0xf]
        %v559 = vld [vmem:[#allocation12 + $0x7c] sm:$0xf]
        %v592 = vunpack.c.l.b16 %v496
        %v593 = vunpack.c.h.b16 %v496
        %v594 = vunpack.c.l.b16 %v497
        %v595 = vunpack.c.h.b16 %v497
        %v596 = vunpack.c.l.b16 %v498
        %v597 = vunpack.c.h.b16 %v498
        %v598 = vunpack.c.l.b16 %v499
        %v599 = vunpack.c.h.b16 %v499
        %v600 = vunpack.c.l.b16 %v500
        %v601 = vunpack.c.h.b16 %v500
        %v602 = vunpack.c.l.b16 %v501
        %v603 = vunpack.c.h.b16 %v501
        %v604 = vunpack.c.l.b16 %v502
        %v605 = vunpack.c.h.b16 %v502
        %v606 = vunpack.c.l.b16 %v503
        %v607 = vunpack.c.h.b16 %v503
        %v608 = vunpack.c.l.b16 %v504
        %v609 = vunpack.c.h.b16 %v504
        %v610 = vunpack.c.l.b16 %v505
        %v611 = vunpack.c.h.b16 %v505
        %v612 = vunpack.c.l.b16 %v506
        %v613 = vunpack.c.h.b16 %v506
        %v614 = vunpack.c.l.b16 %v507
        %v615 = vunpack.c.h.b16 %v507
        %v616 = vunpack.c.l.b16 %v508
        %v617 = vunpack.c.h.b16 %v508
        %v618 = vunpack.c.l.b16 %v509
        %v619 = vunpack.c.h.b16 %v509
        %v620 = vunpack.c.l.b16 %v510
        %v621 = vunpack.c.h.b16 %v510
        %v622 = vunpack.c.l.b16 %v511
        %v623 = vunpack.c.h.b16 %v511
        %v624 = vunpack.c.l.b16 %v512
        %v625 = vunpack.c.h.b16 %v512
        %v626 = vunpack.c.l.b16 %v513
        %v627 = vunpack.c.h.b16 %v513
        %v628 = vunpack.c.l.b16 %v514
        %v629 = vunpack.c.h.b16 %v514
        %v630 = vunpack.c.l.b16 %v515
        %v631 = vunpack.c.h.b16 %v515
        %v632 = vunpack.c.l.b16 %v516
        %v633 = vunpack.c.h.b16 %v516
        %v634 = vunpack.c.l.b16 %v517
        %v635 = vunpack.c.h.b16 %v517
        %v636 = vunpack.c.l.b16 %v518
        %v637 = vunpack.c.h.b16 %v518
        %v638 = vunpack.c.l.b16 %v519
        %v639 = vunpack.c.h.b16 %v519
        %v640 = vunpack.c.l.b16 %v520
        %v641 = vunpack.c.h.b16 %v520
        %v642 = vunpack.c.l.b16 %v521
        %v643 = vunpack.c.h.b16 %v521
        %v644 = vunpack.c.l.b16 %v522
        %v645 = vunpack.c.h.b16 %v522
        %v646 = vunpack.c.l.b16 %v523
        %v647 = vunpack.c.h.b16 %v523
        %v648 = vunpack.c.l.b16 %v524
        %v649 = vunpack.c.h.b16 %v524
        %v650 = vunpack.c.l.b16 %v525
        %v651 = vunpack.c.h.b16 %v525
        %v652 = vunpack.c.l.b16 %v526
        %v653 = vunpack.c.h.b16 %v526
        %v654 = vunpack.c.l.b16 %v527
        %v655 = vunpack.c.h.b16 %v527
        %v656 = vpack.c.b16 %v594, %v592
        %v657 = vpack.c.b16 %v595, %v593
        %v658 = vpack.c.b16 %v598, %v596
        %v659 = vpack.c.b16 %v599, %v597
        %v660 = vpack.c.b16 %v602, %v600
        %v661 = vpack.c.b16 %v603, %v601
        %v662 = vpack.c.b16 %v606, %v604
        %v663 = vpack.c.b16 %v607, %v605
        %v664 = vpack.c.b16 %v610, %v608
        %v665 = vpack.c.b16 %v611, %v609
        %v666 = vpack.c.b16 %v614, %v612
        %v667 = vpack.c.b16 %v615, %v613
        %v668 = vpack.c.b16 %v618, %v616
        %v669 = vpack.c.b16 %v619, %v617
        %v670 = vpack.c.b16 %v622, %v620
        %v671 = vpack.c.b16 %v623, %v621
        %v672 = vpack.c.b16 %v626, %v624
        %v673 = vpack.c.b16 %v627, %v625
        %v674 = vpack.c.b16 %v630, %v628
        %v675 = vpack.c.b16 %v631, %v629
        %v676 = vpack.c.b16 %v634, %v632
        %v677 = vpack.c.b16 %v635, %v633
        %v678 = vpack.c.b16 %v638, %v636
        %v679 = vpack.c.b16 %v639, %v637
        %v680 = vpack.c.b16 %v642, %v640
        %v681 = vpack.c.b16 %v643, %v641
        %v682 = vpack.c.b16 %v646, %v644
        %v683 = vpack.c.b16 %v647, %v645
        %v684 = vpack.c.b16 %v650, %v648
        %v685 = vpack.c.b16 %v651, %v649
        %v686 = vpack.c.b16 %v654, %v652
        %v687 = vpack.c.b16 %v655, %v653
        %v752 = vunpack.c.l.b16 %v528
        %v753 = vunpack.c.l.b16 %v529
        %v754 = vunpack.c.l.b16 %v530
        %v755 = vunpack.c.l.b16 %v531
        %v756 = vunpack.c.l.b16 %v532
        %v757 = vunpack.c.l.b16 %v533
        %v758 = vunpack.c.l.b16 %v534
        %v759 = vunpack.c.l.b16 %v535
        %v760 = vunpack.c.l.b16 %v536
        %v761 = vunpack.c.l.b16 %v537
        %v762 = vunpack.c.l.b16 %v538
        %v763 = vunpack.c.l.b16 %v539
        %v764 = vunpack.c.l.b16 %v540
        %v765 = vunpack.c.l.b16 %v541
        %v766 = vunpack.c.l.b16 %v542
        %v767 = vunpack.c.l.b16 %v543
        %v768 = vunpack.c.l.b16 %v544
        %v769 = vunpack.c.l.b16 %v545
        %v770 = vunpack.c.l.b16 %v546
        %v771 = vunpack.c.l.b16 %v547
        %v772 = vunpack.c.l.b16 %v548
        %v773 = vunpack.c.l.b16 %v549
        %v774 = vunpack.c.l.b16 %v550
        %v775 = vunpack.c.l.b16 %v551
        %v776 = vunpack.c.l.b16 %v552
        %v777 = vunpack.c.l.b16 %v553
        %v778 = vunpack.c.l.b16 %v554
        %v779 = vunpack.c.l.b16 %v555
        %v780 = vunpack.c.l.b16 %v556
        %v781 = vunpack.c.l.b16 %v557
        %v782 = vunpack.c.l.b16 %v558
        %v783 = vunpack.c.l.b16 %v559
        %v784 = vpack.c.b16 %v753, %v752
        %v785 = vpack.c.b16 %v755, %v754
        %v786 = vpack.c.b16 %v757, %v756
        %v787 = vpack.c.b16 %v759, %v758
        %v788 = vpack.c.b16 %v761, %v760
        %v789 = vpack.c.b16 %v763, %v762
        %v790 = vpack.c.b16 %v765, %v764
        %v791 = vpack.c.b16 %v767, %v766
        %v792 = vpack.c.b16 %v769, %v768
        %v793 = vpack.c.b16 %v771, %v770
        %v794 = vpack.c.b16 %v773, %v772
        %v795 = vpack.c.b16 %v775, %v774
        %v796 = vpack.c.b16 %v777, %v776
        %v797 = vpack.c.b16 %v779, %v778
        %v798 = vpack.c.b16 %v781, %v780
        %v799 = vpack.c.b16 %v783, %v782
        %816 = vmatprep.subr.bf16.mxu0 0
        %817 = vmatpush1.bf16.msra.mxu0 %v784
        %818 = vmatprep.subr.bf16.mxu0 0
        %819 = vmatpush1.bf16.msra.mxu0 %v785
        %820 = vmatprep.subr.bf16.mxu0 0
        %821 = vmatpush1.bf16.msra.mxu0 %v786
        %822 = vmatprep.subr.bf16.mxu0 0
        %823 = vmatpush1.bf16.msra.mxu0 %v787
        %824 = vmatprep.subr.bf16.mxu0 0
        %825 = vmatpush1.bf16.msra.mxu0 %v788
        %826 = vmatprep.subr.bf16.mxu0 0
        %827 = vmatpush1.bf16.msra.mxu0 %v789
        %828 = vmatprep.subr.bf16.mxu0 0
        %829 = vmatpush1.bf16.msra.mxu0 %v790
        %830 = vmatprep.subr.bf16.mxu0 0
        %831 = vmatpush1.bf16.msra.mxu0 %v791
        %832 = vmatprep.subr.bf16.mxu0 0
        %833 = vmatpush1.bf16.msra.mxu0 %v792
        %834 = vmatprep.subr.bf16.mxu0 0
        %835 = vmatpush1.bf16.msra.mxu0 %v793
        %836 = vmatprep.subr.bf16.mxu0 0
        %837 = vmatpush1.bf16.msra.mxu0 %v794
        %838 = vmatprep.subr.bf16.mxu0 0
        %839 = vmatpush1.bf16.msra.mxu0 %v795
        %840 = vmatprep.subr.bf16.mxu0 0
        %841 = vmatpush1.bf16.msra.mxu0 %v796
        %842 = vmatprep.subr.bf16.mxu0 0
        %843 = vmatpush1.bf16.msra.mxu0 %v797
        %844 = vmatprep.subr.bf16.mxu0 0
        %845 = vmatpush1.bf16.msra.mxu0 %v798
        %846 = vmatprep.subr.bf16.mxu0 0
        %847 = vmatpush1.bf16.msra.mxu0 %v799
        %848 = vmatprep.mubr.bf16.mxu0 %v657
        %849 = vmatmul.mubr.bf16.gmra.mrb[0].mxu0 %v656
        %v850 = vpop.f32.mrb[0].mxu0
        %v851 = vadd.f32 0.0, %v850
        %v852 = vpop.f32.mrb[0].mxu0
        %v853 = vpop.f32.mrb[0].mxu0
        %v854 = vadd.f32 0.0, %v853
        %v855 = vpop.f32.mrb[0].mxu0
        %856 = vmatprep.mubr.bf16.mxu0 %v659
        %857 = vmatmul.mubr.bf16.gmra.mrb[0].mxu0 %v658
        %v858 = vpop.f32.mrb[0].mxu0
        %v859 = vadd.f32 0.0, %v858
        %v860 = vpop.f32.mrb[0].mxu0
        %v861 = vpop.f32.mrb[0].mxu0
        %v862 = vadd.f32 0.0, %v861
        %v863 = vpop.f32.mrb[0].mxu0
        %864 = vmatprep.mubr.bf16.mxu0 %v661
        %865 = vmatmul.mubr.bf16.gmra.mrb[0].mxu0 %v660
        %v866 = vpop.f32.mrb[0].mxu0
        %v867 = vadd.f32 0.0, %v866
        %v868 = vpop.f32.mrb[0].mxu0
        %v869 = vpop.f32.mrb[0].mxu0
        %v870 = vadd.f32 0.0, %v869
        %v871 = vpop.f32.mrb[0].mxu0
        %872 = vmatprep.mubr.bf16.mxu0 %v663
        %873 = vmatmul.mubr.bf16.gmra.mrb[0].mxu0 %v662
        %v874 = vpop.f32.mrb[0].mxu0
        %v875 = vadd.f32 0.0, %v874
        %v876 = vpop.f32.mrb[0].mxu0
        %v877 = vpop.f32.mrb[0].mxu0
        %v878 = vadd.f32 0.0, %v877
        %v879 = vpop.f32.mrb[0].mxu0
        %880 = vmatprep.mubr.bf16.mxu0 %v665
        %881 = vmatmul.mubr.bf16.gmra.mrb[0].mxu0 %v664
        %v882 = vpop.f32.mrb[0].mxu0
        %v883 = vadd.f32 0.0, %v882
        %v884 = vpop.f32.mrb[0].mxu0
        %v885 = vpop.f32.mrb[0].mxu0
        %v886 = vadd.f32 0.0, %v885
        %v887 = vpop.f32.mrb[0].mxu0
        %888 = vmatprep.mubr.bf16.mxu0 %v667
        %889 = vmatmul.mubr.bf16.gmra.mrb[0].mxu0 %v666
        %v890 = vpop.f32.mrb[0].mxu0
        %v891 = vadd.f32 0.0, %v890
        %v892 = vpop.f32.mrb[0].mxu0
        %v893 = vpop.f32.mrb[0].mxu0
        %v894 = vadd.f32 0.0, %v893
        %v895 = vpop.f32.mrb[0].mxu0
        %896 = vmatprep.mubr.bf16.mxu0 %v669
        %897 = vmatmul.mubr.bf16.gmra.mrb[0].mxu0 %v668
        %v898 = vpop.f32.mrb[0].mxu0
        %v899 = vadd.f32 0.0, %v898
        %v900 = vpop.f32.mrb[0].mxu0
        %v901 = vpop.f32.mrb[0].mxu0
        %v902 = vadd.f32 0.0, %v901
        %v903 = vpop.f32.mrb[0].mxu0
        %904 = vmatprep.mubr.bf16.mxu0 %v671
        %905 = vmatmul.mubr.bf16.gmra.mrb[0].mxu0 %v670
        %v906 = vpop.f32.mrb[0].mxu0
        %v907 = vadd.f32 0.0, %v906
        %v908 = vpop.f32.mrb[0].mxu0
        %v909 = vpop.f32.mrb[0].mxu0
        %v910 = vadd.f32 0.0, %v909
        %v911 = vpop.f32.mrb[0].mxu0
        %912 = vmatprep.mubr.bf16.mxu0 %v673
        %913 = vmatmul.mubr.bf16.gmra.mrb[0].mxu0 %v672
        %v914 = vpop.f32.mrb[0].mxu0
        %v915 = vadd.f32 0.0, %v914
        %v916 = vpop.f32.mrb[0].mxu0
        %v917 = vpop.f32.mrb[0].mxu0
        %v918 = vadd.f32 0.0, %v917
        %v919 = vpop.f32.mrb[0].mxu0
        %920 = vmatprep.mubr.bf16.mxu0 %v675
        %921 = vmatmul.mubr.bf16.gmra.mrb[0].mxu0 %v674
        %v922 = vpop.f32.mrb[0].mxu0
        %v923 = vadd.f32 0.0, %v922
        %v924 = vpop.f32.mrb[0].mxu0
        %v925 = vpop.f32.mrb[0].mxu0
        %v926 = vadd.f32 0.0, %v925
        %v927 = vpop.f32.mrb[0].mxu0
        %928 = vmatprep.mubr.bf16.mxu0 %v677
        %929 = vmatmul.mubr.bf16.gmra.mrb[0].mxu0 %v676
        %v930 = vpop.f32.mrb[0].mxu0
        %v931 = vadd.f32 0.0, %v930
        %v932 = vpop.f32.mrb[0].mxu0
        %v933 = vpop.f32.mrb[0].mxu0
        %v934 = vadd.f32 0.0, %v933
        %v935 = vpop.f32.mrb[0].mxu0
        %936 = vmatprep.mubr.bf16.mxu0 %v679
        %937 = vmatmul.mubr.bf16.gmra.mrb[0].mxu0 %v678
        %v938 = vpop.f32.mrb[0].mxu0
        %v939 = vadd.f32 0.0, %v938
        %v940 = vpop.f32.mrb[0].mxu0
        %v941 = vpop.f32.mrb[0].mxu0
        %v942 = vadd.f32 0.0, %v941
        %v943 = vpop.f32.mrb[0].mxu0
        %944 = vmatprep.mubr.bf16.mxu0 %v681
        %945 = vmatmul.mubr.bf16.gmra.mrb[0].mxu0 %v680
        %v946 = vpop.f32.mrb[0].mxu0
        %v947 = vadd.f32 0.0, %v946
        %v948 = vpop.f32.mrb[0].mxu0
        %v949 = vpop.f32.mrb[0].mxu0
        %v950 = vadd.f32 0.0, %v949
        %v951 = vpop.f32.mrb[0].mxu0
        %952 = vmatprep.mubr.bf16.mxu0 %v683
        %953 = vmatmul.mubr.bf16.gmra.mrb[0].mxu0 %v682
        %v954 = vpop.f32.mrb[0].mxu0
        %v955 = vadd.f32 0.0, %v954
        %v956 = vpop.f32.mrb[0].mxu0
        %v957 = vpop.f32.mrb[0].mxu0
        %v958 = vadd.f32 0.0, %v957
        %v959 = vpop.f32.mrb[0].mxu0
        %960 = vmatprep.mubr.bf16.mxu0 %v685
        %961 = vmatmul.mubr.bf16.gmra.mrb[0].mxu0 %v684
        %v962 = vpop.f32.mrb[0].mxu0
        %v963 = vadd.f32 0.0, %v962
        %v964 = vpop.f32.mrb[0].mxu0
        %v965 = vpop.f32.mrb[0].mxu0
        %v966 = vadd.f32 0.0, %v965
        %v967 = vpop.f32.mrb[0].mxu0
        %968 = vmatprep.mubr.bf16.mxu0 %v687
        %969 = vmatmul.mubr.bf16.gmra.mrb[0].mxu0 %v686
        %v970 = vpop.f32.mrb[0].mxu0
        %v971 = vadd.f32 0.0, %v970
        %v972 = vpop.f32.mrb[0].mxu0
        %v973 = vpop.f32.mrb[0].mxu0
        %v974 = vadd.f32 0.0, %v973
        %v975 = vpop.f32.mrb[0].mxu0
        %976 = vdwg.mxu0
        %v977 = vmax.f32 %v851, 0.0
        %v978 = vmax.f32 %v854, 0.0
        %v979 = vmax.f32 %v859, 0.0
        %v980 = vmax.f32 %v862, 0.0
        %v981 = vmax.f32 %v867, 0.0
        %v982 = vmax.f32 %v870, 0.0
        %v983 = vmax.f32 %v875, 0.0
        %v984 = vmax.f32 %v878, 0.0
        %v985 = vmax.f32 %v883, 0.0
        %v986 = vmax.f32 %v886, 0.0
        %v987 = vmax.f32 %v891, 0.0
        %v988 = vmax.f32 %v894, 0.0
        %v989 = vmax.f32 %v899, 0.0
        %v990 = vmax.f32 %v902, 0.0
        %v991 = vmax.f32 %v907, 0.0
        %v992 = vmax.f32 %v910, 0.0
        %v993 = vmax.f32 %v915, 0.0
        %v994 = vmax.f32 %v918, 0.0
        %v995 = vmax.f32 %v923, 0.0
        %v996 = vmax.f32 %v926, 0.0
        %v997 = vmax.f32 %v931, 0.0
        %v998 = vmax.f32 %v934, 0.0
        %v999 = vmax.f32 %v939, 0.0
        %v1000 = vmax.f32 %v942, 0.0
        %v1001 = vmax.f32 %v947, 0.0
        %v1002 = vmax.f32 %v950, 0.0
        %v1003 = vmax.f32 %v955, 0.0
        %v1004 = vmax.f32 %v958, 0.0
        %v1005 = vmax.f32 %v963, 0.0
        %v1006 = vmax.f32 %v966, 0.0
        %v1007 = vmax.f32 %v971, 0.0
        %v1008 = vmax.f32 %v974, 0.0
        %v1009 = vpack.c.bf16 %v978, %v977
        %v1010 = vpack.c.bf16 %v980, %v979
        %v1011 = vpack.c.bf16 %v982, %v981
        %v1012 = vpack.c.bf16 %v984, %v983
        %v1013 = vpack.c.bf16 %v986, %v985
        %v1014 = vpack.c.bf16 %v988, %v987
        %v1015 = vpack.c.bf16 %v990, %v989
        %v1016 = vpack.c.bf16 %v992, %v991
        %v1017 = vpack.c.bf16 %v994, %v993
        %v1018 = vpack.c.bf16 %v996, %v995
        %v1019 = vpack.c.bf16 %v998, %v997
        %v1020 = vpack.c.bf16 %v1000, %v999
        %v1021 = vpack.c.bf16 %v1002, %v1001
        %v1022 = vpack.c.bf16 %v1004, %v1003
        %v1023 = vpack.c.bf16 %v1006, %v1005
        %v1024 = vpack.c.bf16 %v1008, %v1007
        %1025 = vst [vmem:[#allocation2] sm:$0xff] %v1009
        %1026 = vst [vmem:[#allocation2 + $0x20] sm:$0xff] %v1010
        %1027 = vst [vmem:[#allocation2 + $0x40] sm:$0xff] %v1011
        %1028 = vst [vmem:[#allocation2 + $0x60] sm:$0xff] %v1012
        %1029 = vst [vmem:[#allocation2 + $0x80] sm:$0xff] %v1013
        %1030 = vst [vmem:[#allocation2 + $0xa0] sm:$0xff] %v1014
        %1031 = vst [vmem:[#allocation2 + $0xc0] sm:$0xff] %v1015
        %1032 = vst [vmem:[#allocation2 + $0xe0] sm:$0xff] %v1016
        %1033 = vst [vmem:[#allocation2 + $0x100] sm:$0xff] %v1017
        %1034 = vst [vmem:[#allocation2 + $0x120] sm:$0xff] %v1018
        %1035 = vst [vmem:[#allocation2 + $0x140] sm:$0xff] %v1019
        %1036 = vst [vmem:[#allocation2 + $0x160] sm:$0xff] %v1020
        %1037 = vst [vmem:[#allocation2 + $0x180] sm:$0xff] %v1021
        %1038 = vst [vmem:[#allocation2 + $0x1a0] sm:$0xff] %v1022
        %1039 = vst [vmem:[#allocation2 + $0x1c0] sm:$0xff] %v1023
        %1040 = vst [vmem:[#allocation2 + $0x1e0] sm:$0xff] %v1024
        %v1041 = vld [vmem:[%s412] sm:$0xff]
        %v1042 = vld [vmem:[%s412 + $0x8] sm:$0xff]
        %v1043 = vld [vmem:[%s412 + $0x10] sm:$0xff]
        %v1044 = vld [vmem:[%s412 + $0x18] sm:$0xff]
        %v1045 = vld [vmem:[%s412 + $0x20] sm:$0xff]
        %v1046 = vld [vmem:[%s412 + $0x28] sm:$0xff]
        %v1047 = vld [vmem:[%s412 + $0x30] sm:$0xff]
        %v1048 = vld [vmem:[%s412 + $0x38] sm:$0xff]
        %v1049 = vld [vmem:[%s412 + $0x40] sm:$0xff]
        %v1050 = vld [vmem:[%s412 + $0x48] sm:$0xff]
        %v1051 = vld [vmem:[%s412 + $0x50] sm:$0xff]
        %v1052 = vld [vmem:[%s412 + $0x58] sm:$0xff]
        %v1053 = vld [vmem:[%s412 + $0x60] sm:$0xff]
        %v1054 = vld [vmem:[%s412 + $0x68] sm:$0xff]
        %v1055 = vld [vmem:[%s412 + $0x70] sm:$0xff]
        %v1056 = vld [vmem:[%s412 + $0x78] sm:$0xff]
        %v1057 = vld [vmem:[%s412 + $0x80] sm:$0xff]
        %v1058 = vld [vmem:[%s412 + $0x88] sm:$0xff]
        %v1059 = vld [vmem:[%s412 + $0x90] sm:$0xff]
        %v1060 = vld [vmem:[%s412 + $0x98] sm:$0xff]
        %v1061 = vld [vmem:[%s412 + $0xa0] sm:$0xff]
        %v1062 = vld [vmem:[%s412 + $0xa8] sm:$0xff]
        %v1063 = vld [vmem:[%s412 + $0xb0] sm:$0xff]
        %v1064 = vld [vmem:[%s412 + $0xb8] sm:$0xff]
        %v1065 = vld [vmem:[%s412 + $0xc0] sm:$0xff]
        %v1066 = vld [vmem:[%s412 + $0xc8] sm:$0xff]
        %v1067 = vld [vmem:[%s412 + $0xd0] sm:$0xff]
        %v1068 = vld [vmem:[%s412 + $0xd8] sm:$0xff]
        %v1069 = vld [vmem:[%s412 + $0xe0] sm:$0xff]
        %v1070 = vld [vmem:[%s412 + $0xe8] sm:$0xff]
        %v1071 = vld [vmem:[%s412 + $0xf0] sm:$0xff]
        %v1072 = vld [vmem:[%s412 + $0xf8] sm:$0xff]
        %s1073 = scalar_lea.vmem [#allocation12], 128
        %v1074 = vld [vmem:[%s1073] sm:$0xf]
        %v1075 = vld [vmem:[%s1073 + $0x4] sm:$0xf]
        %v1076 = vld [vmem:[%s1073 + $0x8] sm:$0xf]
        %v1077 = vld [vmem:[%s1073 + $0xc] sm:$0xf]
        %v1078 = vld [vmem:[%s1073 + $0x10] sm:$0xf]
        %v1079 = vld [vmem:[%s1073 + $0x14] sm:$0xf]
        %v1080 = vld [vmem:[%s1073 + $0x18] sm:$0xf]
        %v1081 = vld [vmem:[%s1073 + $0x1c] sm:$0xf]
        %v1082 = vld [vmem:[%s1073 + $0x20] sm:$0xf]
        %v1083 = vld [vmem:[%s1073 + $0x24] sm:$0xf]
        %v1084 = vld [vmem:[%s1073 + $0x28] sm:$0xf]
        %v1085 = vld [vmem:[%s1073 + $0x2c] sm:$0xf]
        %v1086 = vld [vmem:[%s1073 + $0x30] sm:$0xf]
        %v1087 = vld [vmem:[%s1073 + $0x34] sm:$0xf]
        %v1088 = vld [vmem:[%s1073 + $0x38] sm:$0xf]
        %v1089 = vld [vmem:[%s1073 + $0x3c] sm:$0xf]
        %v1090 = vld [vmem:[%s1073 + $0x40] sm:$0xf]
        %v1091 = vld [vmem:[%s1073 + $0x44] sm:$0xf]
        %v1092 = vld [vmem:[%s1073 + $0x48] sm:$0xf]
        %v1093 = vld [vmem:[%s1073 + $0x4c] sm:$0xf]
        %v1094 = vld [vmem:[%s1073 + $0x50] sm:$0xf]
        %v1095 = vld [vmem:[%s1073 + $0x54] sm:$0xf]
        %v1096 = vld [vmem:[%s1073 + $0x58] sm:$0xf]
        %v1097 = vld [vmem:[%s1073 + $0x5c] sm:$0xf]
        %v1098 = vld [vmem:[%s1073 + $0x60] sm:$0xf]
        %v1099 = vld [vmem:[%s1073 + $0x64] sm:$0xf]
        %v1100 = vld [vmem:[%s1073 + $0x68] sm:$0xf]
        %v1101 = vld [vmem:[%s1073 + $0x6c] sm:$0xf]
        %v1102 = vld [vmem:[%s1073 + $0x70] sm:$0xf]
        %v1103 = vld [vmem:[%s1073 + $0x74] sm:$0xf]
        %v1104 = vld [vmem:[%s1073 + $0x78] sm:$0xf]
        %v1105 = vld [vmem:[%s1073 + $0x7c] sm:$0xf]
        %v1138 = vunpack.c.l.b16 %v1041
        %v1139 = vunpack.c.h.b16 %v1041
        %v1140 = vunpack.c.l.b16 %v1042
        %v1141 = vunpack.c.h.b16 %v1042
        %v1142 = vunpack.c.l.b16 %v1043
        %v1143 = vunpack.c.h.b16 %v1043
        %v1144 = vunpack.c.l.b16 %v1044
        %v1145 = vunpack.c.h.b16 %v1044
        %v1146 = vunpack.c.l.b16 %v1045
        %v1147 = vunpack.c.h.b16 %v1045
        %v1148 = vunpack.c.l.b16 %v1046
        %v1149 = vunpack.c.h.b16 %v1046
        %v1150 = vunpack.c.l.b16 %v1047
        %v1151 = vunpack.c.h.b16 %v1047
        %v1152 = vunpack.c.l.b16 %v1048
        %v1153 = vunpack.c.h.b16 %v1048
        %v1154 = vunpack.c.l.b16 %v1049
        %v1155 = vunpack.c.h.b16 %v1049
        %v1156 = vunpack.c.l.b16 %v1050
        %v1157 = vunpack.c.h.b16 %v1050
        %v1158 = vunpack.c.l.b16 %v1051
        %v1159 = vunpack.c.h.b16 %v1051
        %v1160 = vunpack.c.l.b16 %v1052
        %v1161 = vunpack.c.h.b16 %v1052
        %v1162 = vunpack.c.l.b16 %v1053
        %v1163 = vunpack.c.h.b16 %v1053
        %v1164 = vunpack.c.l.b16 %v1054
        %v1165 = vunpack.c.h.b16 %v1054
        %v1166 = vunpack.c.l.b16 %v1055
        %v1167 = vunpack.c.h.b16 %v1055
        %v1168 = vunpack.c.l.b16 %v1056
        %v1169 = vunpack.c.h.b16 %v1056
        %v1170 = vunpack.c.l.b16 %v1057
        %v1171 = vunpack.c.h.b16 %v1057
        %v1172 = vunpack.c.l.b16 %v1058
        %v1173 = vunpack.c.h.b16 %v1058
        %v1174 = vunpack.c.l.b16 %v1059
        %v1175 = vunpack.c.h.b16 %v1059
        %v1176 = vunpack.c.l.b16 %v1060
        %v1177 = vunpack.c.h.b16 %v1060
        %v1178 = vunpack.c.l.b16 %v1061
        %v1179 = vunpack.c.h.b16 %v1061
        %v1180 = vunpack.c.l.b16 %v1062
        %v1181 = vunpack.c.h.b16 %v1062
        %v1182 = vunpack.c.l.b16 %v1063
        %v1183 = vunpack.c.h.b16 %v1063
        %v1184 = vunpack.c.l.b16 %v1064
        %v1185 = vunpack.c.h.b16 %v1064
        %v1186 = vunpack.c.l.b16 %v1065
        %v1187 = vunpack.c.h.b16 %v1065
        %v1188 = vunpack.c.l.b16 %v1066
        %v1189 = vunpack.c.h.b16 %v1066
        %v1190 = vunpack.c.l.b16 %v1067
        %v1191 = vunpack.c.h.b16 %v1067
        %v1192 = vunpack.c.l.b16 %v1068
        %v1193 = vunpack.c.h.b16 %v1068
        %v1194 = vunpack.c.l.b16 %v1069
        %v1195 = vunpack.c.h.b16 %v1069
        %v1196 = vunpack.c.l.b16 %v1070
        %v1197 = vunpack.c.h.b16 %v1070
        %v1198 = vunpack.c.l.b16 %v1071
        %v1199 = vunpack.c.h.b16 %v1071
        %v1200 = vunpack.c.l.b16 %v1072
        %v1201 = vunpack.c.h.b16 %v1072
        %v1202 = vpack.c.b16 %v1140, %v1138
        %v1203 = vpack.c.b16 %v1141, %v1139
        %v1204 = vpack.c.b16 %v1144, %v1142
        %v1205 = vpack.c.b16 %v1145, %v1143
        %v1206 = vpack.c.b16 %v1148, %v1146
        %v1207 = vpack.c.b16 %v1149, %v1147
        %v1208 = vpack.c.b16 %v1152, %v1150
        %v1209 = vpack.c.b16 %v1153, %v1151
        %v1210 = vpack.c.b16 %v1156, %v1154
        %v1211 = vpack.c.b16 %v1157, %v1155
        %v1212 = vpack.c.b16 %v1160, %v1158
        %v1213 = vpack.c.b16 %v1161, %v1159
        %v1214 = vpack.c.b16 %v1164, %v1162
        %v1215 = vpack.c.b16 %v1165, %v1163
        %v1216 = vpack.c.b16 %v1168, %v1166
        %v1217 = vpack.c.b16 %v1169, %v1167
        %v1218 = vpack.c.b16 %v1172, %v1170
        %v1219 = vpack.c.b16 %v1173, %v1171
        %v1220 = vpack.c.b16 %v1176, %v1174
        %v1221 = vpack.c.b16 %v1177, %v1175
        %v1222 = vpack.c.b16 %v1180, %v1178
        %v1223 = vpack.c.b16 %v1181, %v1179
        %v1224 = vpack.c.b16 %v1184, %v1182
        %v1225 = vpack.c.b16 %v1185, %v1183
        %v1226 = vpack.c.b16 %v1188, %v1186
        %v1227 = vpack.c.b16 %v1189, %v1187
        %v1228 = vpack.c.b16 %v1192, %v1190
        %v1229 = vpack.c.b16 %v1193, %v1191
        %v1230 = vpack.c.b16 %v1196, %v1194
        %v1231 = vpack.c.b16 %v1197, %v1195
        %v1232 = vpack.c.b16 %v1200, %v1198
        %v1233 = vpack.c.b16 %v1201, %v1199
        %v1298 = vunpack.c.l.b16 %v1074
        %v1299 = vunpack.c.l.b16 %v1075
        %v1300 = vunpack.c.l.b16 %v1076
        %v1301 = vunpack.c.l.b16 %v1077
        %v1302 = vunpack.c.l.b16 %v1078
        %v1303 = vunpack.c.l.b16 %v1079
        %v1304 = vunpack.c.l.b16 %v1080
        %v1305 = vunpack.c.l.b16 %v1081
        %v1306 = vunpack.c.l.b16 %v1082
        %v1307 = vunpack.c.l.b16 %v1083
        %v1308 = vunpack.c.l.b16 %v1084
        %v1309 = vunpack.c.l.b16 %v1085
        %v1310 = vunpack.c.l.b16 %v1086
        %v1311 = vunpack.c.l.b16 %v1087
        %v1312 = vunpack.c.l.b16 %v1088
        %v1313 = vunpack.c.l.b16 %v1089
        %v1314 = vunpack.c.l.b16 %v1090
        %v1315 = vunpack.c.l.b16 %v1091
        %v1316 = vunpack.c.l.b16 %v1092
        %v1317 = vunpack.c.l.b16 %v1093
        %v1318 = vunpack.c.l.b16 %v1094
        %v1319 = vunpack.c.l.b16 %v1095
        %v1320 = vunpack.c.l.b16 %v1096
        %v1321 = vunpack.c.l.b16 %v1097
        %v1322 = vunpack.c.l.b16 %v1098
        %v1323 = vunpack.c.l.b16 %v1099
        %v1324 = vunpack.c.l.b16 %v1100
        %v1325 = vunpack.c.l.b16 %v1101
        %v1326 = vunpack.c.l.b16 %v1102
        %v1327 = vunpack.c.l.b16 %v1103
        %v1328 = vunpack.c.l.b16 %v1104
        %v1329 = vunpack.c.l.b16 %v1105
        %v1330 = vpack.c.b16 %v1299, %v1298
        %v1331 = vpack.c.b16 %v1301, %v1300
        %v1332 = vpack.c.b16 %v1303, %v1302
        %v1333 = vpack.c.b16 %v1305, %v1304
        %v1334 = vpack.c.b16 %v1307, %v1306
        %v1335 = vpack.c.b16 %v1309, %v1308
        %v1336 = vpack.c.b16 %v1311, %v1310
        %v1337 = vpack.c.b16 %v1313, %v1312
        %v1338 = vpack.c.b16 %v1315, %v1314
        %v1339 = vpack.c.b16 %v1317, %v1316
        %v1340 = vpack.c.b16 %v1319, %v1318
        %v1341 = vpack.c.b16 %v1321, %v1320
        %v1342 = vpack.c.b16 %v1323, %v1322
        %v1343 = vpack.c.b16 %v1325, %v1324
        %v1344 = vpack.c.b16 %v1327, %v1326
        %v1345 = vpack.c.b16 %v1329, %v1328
        %1362 = vmatprep.subr.bf16.mxu0 0
        %1363 = vmatpush1.bf16.msra.mxu0 %v1330
        %1364 = vmatprep.subr.bf16.mxu0 0
        %1365 = vmatpush1.bf16.msra.mxu0 %v1331
        %1366 = vmatprep.subr.bf16.mxu0 0
        %1367 = vmatpush1.bf16.msra.mxu0 %v1332
        %1368 = vmatprep.subr.bf16.mxu0 0
        %1369 = vmatpush1.bf16.msra.mxu0 %v1333
        %1370 = vmatprep.subr.bf16.mxu0 0
        %1371 = vmatpush1.bf16.msra.mxu0 %v1334
        %1372 = vmatprep.subr.bf16.mxu0 0
        %1373 = vmatpush1.bf16.msra.mxu0 %v1335
        %1374 = vmatprep.subr.bf16.mxu0 0
        %1375 = vmatpush1.bf16.msra.mxu0 %v1336
        %1376 = vmatprep.subr.bf16.mxu0 0
        %1377 = vmatpush1.bf16.msra.mxu0 %v1337
        %1378 = vmatprep.subr.bf16.mxu0 0
        %1379 = vmatpush1.bf16.msra.mxu0 %v1338
        %1380 = vmatprep.subr.bf16.mxu0 0
        %1381 = vmatpush1.bf16.msra.mxu0 %v1339
        %1382 = vmatprep.subr.bf16.mxu0 0
        %1383 = vmatpush1.bf16.msra.mxu0 %v1340
        %1384 = vmatprep.subr.bf16.mxu0 0
        %1385 = vmatpush1.bf16.msra.mxu0 %v1341
        %1386 = vmatprep.subr.bf16.mxu0 0
        %1387 = vmatpush1.bf16.msra.mxu0 %v1342
        %1388 = vmatprep.subr.bf16.mxu0 0
        %1389 = vmatpush1.bf16.msra.mxu0 %v1343
        %1390 = vmatprep.subr.bf16.mxu0 0
        %1391 = vmatpush1.bf16.msra.mxu0 %v1344
        %1392 = vmatprep.subr.bf16.mxu0 0
        %1393 = vmatpush1.bf16.msra.mxu0 %v1345
        %1394 = vmatprep.mubr.bf16.mxu0 %v1203
        %1395 = vmatmul.mubr.bf16.gmra.mrb[0].mxu0 %v1202
        %v1396 = vpop.f32.mrb[0].mxu0
        %v1397 = vadd.f32 0.0, %v1396
        %v1398 = vpop.f32.mrb[0].mxu0
        %v1399 = vpop.f32.mrb[0].mxu0
        %v1400 = vadd.f32 0.0, %v1399
        %v1401 = vpop.f32.mrb[0].mxu0
        %1402 = vmatprep.mubr.bf16.mxu0 %v1205
        %1403 = vmatmul.mubr.bf16.gmra.mrb[0].mxu0 %v1204
        %v1404 = vpop.f32.mrb[0].mxu0
        %v1405 = vadd.f32 0.0, %v1404
        %v1406 = vpop.f32.mrb[0].mxu0
        %v1407 = vpop.f32.mrb[0].mxu0
        %v1408 = vadd.f32 0.0, %v1407
        %v1409 = vpop.f32.mrb[0].mxu0
        %1410 = vmatprep.mubr.bf16.mxu0 %v1207
        %1411 = vmatmul.mubr.bf16.gmra.mrb[0].mxu0 %v1206
        %v1412 = vpop.f32.mrb[0].mxu0
        %v1413 = vadd.f32 0.0, %v1412
        %v1414 = vpop.f32.mrb[0].mxu0
        %v1415 = vpop.f32.mrb[0].mxu0
        %v1416 = vadd.f32 0.0, %v1415
        %v1417 = vpop.f32.mrb[0].mxu0
        %1418 = vmatprep.mubr.bf16.mxu0 %v1209
        %1419 = vmatmul.mubr.bf16.gmra.mrb[0].mxu0 %v1208
        %v1420 = vpop.f32.mrb[0].mxu0
        %v1421 = vadd.f32 0.0, %v1420
        %v1422 = vpop.f32.mrb[0].mxu0
        %v1423 = vpop.f32.mrb[0].mxu0
        %v1424 = vadd.f32 0.0, %v1423
        %v1425 = vpop.f32.mrb[0].mxu0
        %1426 = vmatprep.mubr.bf16.mxu0 %v1211
        %1427 = vmatmul.mubr.bf16.gmra.mrb[0].mxu0 %v1210
        %v1428 = vpop.f32.mrb[0].mxu0
        %v1429 = vadd.f32 0.0, %v1428
        %v1430 = vpop.f32.mrb[0].mxu0
        %v1431 = vpop.f32.mrb[0].mxu0
        %v1432 = vadd.f32 0.0, %v1431
        %v1433 = vpop.f32.mrb[0].mxu0
        %1434 = vmatprep.mubr.bf16.mxu0 %v1213
        %1435 = vmatmul.mubr.bf16.gmra.mrb[0].mxu0 %v1212
        %v1436 = vpop.f32.mrb[0].mxu0
        %v1437 = vadd.f32 0.0, %v1436
        %v1438 = vpop.f32.mrb[0].mxu0
        %v1439 = vpop.f32.mrb[0].mxu0
        %v1440 = vadd.f32 0.0, %v1439
        %v1441 = vpop.f32.mrb[0].mxu0
        %1442 = vmatprep.mubr.bf16.mxu0 %v1215
        %1443 = vmatmul.mubr.bf16.gmra.mrb[0].mxu0 %v1214
        %v1444 = vpop.f32.mrb[0].mxu0
        %v1445 = vadd.f32 0.0, %v1444
        %v1446 = vpop.f32.mrb[0].mxu0
        %v1447 = vpop.f32.mrb[0].mxu0
        %v1448 = vadd.f32 0.0, %v1447
        %v1449 = vpop.f32.mrb[0].mxu0
        %1450 = vmatprep.mubr.bf16.mxu0 %v1217
        %1451 = vmatmul.mubr.bf16.gmra.mrb[0].mxu0 %v1216
        %v1452 = vpop.f32.mrb[0].mxu0
        %v1453 = vadd.f32 0.0, %v1452
        %v1454 = vpop.f32.mrb[0].mxu0
        %v1455 = vpop.f32.mrb[0].mxu0
        %v1456 = vadd.f32 0.0, %v1455
        %v1457 = vpop.f32.mrb[0].mxu0
        %1458 = vmatprep.mubr.bf16.mxu0 %v1219
        %1459 = vmatmul.mubr.bf16.gmra.mrb[0].mxu0 %v1218
        %v1460 = vpop.f32.mrb[0].mxu0
        %v1461 = vadd.f32 0.0, %v1460
        %v1462 = vpop.f32.mrb[0].mxu0
        %v1463 = vpop.f32.mrb[0].mxu0
        %v1464 = vadd.f32 0.0, %v1463
        %v1465 = vpop.f32.mrb[0].mxu0
        %1466 = vmatprep.mubr.bf16.mxu0 %v1221
        %1467 = vmatmul.mubr.bf16.gmra.mrb[0].mxu0 %v1220
        %v1468 = vpop.f32.mrb[0].mxu0
        %v1469 = vadd.f32 0.0, %v1468
        %v1470 = vpop.f32.mrb[0].mxu0
        %v1471 = vpop.f32.mrb[0].mxu0
        %v1472 = vadd.f32 0.0, %v1471
        %v1473 = vpop.f32.mrb[0].mxu0
        %1474 = vmatprep.mubr.bf16.mxu0 %v1223
        %1475 = vmatmul.mubr.bf16.gmra.mrb[0].mxu0 %v1222
        %v1476 = vpop.f32.mrb[0].mxu0
        %v1477 = vadd.f32 0.0, %v1476
        %v1478 = vpop.f32.mrb[0].mxu0
        %v1479 = vpop.f32.mrb[0].mxu0
        %v1480 = vadd.f32 0.0, %v1479
        %v1481 = vpop.f32.mrb[0].mxu0
        %1482 = vmatprep.mubr.bf16.mxu0 %v1225
        %1483 = vmatmul.mubr.bf16.gmra.mrb[0].mxu0 %v1224
        %v1484 = vpop.f32.mrb[0].mxu0
        %v1485 = vadd.f32 0.0, %v1484
        %v1486 = vpop.f32.mrb[0].mxu0
        %v1487 = vpop.f32.mrb[0].mxu0
        %v1488 = vadd.f32 0.0, %v1487
        %v1489 = vpop.f32.mrb[0].mxu0
        %1490 = vmatprep.mubr.bf16.mxu0 %v1227
        %1491 = vmatmul.mubr.bf16.gmra.mrb[0].mxu0 %v1226
        %v1492 = vpop.f32.mrb[0].mxu0
        %v1493 = vadd.f32 0.0, %v1492
        %v1494 = vpop.f32.mrb[0].mxu0
        %v1495 = vpop.f32.mrb[0].mxu0
        %v1496 = vadd.f32 0.0, %v1495
        %v1497 = vpop.f32.mrb[0].mxu0
        %1498 = vmatprep.mubr.bf16.mxu0 %v1229
        %1499 = vmatmul.mubr.bf16.gmra.mrb[0].mxu0 %v1228
        %v1500 = vpop.f32.mrb[0].mxu0
        %v1501 = vadd.f32 0.0, %v1500
        %v1502 = vpop.f32.mrb[0].mxu0
        %v1503 = vpop.f32.mrb[0].mxu0
        %v1504 = vadd.f32 0.0, %v1503
        %v1505 = vpop.f32.mrb[0].mxu0
        %1506 = vmatprep.mubr.bf16.mxu0 %v1231
        %1507 = vmatmul.mubr.bf16.gmra.mrb[0].mxu0 %v1230
        %v1508 = vpop.f32.mrb[0].mxu0
        %v1509 = vadd.f32 0.0, %v1508
        %v1510 = vpop.f32.mrb[0].mxu0
        %v1511 = vpop.f32.mrb[0].mxu0
        %v1512 = vadd.f32 0.0, %v1511
        %v1513 = vpop.f32.mrb[0].mxu0
        %1514 = vmatprep.mubr.bf16.mxu0 %v1233
        %1515 = vmatmul.mubr.bf16.gmra.mrb[0].mxu0 %v1232
        %v1516 = vpop.f32.mrb[0].mxu0
        %v1517 = vadd.f32 0.0, %v1516
        %v1518 = vpop.f32.mrb[0].mxu0
        %v1519 = vpop.f32.mrb[0].mxu0
        %v1520 = vadd.f32 0.0, %v1519
        %v1521 = vpop.f32.mrb[0].mxu0
        %1522 = vdwg.mxu0
        %v1523 = vmax.f32 %v1397, 0.0
        %v1524 = vmax.f32 %v1400, 0.0
        %v1525 = vmax.f32 %v1405, 0.0
        %v1526 = vmax.f32 %v1408, 0.0
        %v1527 = vmax.f32 %v1413, 0.0
        %v1528 = vmax.f32 %v1416, 0.0
        %v1529 = vmax.f32 %v1421, 0.0
        %v1530 = vmax.f32 %v1424, 0.0
        %v1531 = vmax.f32 %v1429, 0.0
        %v1532 = vmax.f32 %v1432, 0.0
        %v1533 = vmax.f32 %v1437, 0.0
        %v1534 = vmax.f32 %v1440, 0.0
        %v1535 = vmax.f32 %v1445, 0.0
        %v1536 = vmax.f32 %v1448, 0.0
        %v1537 = vmax.f32 %v1453, 0.0
        %v1538 = vmax.f32 %v1456, 0.0
        %v1539 = vmax.f32 %v1461, 0.0
        %v1540 = vmax.f32 %v1464, 0.0
        %v1541 = vmax.f32 %v1469, 0.0
        %v1542 = vmax.f32 %v1472, 0.0
        %v1543 = vmax.f32 %v1477, 0.0
        %v1544 = vmax.f32 %v1480, 0.0
        %v1545 = vmax.f32 %v1485, 0.0
        %v1546 = vmax.f32 %v1488, 0.0
        %v1547 = vmax.f32 %v1493, 0.0
        %v1548 = vmax.f32 %v1496, 0.0
        %v1549 = vmax.f32 %v1501, 0.0
        %v1550 = vmax.f32 %v1504, 0.0
        %v1551 = vmax.f32 %v1509, 0.0
        %v1552 = vmax.f32 %v1512, 0.0
        %v1553 = vmax.f32 %v1517, 0.0
        %v1554 = vmax.f32 %v1520, 0.0
        %v1555 = vpack.c.bf16 %v1524, %v1523
        %v1556 = vpack.c.bf16 %v1526, %v1525
        %v1557 = vpack.c.bf16 %v1528, %v1527
        %v1558 = vpack.c.bf16 %v1530, %v1529
        %v1559 = vpack.c.bf16 %v1532, %v1531
        %v1560 = vpack.c.bf16 %v1534, %v1533
        %v1561 = vpack.c.bf16 %v1536, %v1535
        %v1562 = vpack.c.bf16 %v1538, %v1537
        %v1563 = vpack.c.bf16 %v1540, %v1539
        %v1564 = vpack.c.bf16 %v1542, %v1541
        %v1565 = vpack.c.bf16 %v1544, %v1543
        %v1566 = vpack.c.bf16 %v1546, %v1545
        %v1567 = vpack.c.bf16 %v1548, %v1547
        %v1568 = vpack.c.bf16 %v1550, %v1549
        %v1569 = vpack.c.bf16 %v1552, %v1551
        %v1570 = vpack.c.bf16 %v1554, %v1553
        %1571 = vst [vmem:[#allocation2 + $0x8] sm:$0xff] %v1555
        %1572 = vst [vmem:[#allocation2 + $0x28] sm:$0xff] %v1556
        %1573 = vst [vmem:[#allocation2 + $0x48] sm:$0xff] %v1557
        %1574 = vst [vmem:[#allocation2 + $0x68] sm:$0xff] %v1558
        %1575 = vst [vmem:[#allocation2 + $0x88] sm:$0xff] %v1559
        %1576 = vst [vmem:[#allocation2 + $0xa8] sm:$0xff] %v1560
        %1577 = vst [vmem:[#allocation2 + $0xc8] sm:$0xff] %v1561
        %1578 = vst [vmem:[#allocation2 + $0xe8] sm:$0xff] %v1562
        %1579 = vst [vmem:[#allocation2 + $0x108] sm:$0xff] %v1563
        %1580 = vst [vmem:[#allocation2 + $0x128] sm:$0xff] %v1564
        %1581 = vst [vmem:[#allocation2 + $0x148] sm:$0xff] %v1565
        %1582 = vst [vmem:[#allocation2 + $0x168] sm:$0xff] %v1566
        %1583 = vst [vmem:[#allocation2 + $0x188] sm:$0xff] %v1567
        %1584 = vst [vmem:[#allocation2 + $0x1a8] sm:$0xff] %v1568
        %1585 = vst [vmem:[#allocation2 + $0x1c8] sm:$0xff] %v1569
        %1586 = vst [vmem:[#allocation2 + $0x1e8] sm:$0xff] %v1570
        %v1587 = vld [vmem:[%s421] sm:$0xff]
        %v1588 = vld [vmem:[%s421 + $0x8] sm:$0xff]
        %v1589 = vld [vmem:[%s421 + $0x10] sm:$0xff]
        %v1590 = vld [vmem:[%s421 + $0x18] sm:$0xff]
        %v1591 = vld [vmem:[%s421 + $0x20] sm:$0xff]
        %v1592 = vld [vmem:[%s421 + $0x28] sm:$0xff]
        %v1593 = vld [vmem:[%s421 + $0x30] sm:$0xff]
        %v1594 = vld [vmem:[%s421 + $0x38] sm:$0xff]
        %v1595 = vld [vmem:[%s421 + $0x40] sm:$0xff]
        %v1596 = vld [vmem:[%s421 + $0x48] sm:$0xff]
        %v1597 = vld [vmem:[%s421 + $0x50] sm:$0xff]
        %v1598 = vld [vmem:[%s421 + $0x58] sm:$0xff]
        %v1599 = vld [vmem:[%s421 + $0x60] sm:$0xff]
        %v1600 = vld [vmem:[%s421 + $0x68] sm:$0xff]
        %v1601 = vld [vmem:[%s421 + $0x70] sm:$0xff]
        %v1602 = vld [vmem:[%s421 + $0x78] sm:$0xff]
        %v1603 = vld [vmem:[%s421 + $0x80] sm:$0xff]
        %v1604 = vld [vmem:[%s421 + $0x88] sm:$0xff]
        %v1605 = vld [vmem:[%s421 + $0x90] sm:$0xff]
        %v1606 = vld [vmem:[%s421 + $0x98] sm:$0xff]
        %v1607 = vld [vmem:[%s421 + $0xa0] sm:$0xff]
        %v1608 = vld [vmem:[%s421 + $0xa8] sm:$0xff]
        %v1609 = vld [vmem:[%s421 + $0xb0] sm:$0xff]
        %v1610 = vld [vmem:[%s421 + $0xb8] sm:$0xff]
        %v1611 = vld [vmem:[%s421 + $0xc0] sm:$0xff]
        %v1612 = vld [vmem:[%s421 + $0xc8] sm:$0xff]
        %v1613 = vld [vmem:[%s421 + $0xd0] sm:$0xff]
        %v1614 = vld [vmem:[%s421 + $0xd8] sm:$0xff]
        %v1615 = vld [vmem:[%s421 + $0xe0] sm:$0xff]
        %v1616 = vld [vmem:[%s421 + $0xe8] sm:$0xff]
        %v1617 = vld [vmem:[%s421 + $0xf0] sm:$0xff]
        %v1618 = vld [vmem:[%s421 + $0xf8] sm:$0xff]
        %s1619 = scalar_lea.vmem [#allocation12], 256
        %v1620 = vld [vmem:[%s1619] sm:$0xf]
        %v1621 = vld [vmem:[%s1619 + $0x4] sm:$0xf]
        %v1622 = vld [vmem:[%s1619 + $0x8] sm:$0xf]
        %v1623 = vld [vmem:[%s1619 + $0xc] sm:$0xf]
        %v1624 = vld [vmem:[%s1619 + $0x10] sm:$0xf]
        %v1625 = vld [vmem:[%s1619 + $0x14] sm:$0xf]
        %v1626 = vld [vmem:[%s1619 + $0x18] sm:$0xf]
        %v1627 = vld [vmem:[%s1619 + $0x1c] sm:$0xf]
        %v1628 = vld [vmem:[%s1619 + $0x20] sm:$0xf]
        %v1629 = vld [vmem:[%s1619 + $0x24] sm:$0xf]
        %v1630 = vld [vmem:[%s1619 + $0x28] sm:$0xf]
        %v1631 = vld [vmem:[%s1619 + $0x2c] sm:$0xf]
        %v1632 = vld [vmem:[%s1619 + $0x30] sm:$0xf]
        %v1633 = vld [vmem:[%s1619 + $0x34] sm:$0xf]
        %v1634 = vld [vmem:[%s1619 + $0x38] sm:$0xf]
        %v1635 = vld [vmem:[%s1619 + $0x3c] sm:$0xf]
        %v1636 = vld [vmem:[%s1619 + $0x40] sm:$0xf]
        %v1637 = vld [vmem:[%s1619 + $0x44] sm:$0xf]
        %v1638 = vld [vmem:[%s1619 + $0x48] sm:$0xf]
        %v1639 = vld [vmem:[%s1619 + $0x4c] sm:$0xf]
        %v1640 = vld [vmem:[%s1619 + $0x50] sm:$0xf]
        %v1641 = vld [vmem:[%s1619 + $0x54] sm:$0xf]
        %v1642 = vld [vmem:[%s1619 + $0x58] sm:$0xf]
        %v1643 = vld [vmem:[%s1619 + $0x5c] sm:$0xf]
        %v1644 = vld [vmem:[%s1619 + $0x60] sm:$0xf]
        %v1645 = vld [vmem:[%s1619 + $0x64] sm:$0xf]
        %v1646 = vld [vmem:[%s1619 + $0x68] sm:$0xf]
        %v1647 = vld [vmem:[%s1619 + $0x6c] sm:$0xf]
        %v1648 = vld [vmem:[%s1619 + $0x70] sm:$0xf]
        %v1649 = vld [vmem:[%s1619 + $0x74] sm:$0xf]
        %v1650 = vld [vmem:[%s1619 + $0x78] sm:$0xf]
        %v1651 = vld [vmem:[%s1619 + $0x7c] sm:$0xf]
        %v1684 = vunpack.c.l.b16 %v1587
        %v1685 = vunpack.c.h.b16 %v1587
        %v1686 = vunpack.c.l.b16 %v1588
        %v1687 = vunpack.c.h.b16 %v1588
        %v1688 = vunpack.c.l.b16 %v1589
        %v1689 = vunpack.c.h.b16 %v1589
        %v1690 = vunpack.c.l.b16 %v1590
        %v1691 = vunpack.c.h.b16 %v1590
        %v1692 = vunpack.c.l.b16 %v1591
        %v1693 = vunpack.c.h.b16 %v1591
        %v1694 = vunpack.c.l.b16 %v1592
        %v1695 = vunpack.c.h.b16 %v1592
        %v1696 = vunpack.c.l.b16 %v1593
        %v1697 = vunpack.c.h.b16 %v1593
        %v1698 = vunpack.c.l.b16 %v1594
        %v1699 = vunpack.c.h.b16 %v1594
        %v1700 = vunpack.c.l.b16 %v1595
        %v1701 = vunpack.c.h.b16 %v1595
        %v1702 = vunpack.c.l.b16 %v1596
        %v1703 = vunpack.c.h.b16 %v1596
        %v1704 = vunpack.c.l.b16 %v1597
        %v1705 = vunpack.c.h.b16 %v1597
        %v1706 = vunpack.c.l.b16 %v1598
        %v1707 = vunpack.c.h.b16 %v1598
        %v1708 = vunpack.c.l.b16 %v1599
        %v1709 = vunpack.c.h.b16 %v1599
        %v1710 = vunpack.c.l.b16 %v1600
        %v1711 = vunpack.c.h.b16 %v1600
        %v1712 = vunpack.c.l.b16 %v1601
        %v1713 = vunpack.c.h.b16 %v1601
        %v1714 = vunpack.c.l.b16 %v1602
        %v1715 = vunpack.c.h.b16 %v1602
        %v1716 = vunpack.c.l.b16 %v1603
        %v1717 = vunpack.c.h.b16 %v1603
        %v1718 = vunpack.c.l.b16 %v1604
        %v1719 = vunpack.c.h.b16 %v1604
        %v1720 = vunpack.c.l.b16 %v1605
        %v1721 = vunpack.c.h.b16 %v1605
        %v1722 = vunpack.c.l.b16 %v1606
        %v1723 = vunpack.c.h.b16 %v1606
        %v1724 = vunpack.c.l.b16 %v1607
        %v1725 = vunpack.c.h.b16 %v1607
        %v1726 = vunpack.c.l.b16 %v1608
        %v1727 = vunpack.c.h.b16 %v1608
        %v1728 = vunpack.c.l.b16 %v1609
        %v1729 = vunpack.c.h.b16 %v1609
        %v1730 = vunpack.c.l.b16 %v1610
        %v1731 = vunpack.c.h.b16 %v1610
        %v1732 = vunpack.c.l.b16 %v1611
        %v1733 = vunpack.c.h.b16 %v1611
        %v1734 = vunpack.c.l.b16 %v1612
        %v1735 = vunpack.c.h.b16 %v1612
        %v1736 = vunpack.c.l.b16 %v1613
        %v1737 = vunpack.c.h.b16 %v1613
        %v1738 = vunpack.c.l.b16 %v1614
        %v1739 = vunpack.c.h.b16 %v1614
        %v1740 = vunpack.c.l.b16 %v1615
        %v1741 = vunpack.c.h.b16 %v1615
        %v1742 = vunpack.c.l.b16 %v1616
        %v1743 = vunpack.c.h.b16 %v1616
        %v1744 = vunpack.c.l.b16 %v1617
        %v1745 = vunpack.c.h.b16 %v1617
        %v1746 = vunpack.c.l.b16 %v1618
        %v1747 = vunpack.c.h.b16 %v1618
        %v1748 = vpack.c.b16 %v1686, %v1684
        %v1749 = vpack.c.b16 %v1687, %v1685
        %v1750 = vpack.c.b16 %v1690, %v1688
        %v1751 = vpack.c.b16 %v1691, %v1689
        %v1752 = vpack.c.b16 %v1694, %v1692
        %v1753 = vpack.c.b16 %v1695, %v1693
        %v1754 = vpack.c.b16 %v1698, %v1696
        %v1755 = vpack.c.b16 %v1699, %v1697
        %v1756 = vpack.c.b16 %v1702, %v1700
        %v1757 = vpack.c.b16 %v1703, %v1701
        %v1758 = vpack.c.b16 %v1706, %v1704
        %v1759 = vpack.c.b16 %v1707, %v1705
        %v1760 = vpack.c.b16 %v1710, %v1708
        %v1761 = vpack.c.b16 %v1711, %v1709
        %v1762 = vpack.c.b16 %v1714, %v1712
        %v1763 = vpack.c.b16 %v1715, %v1713
        %v1764 = vpack.c.b16 %v1718, %v1716
        %v1765 = vpack.c.b16 %v1719, %v1717
        %v1766 = vpack.c.b16 %v1722, %v1720
        %v1767 = vpack.c.b16 %v1723, %v1721
        %v1768 = vpack.c.b16 %v1726, %v1724
        %v1769 = vpack.c.b16 %v1727, %v1725
        %v1770 = vpack.c.b16 %v1730, %v1728
        %v1771 = vpack.c.b16 %v1731, %v1729
        %v1772 = vpack.c.b16 %v1734, %v1732
        %v1773 = vpack.c.b16 %v1735, %v1733
        %v1774 = vpack.c.b16 %v1738, %v1736
        %v1775 = vpack.c.b16 %v1739, %v1737
        %v1776 = vpack.c.b16 %v1742, %v1740
        %v1777 = vpack.c.b16 %v1743, %v1741
        %v1778 = vpack.c.b16 %v1746, %v1744
        %v1779 = vpack.c.b16 %v1747, %v1745
        %v1844 = vunpack.c.l.b16 %v1620
        %v1845 = vunpack.c.l.b16 %v1621
        %v1846 = vunpack.c.l.b16 %v1622
        %v1847 = vunpack.c.l.b16 %v1623
        %v1848 = vunpack.c.l.b16 %v1624
        %v1849 = vunpack.c.l.b16 %v1625
        %v1850 = vunpack.c.l.b16 %v1626
        %v1851 = vunpack.c.l.b16 %v1627
        %v1852 = vunpack.c.l.b16 %v1628
        %v1853 = vunpack.c.l.b16 %v1629
        %v1854 = vunpack.c.l.b16 %v1630
        %v1855 = vunpack.c.l.b16 %v1631
        %v1856 = vunpack.c.l.b16 %v1632
        %v1857 = vunpack.c.l.b16 %v1633
        %v1858 = vunpack.c.l.b16 %v1634
        %v1859 = vunpack.c.l.b16 %v1635
        %v1860 = vunpack.c.l.b16 %v1636
        %v1861 = vunpack.c.l.b16 %v1637
        %v1862 = vunpack.c.l.b16 %v1638
        %v1863 = vunpack.c.l.b16 %v1639
        %v1864 = vunpack.c.l.b16 %v1640
        %v1865 = vunpack.c.l.b16 %v1641
        %v1866 = vunpack.c.l.b16 %v1642
        %v1867 = vunpack.c.l.b16 %v1643
        %v1868 = vunpack.c.l.b16 %v1644
        %v1869 = vunpack.c.l.b16 %v1645
        %v1870 = vunpack.c.l.b16 %v1646
        %v1871 = vunpack.c.l.b16 %v1647
        %v1872 = vunpack.c.l.b16 %v1648
        %v1873 = vunpack.c.l.b16 %v1649
        %v1874 = vunpack.c.l.b16 %v1650
        %v1875 = vunpack.c.l.b16 %v1651
        %v1876 = vpack.c.b16 %v1845, %v1844
        %v1877 = vpack.c.b16 %v1847, %v1846
        %v1878 = vpack.c.b16 %v1849, %v1848
        %v1879 = vpack.c.b16 %v1851, %v1850
        %v1880 = vpack.c.b16 %v1853, %v1852
        %v1881 = vpack.c.b16 %v1855, %v1854
        %v1882 = vpack.c.b16 %v1857, %v1856
        %v1883 = vpack.c.b16 %v1859, %v1858
        %v1884 = vpack.c.b16 %v1861, %v1860
        %v1885 = vpack.c.b16 %v1863, %v1862
        %v1886 = vpack.c.b16 %v1865, %v1864
        %v1887 = vpack.c.b16 %v1867, %v1866
        %v1888 = vpack.c.b16 %v1869, %v1868
        %v1889 = vpack.c.b16 %v1871, %v1870
        %v1890 = vpack.c.b16 %v1873, %v1872
        %v1891 = vpack.c.b16 %v1875, %v1874
        %1908 = vmatprep.subr.bf16.mxu0 0
        %1909 = vmatpush1.bf16.msra.mxu0 %v1876
        %1910 = vmatprep.subr.bf16.mxu0 0
        %1911 = vmatpush1.bf16.msra.mxu0 %v1877
        %1912 = vmatprep.subr.bf16.mxu0 0
        %1913 = vmatpush1.bf16.msra.mxu0 %v1878
        %1914 = vmatprep.subr.bf16.mxu0 0
        %1915 = vmatpush1.bf16.msra.mxu0 %v1879
        %1916 = vmatprep.subr.bf16.mxu0 0
        %1917 = vmatpush1.bf16.msra.mxu0 %v1880
        %1918 = vmatprep.subr.bf16.mxu0 0
        %1919 = vmatpush1.bf16.msra.mxu0 %v1881
        %1920 = vmatprep.subr.bf16.mxu0 0
        %1921 = vmatpush1.bf16.msra.mxu0 %v1882
        %1922 = vmatprep.subr.bf16.mxu0 0
        %1923 = vmatpush1.bf16.msra.mxu0 %v1883
        %1924 = vmatprep.subr.bf16.mxu0 0
        %1925 = vmatpush1.bf16.msra.mxu0 %v1884
        %1926 = vmatprep.subr.bf16.mxu0 0
        %1927 = vmatpush1.bf16.msra.mxu0 %v1885
        %1928 = vmatprep.subr.bf16.mxu0 0
        %1929 = vmatpush1.bf16.msra.mxu0 %v1886
        %1930 = vmatprep.subr.bf16.mxu0 0
        %1931 = vmatpush1.bf16.msra.mxu0 %v1887
        %1932 = vmatprep.subr.bf16.mxu0 0
        %1933 = vmatpush1.bf16.msra.mxu0 %v1888
        %1934 = vmatprep.subr.bf16.mxu0 0
        %1935 = vmatpush1.bf16.msra.mxu0 %v1889
        %1936 = vmatprep.subr.bf16.mxu0 0
        %1937 = vmatpush1.bf16.msra.mxu0 %v1890
        %1938 = vmatprep.subr.bf16.mxu0 0
        %1939 = vmatpush1.bf16.msra.mxu0 %v1891
        %1940 = vmatprep.mubr.bf16.mxu0 %v1749
        %1941 = vmatmul.mubr.bf16.gmra.mrb[0].mxu0 %v1748
        %v1942 = vpop.f32.mrb[0].mxu0
        %v1943 = vadd.f32 0.0, %v1942
        %v1944 = vpop.f32.mrb[0].mxu0
        %v1945 = vpop.f32.mrb[0].mxu0
        %v1946 = vadd.f32 0.0, %v1945
        %v1947 = vpop.f32.mrb[0].mxu0
        %1948 = vmatprep.mubr.bf16.mxu0 %v1751
        %1949 = vmatmul.mubr.bf16.gmra.mrb[0].mxu0 %v1750
        %v1950 = vpop.f32.mrb[0].mxu0
        %v1951 = vadd.f32 0.0, %v1950
        %v1952 = vpop.f32.mrb[0].mxu0
        %v1953 = vpop.f32.mrb[0].mxu0
        %v1954 = vadd.f32 0.0, %v1953
        %v1955 = vpop.f32.mrb[0].mxu0
        %1956 = vmatprep.mubr.bf16.mxu0 %v1753
        %1957 = vmatmul.mubr.bf16.gmra.mrb[0].mxu0 %v1752
        %v1958 = vpop.f32.mrb[0].mxu0
        %v1959 = vadd.f32 0.0, %v1958
        %v1960 = vpop.f32.mrb[0].mxu0
        %v1961 = vpop.f32.mrb[0].mxu0
        %v1962 = vadd.f32 0.0, %v1961
        %v1963 = vpop.f32.mrb[0].mxu0
        %1964 = vmatprep.mubr.bf16.mxu0 %v1755
        %1965 = vmatmul.mubr.bf16.gmra.mrb[0].mxu0 %v1754
        %v1966 = vpop.f32.mrb[0].mxu0
        %v1967 = vadd.f32 0.0, %v1966
        %v1968 = vpop.f32.mrb[0].mxu0
        %v1969 = vpop.f32.mrb[0].mxu0
        %v1970 = vadd.f32 0.0, %v1969
        %v1971 = vpop.f32.mrb[0].mxu0
        %1972 = vmatprep.mubr.bf16.mxu0 %v1757
        %1973 = vmatmul.mubr.bf16.gmra.mrb[0].mxu0 %v1756
        %v1974 = vpop.f32.mrb[0].mxu0
        %v1975 = vadd.f32 0.0, %v1974
        %v1976 = vpop.f32.mrb[0].mxu0
        %v1977 = vpop.f32.mrb[0].mxu0
        %v1978 = vadd.f32 0.0, %v1977
        %v1979 = vpop.f32.mrb[0].mxu0
        %1980 = vmatprep.mubr.bf16.mxu0 %v1759
        %1981 = vmatmul.mubr.bf16.gmra.mrb[0].mxu0 %v1758
        %v1982 = vpop.f32.mrb[0].mxu0
        %v1983 = vadd.f32 0.0, %v1982
        %v1984 = vpop.f32.mrb[0].mxu0
        %v1985 = vpop.f32.mrb[0].mxu0
        %v1986 = vadd.f32 0.0, %v1985
        %v1987 = vpop.f32.mrb[0].mxu0
        %1988 = vmatprep.mubr.bf16.mxu0 %v1761
        %1989 = vmatmul.mubr.bf16.gmra.mrb[0].mxu0 %v1760
        %v1990 = vpop.f32.mrb[0].mxu0
        %v1991 = vadd.f32 0.0, %v1990
        %v1992 = vpop.f32.mrb[0].mxu0
        %v1993 = vpop.f32.mrb[0].mxu0
        %v1994 = vadd.f32 0.0, %v1993
        %v1995 = vpop.f32.mrb[0].mxu0
        %1996 = vmatprep.mubr.bf16.mxu0 %v1763
        %1997 = vmatmul.mubr.bf16.gmra.mrb[0].mxu0 %v1762
        %v1998 = vpop.f32.mrb[0].mxu0
        %v1999 = vadd.f32 0.0, %v1998
        %v2000 = vpop.f32.mrb[0].mxu0
        %v2001 = vpop.f32.mrb[0].mxu0
        %v2002 = vadd.f32 0.0, %v2001
        %v2003 = vpop.f32.mrb[0].mxu0
        %2004 = vmatprep.mubr.bf16.mxu0 %v1765
        %2005 = vmatmul.mubr.bf16.gmra.mrb[0].mxu0 %v1764
        %v2006 = vpop.f32.mrb[0].mxu0
        %v2007 = vadd.f32 0.0, %v2006
        %v2008 = vpop.f32.mrb[0].mxu0
        %v2009 = vpop.f32.mrb[0].mxu0
        %v2010 = vadd.f32 0.0, %v2009
        %v2011 = vpop.f32.mrb[0].mxu0
        %2012 = vmatprep.mubr.bf16.mxu0 %v1767
        %2013 = vmatmul.mubr.bf16.gmra.mrb[0].mxu0 %v1766
        %v2014 = vpop.f32.mrb[0].mxu0
        %v2015 = vadd.f32 0.0, %v2014
        %v2016 = vpop.f32.mrb[0].mxu0
        %v2017 = vpop.f32.mrb[0].mxu0
        %v2018 = vadd.f32 0.0, %v2017
        %v2019 = vpop.f32.mrb[0].mxu0
        %2020 = vmatprep.mubr.bf16.mxu0 %v1769
        %2021 = vmatmul.mubr.bf16.gmra.mrb[0].mxu0 %v1768
        %v2022 = vpop.f32.mrb[0].mxu0
        %v2023 = vadd.f32 0.0, %v2022
        %v2024 = vpop.f32.mrb[0].mxu0
        %v2025 = vpop.f32.mrb[0].mxu0
        %v2026 = vadd.f32 0.0, %v2025
        %v2027 = vpop.f32.mrb[0].mxu0
        %2028 = vmatprep.mubr.bf16.mxu0 %v1771
        %2029 = vmatmul.mubr.bf16.gmra.mrb[0].mxu0 %v1770
        %v2030 = vpop.f32.mrb[0].mxu0
        %v2031 = vadd.f32 0.0, %v2030
        %v2032 = vpop.f32.mrb[0].mxu0
        %v2033 = vpop.f32.mrb[0].mxu0
        %v2034 = vadd.f32 0.0, %v2033
        %v2035 = vpop.f32.mrb[0].mxu0
        %2036 = vmatprep.mubr.bf16.mxu0 %v1773
        %2037 = vmatmul.mubr.bf16.gmra.mrb[0].mxu0 %v1772
        %v2038 = vpop.f32.mrb[0].mxu0
        %v2039 = vadd.f32 0.0, %v2038
        %v2040 = vpop.f32.mrb[0].mxu0
        %v2041 = vpop.f32.mrb[0].mxu0
        %v2042 = vadd.f32 0.0, %v2041
        %v2043 = vpop.f32.mrb[0].mxu0
        %2044 = vmatprep.mubr.bf16.mxu0 %v1775
        %2045 = vmatmul.mubr.bf16.gmra.mrb[0].mxu0 %v1774
        %v2046 = vpop.f32.mrb[0].mxu0
        %v2047 = vadd.f32 0.0, %v2046
        %v2048 = vpop.f32.mrb[0].mxu0
        %v2049 = vpop.f32.mrb[0].mxu0
        %v2050 = vadd.f32 0.0, %v2049
        %v2051 = vpop.f32.mrb[0].mxu0
        %2052 = vmatprep.mubr.bf16.mxu0 %v1777
        %2053 = vmatmul.mubr.bf16.gmra.mrb[0].mxu0 %v1776
        %v2054 = vpop.f32.mrb[0].mxu0
        %v2055 = vadd.f32 0.0, %v2054
        %v2056 = vpop.f32.mrb[0].mxu0
        %v2057 = vpop.f32.mrb[0].mxu0
        %v2058 = vadd.f32 0.0, %v2057
        %v2059 = vpop.f32.mrb[0].mxu0
        %2060 = vmatprep.mubr.bf16.mxu0 %v1779
        %2061 = vmatmul.mubr.bf16.gmra.mrb[0].mxu0 %v1778
        %v2062 = vpop.f32.mrb[0].mxu0
        %v2063 = vadd.f32 0.0, %v2062
        %v2064 = vpop.f32.mrb[0].mxu0
        %v2065 = vpop.f32.mrb[0].mxu0
        %v2066 = vadd.f32 0.0, %v2065
        %v2067 = vpop.f32.mrb[0].mxu0
        %2068 = vdwg.mxu0
        %v2069 = vmax.f32 %v1943, 0.0
        %v2070 = vmax.f32 %v1946, 0.0
        %v2071 = vmax.f32 %v1951, 0.0
        %v2072 = vmax.f32 %v1954, 0.0
        %v2073 = vmax.f32 %v1959, 0.0
        %v2074 = vmax.f32 %v1962, 0.0
        %v2075 = vmax.f32 %v1967, 0.0
        %v2076 = vmax.f32 %v1970, 0.0
        %v2077 = vmax.f32 %v1975, 0.0
        %v2078 = vmax.f32 %v1978, 0.0
        %v2079 = vmax.f32 %v1983, 0.0
        %v2080 = vmax.f32 %v1986, 0.0
        %v2081 = vmax.f32 %v1991, 0.0
        %v2082 = vmax.f32 %v1994, 0.0
        %v2083 = vmax.f32 %v1999, 0.0
        %v2084 = vmax.f32 %v2002, 0.0
        %v2085 = vmax.f32 %v2007, 0.0
        %v2086 = vmax.f32 %v2010, 0.0
        %v2087 = vmax.f32 %v2015, 0.0
        %v2088 = vmax.f32 %v2018, 0.0
        %v2089 = vmax.f32 %v2023, 0.0
        %v2090 = vmax.f32 %v2026, 0.0
        %v2091 = vmax.f32 %v2031, 0.0
        %v2092 = vmax.f32 %v2034, 0.0
        %v2093 = vmax.f32 %v2039, 0.0
        %v2094 = vmax.f32 %v2042, 0.0
        %v2095 = vmax.f32 %v2047, 0.0
        %v2096 = vmax.f32 %v2050, 0.0
        %v2097 = vmax.f32 %v2055, 0.0
        %v2098 = vmax.f32 %v2058, 0.0
        %v2099 = vmax.f32 %v2063, 0.0
        %v2100 = vmax.f32 %v2066, 0.0
        %v2101 = vpack.c.bf16 %v2070, %v2069
        %v2102 = vpack.c.bf16 %v2072, %v2071
        %v2103 = vpack.c.bf16 %v2074, %v2073
        %v2104 = vpack.c.bf16 %v2076, %v2075
        %v2105 = vpack.c.bf16 %v2078, %v2077
        %v2106 = vpack.c.bf16 %v2080, %v2079
        %v2107 = vpack.c.bf16 %v2082, %v2081
        %v2108 = vpack.c.bf16 %v2084, %v2083
        %v2109 = vpack.c.bf16 %v2086, %v2085
        %v2110 = vpack.c.bf16 %v2088, %v2087
        %v2111 = vpack.c.bf16 %v2090, %v2089
        %v2112 = vpack.c.bf16 %v2092, %v2091
        %v2113 = vpack.c.bf16 %v2094, %v2093
        %v2114 = vpack.c.bf16 %v2096, %v2095
        %v2115 = vpack.c.bf16 %v2098, %v2097
        %v2116 = vpack.c.bf16 %v2100, %v2099
        %2117 = vst [vmem:[#allocation2 + $0x10] sm:$0xff] %v2101
        %2118 = vst [vmem:[#allocation2 + $0x30] sm:$0xff] %v2102
        %2119 = vst [vmem:[#allocation2 + $0x50] sm:$0xff] %v2103
        %2120 = vst [vmem:[#allocation2 + $0x70] sm:$0xff] %v2104
        %2121 = vst [vmem:[#allocation2 + $0x90] sm:$0xff] %v2105
        %2122 = vst [vmem:[#allocation2 + $0xb0] sm:$0xff] %v2106
        %2123 = vst [vmem:[#allocation2 + $0xd0] sm:$0xff] %v2107
        %2124 = vst [vmem:[#allocation2 + $0xf0] sm:$0xff] %v2108
        %2125 = vst [vmem:[#allocation2 + $0x110] sm:$0xff] %v2109
        %2126 = vst [vmem:[#allocation2 + $0x130] sm:$0xff] %v2110
        %2127 = vst [vmem:[#allocation2 + $0x150] sm:$0xff] %v2111
        %2128 = vst [vmem:[#allocation2 + $0x170] sm:$0xff] %v2112
        %2129 = vst [vmem:[#allocation2 + $0x190] sm:$0xff] %v2113
        %2130 = vst [vmem:[#allocation2 + $0x1b0] sm:$0xff] %v2114
        %2131 = vst [vmem:[#allocation2 + $0x1d0] sm:$0xff] %v2115
        %2132 = vst [vmem:[#allocation2 + $0x1f0] sm:$0xff] %v2116
        %v2133 = vld [vmem:[%s430] sm:$0xff]
        %v2134 = vld [vmem:[%s430 + $0x8] sm:$0xff]
        %v2135 = vld [vmem:[%s430 + $0x10] sm:$0xff]
        %v2136 = vld [vmem:[%s430 + $0x18] sm:$0xff]
        %v2137 = vld [vmem:[%s430 + $0x20] sm:$0xff]
        %v2138 = vld [vmem:[%s430 + $0x28] sm:$0xff]
        %v2139 = vld [vmem:[%s430 + $0x30] sm:$0xff]
        %v2140 = vld [vmem:[%s430 + $0x38] sm:$0xff]
        %v2141 = vld [vmem:[%s430 + $0x40] sm:$0xff]
        %v2142 = vld [vmem:[%s430 + $0x48] sm:$0xff]
        %v2143 = vld [vmem:[%s430 + $0x50] sm:$0xff]
        %v2144 = vld [vmem:[%s430 + $0x58] sm:$0xff]
        %v2145 = vld [vmem:[%s430 + $0x60] sm:$0xff]
        %v2146 = vld [vmem:[%s430 + $0x68] sm:$0xff]
        %v2147 = vld [vmem:[%s430 + $0x70] sm:$0xff]
        %v2148 = vld [vmem:[%s430 + $0x78] sm:$0xff]
        %v2149 = vld [vmem:[%s430 + $0x80] sm:$0xff]
        %v2150 = vld [vmem:[%s430 + $0x88] sm:$0xff]
        %v2151 = vld [vmem:[%s430 + $0x90] sm:$0xff]
        %v2152 = vld [vmem:[%s430 + $0x98] sm:$0xff]
        %v2153 = vld [vmem:[%s430 + $0xa0] sm:$0xff]
        %v2154 = vld [vmem:[%s430 + $0xa8] sm:$0xff]
        %v2155 = vld [vmem:[%s430 + $0xb0] sm:$0xff]
        %v2156 = vld [vmem:[%s430 + $0xb8] sm:$0xff]
        %v2157 = vld [vmem:[%s430 + $0xc0] sm:$0xff]
        %v2158 = vld [vmem:[%s430 + $0xc8] sm:$0xff]
        %v2159 = vld [vmem:[%s430 + $0xd0] sm:$0xff]
        %v2160 = vld [vmem:[%s430 + $0xd8] sm:$0xff]
        %v2161 = vld [vmem:[%s430 + $0xe0] sm:$0xff]
        %v2162 = vld [vmem:[%s430 + $0xe8] sm:$0xff]
        %v2163 = vld [vmem:[%s430 + $0xf0] sm:$0xff]
        %v2164 = vld [vmem:[%s430 + $0xf8] sm:$0xff]
        %s2165 = scalar_lea.vmem [#allocation12], 384
        %v2166 = vld [vmem:[%s2165] sm:$0xf]
        %v2167 = vld [vmem:[%s2165 + $0x4] sm:$0xf]
        %v2168 = vld [vmem:[%s2165 + $0x8] sm:$0xf]
        %v2169 = vld [vmem:[%s2165 + $0xc] sm:$0xf]
        %v2170 = vld [vmem:[%s2165 + $0x10] sm:$0xf]
        %v2171 = vld [vmem:[%s2165 + $0x14] sm:$0xf]
        %v2172 = vld [vmem:[%s2165 + $0x18] sm:$0xf]
        %v2173 = vld [vmem:[%s2165 + $0x1c] sm:$0xf]
        %v2174 = vld [vmem:[%s2165 + $0x20] sm:$0xf]
        %v2175 = vld [vmem:[%s2165 + $0x24] sm:$0xf]
        %v2176 = vld [vmem:[%s2165 + $0x28] sm:$0xf]
        %v2177 = vld [vmem:[%s2165 + $0x2c] sm:$0xf]
        %v2178 = vld [vmem:[%s2165 + $0x30] sm:$0xf]
        %v2179 = vld [vmem:[%s2165 + $0x34] sm:$0xf]
        %v2180 = vld [vmem:[%s2165 + $0x38] sm:$0xf]
        %v2181 = vld [vmem:[%s2165 + $0x3c] sm:$0xf]
        %v2182 = vld [vmem:[%s2165 + $0x40] sm:$0xf]
        %v2183 = vld [vmem:[%s2165 + $0x44] sm:$0xf]
        %v2184 = vld [vmem:[%s2165 + $0x48] sm:$0xf]
        %v2185 = vld [vmem:[%s2165 + $0x4c] sm:$0xf]
        %v2186 = vld [vmem:[%s2165 + $0x50] sm:$0xf]
        %v2187 = vld [vmem:[%s2165 + $0x54] sm:$0xf]
        %v2188 = vld [vmem:[%s2165 + $0x58] sm:$0xf]
        %v2189 = vld [vmem:[%s2165 + $0x5c] sm:$0xf]
        %v2190 = vld [vmem:[%s2165 + $0x60] sm:$0xf]
        %v2191 = vld [vmem:[%s2165 + $0x64] sm:$0xf]
        %v2192 = vld [vmem:[%s2165 + $0x68] sm:$0xf]
        %v2193 = vld [vmem:[%s2165 + $0x6c] sm:$0xf]
        %v2194 = vld [vmem:[%s2165 + $0x70] sm:$0xf]
        %v2195 = vld [vmem:[%s2165 + $0x74] sm:$0xf]
        %v2196 = vld [vmem:[%s2165 + $0x78] sm:$0xf]
        %v2197 = vld [vmem:[%s2165 + $0x7c] sm:$0xf]
        %v2230 = vunpack.c.l.b16 %v2133
        %v2231 = vunpack.c.h.b16 %v2133
        %v2232 = vunpack.c.l.b16 %v2134
        %v2233 = vunpack.c.h.b16 %v2134
        %v2234 = vunpack.c.l.b16 %v2135
        %v2235 = vunpack.c.h.b16 %v2135
        %v2236 = vunpack.c.l.b16 %v2136
        %v2237 = vunpack.c.h.b16 %v2136
        %v2238 = vunpack.c.l.b16 %v2137
        %v2239 = vunpack.c.h.b16 %v2137
        %v2240 = vunpack.c.l.b16 %v2138
        %v2241 = vunpack.c.h.b16 %v2138
        %v2242 = vunpack.c.l.b16 %v2139
        %v2243 = vunpack.c.h.b16 %v2139
        %v2244 = vunpack.c.l.b16 %v2140
        %v2245 = vunpack.c.h.b16 %v2140
        %v2246 = vunpack.c.l.b16 %v2141
        %v2247 = vunpack.c.h.b16 %v2141
        %v2248 = vunpack.c.l.b16 %v2142
        %v2249 = vunpack.c.h.b16 %v2142
        %v2250 = vunpack.c.l.b16 %v2143
        %v2251 = vunpack.c.h.b16 %v2143
        %v2252 = vunpack.c.l.b16 %v2144
        %v2253 = vunpack.c.h.b16 %v2144
        %v2254 = vunpack.c.l.b16 %v2145
        %v2255 = vunpack.c.h.b16 %v2145
        %v2256 = vunpack.c.l.b16 %v2146
        %v2257 = vunpack.c.h.b16 %v2146
        %v2258 = vunpack.c.l.b16 %v2147
        %v2259 = vunpack.c.h.b16 %v2147
        %v2260 = vunpack.c.l.b16 %v2148
        %v2261 = vunpack.c.h.b16 %v2148
        %v2262 = vunpack.c.l.b16 %v2149
        %v2263 = vunpack.c.h.b16 %v2149
        %v2264 = vunpack.c.l.b16 %v2150
        %v2265 = vunpack.c.h.b16 %v2150
        %v2266 = vunpack.c.l.b16 %v2151
        %v2267 = vunpack.c.h.b16 %v2151
        %v2268 = vunpack.c.l.b16 %v2152
        %v2269 = vunpack.c.h.b16 %v2152
        %v2270 = vunpack.c.l.b16 %v2153
        %v2271 = vunpack.c.h.b16 %v2153
        %v2272 = vunpack.c.l.b16 %v2154
        %v2273 = vunpack.c.h.b16 %v2154
        %v2274 = vunpack.c.l.b16 %v2155
        %v2275 = vunpack.c.h.b16 %v2155
        %v2276 = vunpack.c.l.b16 %v2156
        %v2277 = vunpack.c.h.b16 %v2156
        %v2278 = vunpack.c.l.b16 %v2157
        %v2279 = vunpack.c.h.b16 %v2157
        %v2280 = vunpack.c.l.b16 %v2158
        %v2281 = vunpack.c.h.b16 %v2158
        %v2282 = vunpack.c.l.b16 %v2159
        %v2283 = vunpack.c.h.b16 %v2159
        %v2284 = vunpack.c.l.b16 %v2160
        %v2285 = vunpack.c.h.b16 %v2160
        %v2286 = vunpack.c.l.b16 %v2161
        %v2287 = vunpack.c.h.b16 %v2161
        %v2288 = vunpack.c.l.b16 %v2162
        %v2289 = vunpack.c.h.b16 %v2162
        %v2290 = vunpack.c.l.b16 %v2163
        %v2291 = vunpack.c.h.b16 %v2163
        %v2292 = vunpack.c.l.b16 %v2164
        %v2293 = vunpack.c.h.b16 %v2164
        %v2294 = vpack.c.b16 %v2232, %v2230
        %v2295 = vpack.c.b16 %v2233, %v2231
        %v2296 = vpack.c.b16 %v2236, %v2234
        %v2297 = vpack.c.b16 %v2237, %v2235
        %v2298 = vpack.c.b16 %v2240, %v2238
        %v2299 = vpack.c.b16 %v2241, %v2239
        %v2300 = vpack.c.b16 %v2244, %v2242
        %v2301 = vpack.c.b16 %v2245, %v2243
        %v2302 = vpack.c.b16 %v2248, %v2246
        %v2303 = vpack.c.b16 %v2249, %v2247
        %v2304 = vpack.c.b16 %v2252, %v2250
        %v2305 = vpack.c.b16 %v2253, %v2251
        %v2306 = vpack.c.b16 %v2256, %v2254
        %v2307 = vpack.c.b16 %v2257, %v2255
        %v2308 = vpack.c.b16 %v2260, %v2258
        %v2309 = vpack.c.b16 %v2261, %v2259
        %v2310 = vpack.c.b16 %v2264, %v2262
        %v2311 = vpack.c.b16 %v2265, %v2263
        %v2312 = vpack.c.b16 %v2268, %v2266
        %v2313 = vpack.c.b16 %v2269, %v2267
        %v2314 = vpack.c.b16 %v2272, %v2270
        %v2315 = vpack.c.b16 %v2273, %v2271
        %v2316 = vpack.c.b16 %v2276, %v2274
        %v2317 = vpack.c.b16 %v2277, %v2275
        %v2318 = vpack.c.b16 %v2280, %v2278
        %v2319 = vpack.c.b16 %v2281, %v2279
        %v2320 = vpack.c.b16 %v2284, %v2282
        %v2321 = vpack.c.b16 %v2285, %v2283
        %v2322 = vpack.c.b16 %v2288, %v2286
        %v2323 = vpack.c.b16 %v2289, %v2287
        %v2324 = vpack.c.b16 %v2292, %v2290
        %v2325 = vpack.c.b16 %v2293, %v2291
        %v2390 = vunpack.c.l.b16 %v2166
        %v2391 = vunpack.c.l.b16 %v2167
        %v2392 = vunpack.c.l.b16 %v2168
        %v2393 = vunpack.c.l.b16 %v2169
        %v2394 = vunpack.c.l.b16 %v2170
        %v2395 = vunpack.c.l.b16 %v2171
        %v2396 = vunpack.c.l.b16 %v2172
        %v2397 = vunpack.c.l.b16 %v2173
        %v2398 = vunpack.c.l.b16 %v2174
        %v2399 = vunpack.c.l.b16 %v2175
        %v2400 = vunpack.c.l.b16 %v2176
        %v2401 = vunpack.c.l.b16 %v2177
        %v2402 = vunpack.c.l.b16 %v2178
        %v2403 = vunpack.c.l.b16 %v2179
        %v2404 = vunpack.c.l.b16 %v2180
        %v2405 = vunpack.c.l.b16 %v2181
        %v2406 = vunpack.c.l.b16 %v2182
        %v2407 = vunpack.c.l.b16 %v2183
        %v2408 = vunpack.c.l.b16 %v2184
        %v2409 = vunpack.c.l.b16 %v2185
        %v2410 = vunpack.c.l.b16 %v2186
        %v2411 = vunpack.c.l.b16 %v2187
        %v2412 = vunpack.c.l.b16 %v2188
        %v2413 = vunpack.c.l.b16 %v2189
        %v2414 = vunpack.c.l.b16 %v2190
        %v2415 = vunpack.c.l.b16 %v2191
        %v2416 = vunpack.c.l.b16 %v2192
        %v2417 = vunpack.c.l.b16 %v2193
        %v2418 = vunpack.c.l.b16 %v2194
        %v2419 = vunpack.c.l.b16 %v2195
        %v2420 = vunpack.c.l.b16 %v2196
        %v2421 = vunpack.c.l.b16 %v2197
        %v2422 = vpack.c.b16 %v2391, %v2390
        %v2423 = vpack.c.b16 %v2393, %v2392
        %v2424 = vpack.c.b16 %v2395, %v2394
        %v2425 = vpack.c.b16 %v2397, %v2396
        %v2426 = vpack.c.b16 %v2399, %v2398
        %v2427 = vpack.c.b16 %v2401, %v2400
        %v2428 = vpack.c.b16 %v2403, %v2402
        %v2429 = vpack.c.b16 %v2405, %v2404
        %v2430 = vpack.c.b16 %v2407, %v2406
        %v2431 = vpack.c.b16 %v2409, %v2408
        %v2432 = vpack.c.b16 %v2411, %v2410
        %v2433 = vpack.c.b16 %v2413, %v2412
        %v2434 = vpack.c.b16 %v2415, %v2414
        %v2435 = vpack.c.b16 %v2417, %v2416
        %v2436 = vpack.c.b16 %v2419, %v2418
        %v2437 = vpack.c.b16 %v2421, %v2420
        %2454 = vmatprep.subr.bf16.mxu0 0
        %2455 = vmatpush1.bf16.msra.mxu0 %v2422
        %2456 = vmatprep.subr.bf16.mxu0 0
        %2457 = vmatpush1.bf16.msra.mxu0 %v2423
        %2458 = vmatprep.subr.bf16.mxu0 0
        %2459 = vmatpush1.bf16.msra.mxu0 %v2424
        %2460 = vmatprep.subr.bf16.mxu0 0
        %2461 = vmatpush1.bf16.msra.mxu0 %v2425
        %2462 = vmatprep.subr.bf16.mxu0 0
        %2463 = vmatpush1.bf16.msra.mxu0 %v2426
        %2464 = vmatprep.subr.bf16.mxu0 0
        %2465 = vmatpush1.bf16.msra.mxu0 %v2427
        %2466 = vmatprep.subr.bf16.mxu0 0
        %2467 = vmatpush1.bf16.msra.mxu0 %v2428
        %2468 = vmatprep.subr.bf16.mxu0 0
        %2469 = vmatpush1.bf16.msra.mxu0 %v2429
        %2470 = vmatprep.subr.bf16.mxu0 0
        %2471 = vmatpush1.bf16.msra.mxu0 %v2430
        %2472 = vmatprep.subr.bf16.mxu0 0
        %2473 = vmatpush1.bf16.msra.mxu0 %v2431
        %2474 = vmatprep.subr.bf16.mxu0 0
        %2475 = vmatpush1.bf16.msra.mxu0 %v2432
        %2476 = vmatprep.subr.bf16.mxu0 0
        %2477 = vmatpush1.bf16.msra.mxu0 %v2433
        %2478 = vmatprep.subr.bf16.mxu0 0
        %2479 = vmatpush1.bf16.msra.mxu0 %v2434
        %2480 = vmatprep.subr.bf16.mxu0 0
        %2481 = vmatpush1.bf16.msra.mxu0 %v2435
        %2482 = vmatprep.subr.bf16.mxu0 0
        %2483 = vmatpush1.bf16.msra.mxu0 %v2436
        %2484 = vmatprep.subr.bf16.mxu0 0
        %2485 = vmatpush1.bf16.msra.mxu0 %v2437
        %2486 = vmatprep.mubr.bf16.mxu0 %v2295
        %2487 = vmatmul.mubr.bf16.gmra.mrb[0].mxu0 %v2294
        %v2488 = vpop.f32.mrb[0].mxu0
        %v2489 = vadd.f32 0.0, %v2488
        %v2490 = vpop.f32.mrb[0].mxu0
        %v2491 = vpop.f32.mrb[0].mxu0
        %v2492 = vadd.f32 0.0, %v2491
        %v2493 = vpop.f32.mrb[0].mxu0
        %2494 = vmatprep.mubr.bf16.mxu0 %v2297
        %2495 = vmatmul.mubr.bf16.gmra.mrb[0].mxu0 %v2296
        %v2496 = vpop.f32.mrb[0].mxu0
        %v2497 = vadd.f32 0.0, %v2496
        %v2498 = vpop.f32.mrb[0].mxu0
        %v2499 = vpop.f32.mrb[0].mxu0
        %v2500 = vadd.f32 0.0, %v2499
        %v2501 = vpop.f32.mrb[0].mxu0
        %2502 = vmatprep.mubr.bf16.mxu0 %v2299
        %2503 = vmatmul.mubr.bf16.gmra.mrb[0].mxu0 %v2298
        %v2504 = vpop.f32.mrb[0].mxu0
        %v2505 = vadd.f32 0.0, %v2504
        %v2506 = vpop.f32.mrb[0].mxu0
        %v2507 = vpop.f32.mrb[0].mxu0
        %v2508 = vadd.f32 0.0, %v2507
        %v2509 = vpop.f32.mrb[0].mxu0
        %2510 = vmatprep.mubr.bf16.mxu0 %v2301
        %2511 = vmatmul.mubr.bf16.gmra.mrb[0].mxu0 %v2300
        %v2512 = vpop.f32.mrb[0].mxu0
        %v2513 = vadd.f32 0.0, %v2512
        %v2514 = vpop.f32.mrb[0].mxu0
        %v2515 = vpop.f32.mrb[0].mxu0
        %v2516 = vadd.f32 0.0, %v2515
        %v2517 = vpop.f32.mrb[0].mxu0
        %2518 = vmatprep.mubr.bf16.mxu0 %v2303
        %2519 = vmatmul.mubr.bf16.gmra.mrb[0].mxu0 %v2302
        %v2520 = vpop.f32.mrb[0].mxu0
        %v2521 = vadd.f32 0.0, %v2520
        %v2522 = vpop.f32.mrb[0].mxu0
        %v2523 = vpop.f32.mrb[0].mxu0
        %v2524 = vadd.f32 0.0, %v2523
        %v2525 = vpop.f32.mrb[0].mxu0
        %2526 = vmatprep.mubr.bf16.mxu0 %v2305
        %2527 = vmatmul.mubr.bf16.gmra.mrb[0].mxu0 %v2304
        %v2528 = vpop.f32.mrb[0].mxu0
        %v2529 = vadd.f32 0.0, %v2528
        %v2530 = vpop.f32.mrb[0].mxu0
        %v2531 = vpop.f32.mrb[0].mxu0
        %v2532 = vadd.f32 0.0, %v2531
        %v2533 = vpop.f32.mrb[0].mxu0
        %2534 = vmatprep.mubr.bf16.mxu0 %v2307
        %2535 = vmatmul.mubr.bf16.gmra.mrb[0].mxu0 %v2306
        %v2536 = vpop.f32.mrb[0].mxu0
        %v2537 = vadd.f32 0.0, %v2536
        %v2538 = vpop.f32.mrb[0].mxu0
        %v2539 = vpop.f32.mrb[0].mxu0
        %v2540 = vadd.f32 0.0, %v2539
        %v2541 = vpop.f32.mrb[0].mxu0
        %2542 = vmatprep.mubr.bf16.mxu0 %v2309
        %2543 = vmatmul.mubr.bf16.gmra.mrb[0].mxu0 %v2308
        %v2544 = vpop.f32.mrb[0].mxu0
        %v2545 = vadd.f32 0.0, %v2544
        %v2546 = vpop.f32.mrb[0].mxu0
        %v2547 = vpop.f32.mrb[0].mxu0
        %v2548 = vadd.f32 0.0, %v2547
        %v2549 = vpop.f32.mrb[0].mxu0
        %2550 = vmatprep.mubr.bf16.mxu0 %v2311
        %2551 = vmatmul.mubr.bf16.gmra.mrb[0].mxu0 %v2310
        %v2552 = vpop.f32.mrb[0].mxu0
        %v2553 = vadd.f32 0.0, %v2552
        %v2554 = vpop.f32.mrb[0].mxu0
        %v2555 = vpop.f32.mrb[0].mxu0
        %v2556 = vadd.f32 0.0, %v2555
        %v2557 = vpop.f32.mrb[0].mxu0
        %2558 = vmatprep.mubr.bf16.mxu0 %v2313
        %2559 = vmatmul.mubr.bf16.gmra.mrb[0].mxu0 %v2312
        %v2560 = vpop.f32.mrb[0].mxu0
        %v2561 = vadd.f32 0.0, %v2560
        %v2562 = vpop.f32.mrb[0].mxu0
        %v2563 = vpop.f32.mrb[0].mxu0
        %v2564 = vadd.f32 0.0, %v2563
        %v2565 = vpop.f32.mrb[0].mxu0
        %2566 = vmatprep.mubr.bf16.mxu0 %v2315
        %2567 = vmatmul.mubr.bf16.gmra.mrb[0].mxu0 %v2314
        %v2568 = vpop.f32.mrb[0].mxu0
        %v2569 = vadd.f32 0.0, %v2568
        %v2570 = vpop.f32.mrb[0].mxu0
        %v2571 = vpop.f32.mrb[0].mxu0
        %v2572 = vadd.f32 0.0, %v2571
        %v2573 = vpop.f32.mrb[0].mxu0
        %2574 = vmatprep.mubr.bf16.mxu0 %v2317
        %2575 = vmatmul.mubr.bf16.gmra.mrb[0].mxu0 %v2316
        %v2576 = vpop.f32.mrb[0].mxu0
        %v2577 = vadd.f32 0.0, %v2576
        %v2578 = vpop.f32.mrb[0].mxu0
        %v2579 = vpop.f32.mrb[0].mxu0
        %v2580 = vadd.f32 0.0, %v2579
        %v2581 = vpop.f32.mrb[0].mxu0
        %2582 = vmatprep.mubr.bf16.mxu0 %v2319
        %2583 = vmatmul.mubr.bf16.gmra.mrb[0].mxu0 %v2318
        %v2584 = vpop.f32.mrb[0].mxu0
        %v2585 = vadd.f32 0.0, %v2584
        %v2586 = vpop.f32.mrb[0].mxu0
        %v2587 = vpop.f32.mrb[0].mxu0
        %v2588 = vadd.f32 0.0, %v2587
        %v2589 = vpop.f32.mrb[0].mxu0
        %2590 = vmatprep.mubr.bf16.mxu0 %v2321
        %2591 = vmatmul.mubr.bf16.gmra.mrb[0].mxu0 %v2320
        %v2592 = vpop.f32.mrb[0].mxu0
        %v2593 = vadd.f32 0.0, %v2592
        %v2594 = vpop.f32.mrb[0].mxu0
        %v2595 = vpop.f32.mrb[0].mxu0
        %v2596 = vadd.f32 0.0, %v2595
        %v2597 = vpop.f32.mrb[0].mxu0
        %2598 = vmatprep.mubr.bf16.mxu0 %v2323
        %2599 = vmatmul.mubr.bf16.gmra.mrb[0].mxu0 %v2322
        %v2600 = vpop.f32.mrb[0].mxu0
        %v2601 = vadd.f32 0.0, %v2600
        %v2602 = vpop.f32.mrb[0].mxu0
        %v2603 = vpop.f32.mrb[0].mxu0
        %v2604 = vadd.f32 0.0, %v2603
        %v2605 = vpop.f32.mrb[0].mxu0
        %2606 = vmatprep.mubr.bf16.mxu0 %v2325
        %2607 = vmatmul.mubr.bf16.gmra.mrb[0].mxu0 %v2324
        %v2608 = vpop.f32.mrb[0].mxu0
        %v2609 = vadd.f32 0.0, %v2608
        %v2610 = vpop.f32.mrb[0].mxu0
        %v2611 = vpop.f32.mrb[0].mxu0
        %v2612 = vadd.f32 0.0, %v2611
        %v2613 = vpop.f32.mrb[0].mxu0
        %2614 = vdwg.mxu0
        %v2615 = vmax.f32 %v2489, 0.0
        %v2616 = vmax.f32 %v2492, 0.0
        %v2617 = vmax.f32 %v2497, 0.0
        %v2618 = vmax.f32 %v2500, 0.0
        %v2619 = vmax.f32 %v2505, 0.0
        %v2620 = vmax.f32 %v2508, 0.0
        %v2621 = vmax.f32 %v2513, 0.0
        %v2622 = vmax.f32 %v2516, 0.0
        %v2623 = vmax.f32 %v2521, 0.0
        %v2624 = vmax.f32 %v2524, 0.0
        %v2625 = vmax.f32 %v2529, 0.0
        %v2626 = vmax.f32 %v2532, 0.0
        %v2627 = vmax.f32 %v2537, 0.0
        %v2628 = vmax.f32 %v2540, 0.0
        %v2629 = vmax.f32 %v2545, 0.0
        %v2630 = vmax.f32 %v2548, 0.0
        %v2631 = vmax.f32 %v2553, 0.0
        %v2632 = vmax.f32 %v2556, 0.0
        %v2633 = vmax.f32 %v2561, 0.0
        %v2634 = vmax.f32 %v2564, 0.0
        %v2635 = vmax.f32 %v2569, 0.0
        %v2636 = vmax.f32 %v2572, 0.0
        %v2637 = vmax.f32 %v2577, 0.0
        %v2638 = vmax.f32 %v2580, 0.0
        %v2639 = vmax.f32 %v2585, 0.0
        %v2640 = vmax.f32 %v2588, 0.0
        %v2641 = vmax.f32 %v2593, 0.0
        %v2642 = vmax.f32 %v2596, 0.0
        %v2643 = vmax.f32 %v2601, 0.0
        %v2644 = vmax.f32 %v2604, 0.0
        %v2645 = vmax.f32 %v2609, 0.0
        %v2646 = vmax.f32 %v2612, 0.0
        %v2647 = vpack.c.bf16 %v2616, %v2615
        %v2648 = vpack.c.bf16 %v2618, %v2617
        %v2649 = vpack.c.bf16 %v2620, %v2619
        %v2650 = vpack.c.bf16 %v2622, %v2621
        %v2651 = vpack.c.bf16 %v2624, %v2623
        %v2652 = vpack.c.bf16 %v2626, %v2625
        %v2653 = vpack.c.bf16 %v2628, %v2627
        %v2654 = vpack.c.bf16 %v2630, %v2629
        %v2655 = vpack.c.bf16 %v2632, %v2631
        %v2656 = vpack.c.bf16 %v2634, %v2633
        %v2657 = vpack.c.bf16 %v2636, %v2635
        %v2658 = vpack.c.bf16 %v2638, %v2637
        %v2659 = vpack.c.bf16 %v2640, %v2639
        %v2660 = vpack.c.bf16 %v2642, %v2641
        %v2661 = vpack.c.bf16 %v2644, %v2643
        %v2662 = vpack.c.bf16 %v2646, %v2645
        %2663 = vst [vmem:[#allocation2 + $0x18] sm:$0xff] %v2647
        %2664 = vst [vmem:[#allocation2 + $0x38] sm:$0xff] %v2648
        %2665 = vst [vmem:[#allocation2 + $0x58] sm:$0xff] %v2649
        %2666 = vst [vmem:[#allocation2 + $0x78] sm:$0xff] %v2650
        %2667 = vst [vmem:[#allocation2 + $0x98] sm:$0xff] %v2651
        %2668 = vst [vmem:[#allocation2 + $0xb8] sm:$0xff] %v2652
        %2669 = vst [vmem:[#allocation2 + $0xd8] sm:$0xff] %v2653
        %2670 = vst [vmem:[#allocation2 + $0xf8] sm:$0xff] %v2654
        %2671 = vst [vmem:[#allocation2 + $0x118] sm:$0xff] %v2655
        %2672 = vst [vmem:[#allocation2 + $0x138] sm:$0xff] %v2656
        %2673 = vst [vmem:[#allocation2 + $0x158] sm:$0xff] %v2657
        %2674 = vst [vmem:[#allocation2 + $0x178] sm:$0xff] %v2658
        %2675 = vst [vmem:[#allocation2 + $0x198] sm:$0xff] %v2659
        %2676 = vst [vmem:[#allocation2 + $0x1b8] sm:$0xff] %v2660
        %2677 = vst [vmem:[#allocation2 + $0x1d8] sm:$0xff] %v2661
        %2678 = vst [vmem:[#allocation2 + $0x1f8] sm:$0xff] %v2662
        %v2679 = vld [vmem:[#allocation2] sm:$0xff]
        %v2680 = vld [vmem:[#allocation2 + $0x8] sm:$0xff]
        %v2681 = vld [vmem:[#allocation2 + $0x10] sm:$0xff]
        %v2682 = vld [vmem:[#allocation2 + $0x18] sm:$0xff]
        %v2683 = vld [vmem:[#allocation2 + $0x20] sm:$0xff]
        %v2684 = vld [vmem:[#allocation2 + $0x28] sm:$0xff]
        %v2685 = vld [vmem:[#allocation2 + $0x30] sm:$0xff]
        %v2686 = vld [vmem:[#allocation2 + $0x38] sm:$0xff]
        %v2687 = vld [vmem:[#allocation2 + $0x40] sm:$0xff]
        %v2688 = vld [vmem:[#allocation2 + $0x48] sm:$0xff]
        %v2689 = vld [vmem:[#allocation2 + $0x50] sm:$0xff]
        %v2690 = vld [vmem:[#allocation2 + $0x58] sm:$0xff]
        %v2691 = vld [vmem:[#allocation2 + $0x60] sm:$0xff]
        %v2692 = vld [vmem:[#allocation2 + $0x68] sm:$0xff]
        %v2693 = vld [vmem:[#allocation2 + $0x70] sm:$0xff]
        %v2694 = vld [vmem:[#allocation2 + $0x78] sm:$0xff]
        %v2695 = vld [vmem:[#allocation2 + $0x80] sm:$0xff]
        %v2696 = vld [vmem:[#allocation2 + $0x88] sm:$0xff]
        %v2697 = vld [vmem:[#allocation2 + $0x90] sm:$0xff]
        %v2698 = vld [vmem:[#allocation2 + $0x98] sm:$0xff]
        %v2699 = vld [vmem:[#allocation2 + $0xa0] sm:$0xff]
        %v2700 = vld [vmem:[#allocation2 + $0xa8] sm:$0xff]
        %v2701 = vld [vmem:[#allocation2 + $0xb0] sm:$0xff]
        %v2702 = vld [vmem:[#allocation2 + $0xb8] sm:$0xff]
        %v2703 = vld [vmem:[#allocation2 + $0xc0] sm:$0xff]
        %v2704 = vld [vmem:[#allocation2 + $0xc8] sm:$0xff]
        %v2705 = vld [vmem:[#allocation2 + $0xd0] sm:$0xff]
        %v2706 = vld [vmem:[#allocation2 + $0xd8] sm:$0xff]
        %v2707 = vld [vmem:[#allocation2 + $0xe0] sm:$0xff]
        %v2708 = vld [vmem:[#allocation2 + $0xe8] sm:$0xff]
        %v2709 = vld [vmem:[#allocation2 + $0xf0] sm:$0xff]
        %v2710 = vld [vmem:[#allocation2 + $0xf8] sm:$0xff]
        %v2711 = vld [vmem:[#allocation2 + $0x100] sm:$0xff]
        %v2712 = vld [vmem:[#allocation2 + $0x108] sm:$0xff]
        %v2713 = vld [vmem:[#allocation2 + $0x110] sm:$0xff]
        %v2714 = vld [vmem:[#allocation2 + $0x118] sm:$0xff]
        %v2715 = vld [vmem:[#allocation2 + $0x120] sm:$0xff]
        %v2716 = vld [vmem:[#allocation2 + $0x128] sm:$0xff]
        %v2717 = vld [vmem:[#allocation2 + $0x130] sm:$0xff]
        %v2718 = vld [vmem:[#allocation2 + $0x138] sm:$0xff]
        %v2719 = vld [vmem:[#allocation2 + $0x140] sm:$0xff]
        %v2720 = vld [vmem:[#allocation2 + $0x148] sm:$0xff]
        %v2721 = vld [vmem:[#allocation2 + $0x150] sm:$0xff]
        %v2722 = vld [vmem:[#allocation2 + $0x158] sm:$0xff]
        %v2723 = vld [vmem:[#allocation2 + $0x160] sm:$0xff]
        %v2724 = vld [vmem:[#allocation2 + $0x168] sm:$0xff]
        %v2725 = vld [vmem:[#allocation2 + $0x170] sm:$0xff]
        %v2726 = vld [vmem:[#allocation2 + $0x178] sm:$0xff]
        %v2727 = vld [vmem:[#allocation2 + $0x180] sm:$0xff]
        %v2728 = vld [vmem:[#allocation2 + $0x188] sm:$0xff]
        %v2729 = vld [vmem:[#allocation2 + $0x190] sm:$0xff]
        %v2730 = vld [vmem:[#allocation2 + $0x198] sm:$0xff]
        %v2731 = vld [vmem:[#allocation2 + $0x1a0] sm:$0xff]
        %v2732 = vld [vmem:[#allocation2 + $0x1a8] sm:$0xff]
        %v2733 = vld [vmem:[#allocation2 + $0x1b0] sm:$0xff]
        %v2734 = vld [vmem:[#allocation2 + $0x1b8] sm:$0xff]
        %v2735 = vld [vmem:[#allocation2 + $0x1c0] sm:$0xff]
        %v2736 = vld [vmem:[#allocation2 + $0x1c8] sm:$0xff]
        %v2737 = vld [vmem:[#allocation2 + $0x1d0] sm:$0xff]
        %v2738 = vld [vmem:[#allocation2 + $0x1d8] sm:$0xff]
        %v2739 = vld [vmem:[#allocation2 + $0x1e0] sm:$0xff]
        %v2740 = vld [vmem:[#allocation2 + $0x1e8] sm:$0xff]
        %v2741 = vld [vmem:[#allocation2 + $0x1f0] sm:$0xff]
        %v2742 = vld [vmem:[#allocation2 + $0x1f8] sm:$0xff]
        %v2743 = vld [vmem:[#allocation14] sm:$0xff]
        %v2744 = vld [vmem:[#allocation14 + $0x8] sm:$0xff]
        %v2745 = vld [vmem:[#allocation14 + $0x10] sm:$0xff]
        %v2746 = vld [vmem:[#allocation14 + $0x18] sm:$0xff]
        %v2747 = vld [vmem:[#allocation14 + $0x20] sm:$0xff]
        %v2748 = vld [vmem:[#allocation14 + $0x28] sm:$0xff]
        %v2749 = vld [vmem:[#allocation14 + $0x30] sm:$0xff]
        %v2750 = vld [vmem:[#allocation14 + $0x38] sm:$0xff]
        %v2751 = vld [vmem:[#allocation14 + $0x40] sm:$0xff]
        %v2752 = vld [vmem:[#allocation14 + $0x48] sm:$0xff]
        %v2753 = vld [vmem:[#allocation14 + $0x50] sm:$0xff]
        %v2754 = vld [vmem:[#allocation14 + $0x58] sm:$0xff]
        %v2755 = vld [vmem:[#allocation14 + $0x60] sm:$0xff]
        %v2756 = vld [vmem:[#allocation14 + $0x68] sm:$0xff]
        %v2757 = vld [vmem:[#allocation14 + $0x70] sm:$0xff]
        %v2758 = vld [vmem:[#allocation14 + $0x78] sm:$0xff]
        %v2759 = vld [vmem:[#allocation14 + $0x80] sm:$0xff]
        %v2760 = vld [vmem:[#allocation14 + $0x88] sm:$0xff]
        %v2761 = vld [vmem:[#allocation14 + $0x90] sm:$0xff]
        %v2762 = vld [vmem:[#allocation14 + $0x98] sm:$0xff]
        %v2763 = vld [vmem:[#allocation14 + $0xa0] sm:$0xff]
        %v2764 = vld [vmem:[#allocation14 + $0xa8] sm:$0xff]
        %v2765 = vld [vmem:[#allocation14 + $0xb0] sm:$0xff]
        %v2766 = vld [vmem:[#allocation14 + $0xb8] sm:$0xff]
        %v2767 = vld [vmem:[#allocation14 + $0xc0] sm:$0xff]
        %v2768 = vld [vmem:[#allocation14 + $0xc8] sm:$0xff]
        %v2769 = vld [vmem:[#allocation14 + $0xd0] sm:$0xff]
        %v2770 = vld [vmem:[#allocation14 + $0xd8] sm:$0xff]
        %v2771 = vld [vmem:[#allocation14 + $0xe0] sm:$0xff]
        %v2772 = vld [vmem:[#allocation14 + $0xe8] sm:$0xff]
        %v2773 = vld [vmem:[#allocation14 + $0xf0] sm:$0xff]
        %v2774 = vld [vmem:[#allocation14 + $0xf8] sm:$0xff]
        %v2775 = vld [vmem:[#allocation14 + $0x100] sm:$0xff]
        %v2776 = vld [vmem:[#allocation14 + $0x108] sm:$0xff]
        %v2777 = vld [vmem:[#allocation14 + $0x110] sm:$0xff]
        %v2778 = vld [vmem:[#allocation14 + $0x118] sm:$0xff]
        %v2779 = vld [vmem:[#allocation14 + $0x120] sm:$0xff]
        %v2780 = vld [vmem:[#allocation14 + $0x128] sm:$0xff]
        %v2781 = vld [vmem:[#allocation14 + $0x130] sm:$0xff]
        %v2782 = vld [vmem:[#allocation14 + $0x138] sm:$0xff]
        %v2783 = vld [vmem:[#allocation14 + $0x140] sm:$0xff]
        %v2784 = vld [vmem:[#allocation14 + $0x148] sm:$0xff]
        %v2785 = vld [vmem:[#allocation14 + $0x150] sm:$0xff]
        %v2786 = vld [vmem:[#allocation14 + $0x158] sm:$0xff]
        %v2787 = vld [vmem:[#allocation14 + $0x160] sm:$0xff]
        %v2788 = vld [vmem:[#allocation14 + $0x168] sm:$0xff]
        %v2789 = vld [vmem:[#allocation14 + $0x170] sm:$0xff]
        %v2790 = vld [vmem:[#allocation14 + $0x178] sm:$0xff]
        %v2791 = vld [vmem:[#allocation14 + $0x180] sm:$0xff]
        %v2792 = vld [vmem:[#allocation14 + $0x188] sm:$0xff]
        %v2793 = vld [vmem:[#allocation14 + $0x190] sm:$0xff]
        %v2794 = vld [vmem:[#allocation14 + $0x198] sm:$0xff]
        %v2795 = vld [vmem:[#allocation14 + $0x1a0] sm:$0xff]
        %v2796 = vld [vmem:[#allocation14 + $0x1a8] sm:$0xff]
        %v2797 = vld [vmem:[#allocation14 + $0x1b0] sm:$0xff]
        %v2798 = vld [vmem:[#allocation14 + $0x1b8] sm:$0xff]
        %v2799 = vld [vmem:[#allocation14 + $0x1c0] sm:$0xff]
        %v2800 = vld [vmem:[#allocation14 + $0x1c8] sm:$0xff]
        %v2801 = vld [vmem:[#allocation14 + $0x1d0] sm:$0xff]
        %v2802 = vld [vmem:[#allocation14 + $0x1d8] sm:$0xff]
        %v2803 = vld [vmem:[#allocation14 + $0x1e0] sm:$0xff]
        %v2804 = vld [vmem:[#allocation14 + $0x1e8] sm:$0xff]
        %v2805 = vld [vmem:[#allocation14 + $0x1f0] sm:$0xff]
        %v2806 = vld [vmem:[#allocation14 + $0x1f8] sm:$0xff]
        %v2871 = vunpack.c.l.b16 %v2743
        %v2872 = vunpack.c.h.b16 %v2743
        %v2873 = vunpack.c.l.b16 %v2744
        %v2874 = vunpack.c.h.b16 %v2744
        %v2875 = vunpack.c.l.b16 %v2745
        %v2876 = vunpack.c.h.b16 %v2745
        %v2877 = vunpack.c.l.b16 %v2746
        %v2878 = vunpack.c.h.b16 %v2746
        %v2879 = vunpack.c.l.b16 %v2747
        %v2880 = vunpack.c.h.b16 %v2747
        %v2881 = vunpack.c.l.b16 %v2748
        %v2882 = vunpack.c.h.b16 %v2748
        %v2883 = vunpack.c.l.b16 %v2749
        %v2884 = vunpack.c.h.b16 %v2749
        %v2885 = vunpack.c.l.b16 %v2750
        %v2886 = vunpack.c.h.b16 %v2750
        %v2887 = vunpack.c.l.b16 %v2751
        %v2888 = vunpack.c.h.b16 %v2751
        %v2889 = vunpack.c.l.b16 %v2752
        %v2890 = vunpack.c.h.b16 %v2752
        %v2891 = vunpack.c.l.b16 %v2753
        %v2892 = vunpack.c.h.b16 %v2753
        %v2893 = vunpack.c.l.b16 %v2754
        %v2894 = vunpack.c.h.b16 %v2754
        %v2895 = vunpack.c.l.b16 %v2755
        %v2896 = vunpack.c.h.b16 %v2755
        %v2897 = vunpack.c.l.b16 %v2756
        %v2898 = vunpack.c.h.b16 %v2756
        %v2899 = vunpack.c.l.b16 %v2757
        %v2900 = vunpack.c.h.b16 %v2757
        %v2901 = vunpack.c.l.b16 %v2758
        %v2902 = vunpack.c.h.b16 %v2758
        %v2903 = vunpack.c.l.b16 %v2759
        %v2904 = vunpack.c.h.b16 %v2759
        %v2905 = vunpack.c.l.b16 %v2760
        %v2906 = vunpack.c.h.b16 %v2760
        %v2907 = vunpack.c.l.b16 %v2761
        %v2908 = vunpack.c.h.b16 %v2761
        %v2909 = vunpack.c.l.b16 %v2762
        %v2910 = vunpack.c.h.b16 %v2762
        %v2911 = vunpack.c.l.b16 %v2763
        %v2912 = vunpack.c.h.b16 %v2763
        %v2913 = vunpack.c.l.b16 %v2764
        %v2914 = vunpack.c.h.b16 %v2764
        %v2915 = vunpack.c.l.b16 %v2765
        %v2916 = vunpack.c.h.b16 %v2765
        %v2917 = vunpack.c.l.b16 %v2766
        %v2918 = vunpack.c.h.b16 %v2766
        %v2919 = vunpack.c.l.b16 %v2767
        %v2920 = vunpack.c.h.b16 %v2767
        %v2921 = vunpack.c.l.b16 %v2768
        %v2922 = vunpack.c.h.b16 %v2768
        %v2923 = vunpack.c.l.b16 %v2769
        %v2924 = vunpack.c.h.b16 %v2769
        %v2925 = vunpack.c.l.b16 %v2770
        %v2926 = vunpack.c.h.b16 %v2770
        %v2927 = vunpack.c.l.b16 %v2771
        %v2928 = vunpack.c.h.b16 %v2771
        %v2929 = vunpack.c.l.b16 %v2772
        %v2930 = vunpack.c.h.b16 %v2772
        %v2931 = vunpack.c.l.b16 %v2773
        %v2932 = vunpack.c.h.b16 %v2773
        %v2933 = vunpack.c.l.b16 %v2774
        %v2934 = vunpack.c.h.b16 %v2774
        %v2935 = vunpack.c.l.b16 %v2775
        %v2936 = vunpack.c.h.b16 %v2775
        %v2937 = vunpack.c.l.b16 %v2776
        %v2938 = vunpack.c.h.b16 %v2776
        %v2939 = vunpack.c.l.b16 %v2777
        %v2940 = vunpack.c.h.b16 %v2777
        %v2941 = vunpack.c.l.b16 %v2778
        %v2942 = vunpack.c.h.b16 %v2778
        %v2943 = vunpack.c.l.b16 %v2779
        %v2944 = vunpack.c.h.b16 %v2779
        %v2945 = vunpack.c.l.b16 %v2780
        %v2946 = vunpack.c.h.b16 %v2780
        %v2947 = vunpack.c.l.b16 %v2781
        %v2948 = vunpack.c.h.b16 %v2781
        %v2949 = vunpack.c.l.b16 %v2782
        %v2950 = vunpack.c.h.b16 %v2782
        %v2951 = vunpack.c.l.b16 %v2783
        %v2952 = vunpack.c.h.b16 %v2783
        %v2953 = vunpack.c.l.b16 %v2784
        %v2954 = vunpack.c.h.b16 %v2784
        %v2955 = vunpack.c.l.b16 %v2785
        %v2956 = vunpack.c.h.b16 %v2785
        %v2957 = vunpack.c.l.b16 %v2786
        %v2958 = vunpack.c.h.b16 %v2786
        %v2959 = vunpack.c.l.b16 %v2787
        %v2960 = vunpack.c.h.b16 %v2787
        %v2961 = vunpack.c.l.b16 %v2788
        %v2962 = vunpack.c.h.b16 %v2788
        %v2963 = vunpack.c.l.b16 %v2789
        %v2964 = vunpack.c.h.b16 %v2789
        %v2965 = vunpack.c.l.b16 %v2790
        %v2966 = vunpack.c.h.b16 %v2790
        %v2967 = vunpack.c.l.b16 %v2791
        %v2968 = vunpack.c.h.b16 %v2791
        %v2969 = vunpack.c.l.b16 %v2792
        %v2970 = vunpack.c.h.b16 %v2792
        %v2971 = vunpack.c.l.b16 %v2793
        %v2972 = vunpack.c.h.b16 %v2793
        %v2973 = vunpack.c.l.b16 %v2794
        %v2974 = vunpack.c.h.b16 %v2794
        %v2975 = vunpack.c.l.b16 %v2795
        %v2976 = vunpack.c.h.b16 %v2795
        %v2977 = vunpack.c.l.b16 %v2796
        %v2978 = vunpack.c.h.b16 %v2796
        %v2979 = vunpack.c.l.b16 %v2797
        %v2980 = vunpack.c.h.b16 %v2797
        %v2981 = vunpack.c.l.b16 %v2798
        %v2982 = vunpack.c.h.b16 %v2798
        %v2983 = vunpack.c.l.b16 %v2799
        %v2984 = vunpack.c.h.b16 %v2799
        %v2985 = vunpack.c.l.b16 %v2800
        %v2986 = vunpack.c.h.b16 %v2800
        %v2987 = vunpack.c.l.b16 %v2801
        %v2988 = vunpack.c.h.b16 %v2801
        %v2989 = vunpack.c.l.b16 %v2802
        %v2990 = vunpack.c.h.b16 %v2802
        %v2991 = vunpack.c.l.b16 %v2803
        %v2992 = vunpack.c.h.b16 %v2803
        %v2993 = vunpack.c.l.b16 %v2804
        %v2994 = vunpack.c.h.b16 %v2804
        %v2995 = vunpack.c.l.b16 %v2805
        %v2996 = vunpack.c.h.b16 %v2805
        %v2997 = vunpack.c.l.b16 %v2806
        %v2998 = vunpack.c.h.b16 %v2806
        %v2999 = vpack.c.b16 %v2873, %v2871
        %v3000 = vpack.c.b16 %v2874, %v2872
        %v3001 = vpack.c.b16 %v2877, %v2875
        %v3002 = vpack.c.b16 %v2878, %v2876
        %v3003 = vpack.c.b16 %v2881, %v2879
        %v3004 = vpack.c.b16 %v2882, %v2880
        %v3005 = vpack.c.b16 %v2885, %v2883
        %v3006 = vpack.c.b16 %v2886, %v2884
        %v3007 = vpack.c.b16 %v2889, %v2887
        %v3008 = vpack.c.b16 %v2890, %v2888
        %v3009 = vpack.c.b16 %v2893, %v2891
        %v3010 = vpack.c.b16 %v2894, %v2892
        %v3011 = vpack.c.b16 %v2897, %v2895
        %v3012 = vpack.c.b16 %v2898, %v2896
        %v3013 = vpack.c.b16 %v2901, %v2899
        %v3014 = vpack.c.b16 %v2902, %v2900
        %v3015 = vpack.c.b16 %v2905, %v2903
        %v3016 = vpack.c.b16 %v2906, %v2904
        %v3017 = vpack.c.b16 %v2909, %v2907
        %v3018 = vpack.c.b16 %v2910, %v2908
        %v3019 = vpack.c.b16 %v2913, %v2911
        %v3020 = vpack.c.b16 %v2914, %v2912
        %v3021 = vpack.c.b16 %v2917, %v2915
        %v3022 = vpack.c.b16 %v2918, %v2916
        %v3023 = vpack.c.b16 %v2921, %v2919
        %v3024 = vpack.c.b16 %v2922, %v2920
        %v3025 = vpack.c.b16 %v2925, %v2923
        %v3026 = vpack.c.b16 %v2926, %v2924
        %v3027 = vpack.c.b16 %v2929, %v2927
        %v3028 = vpack.c.b16 %v2930, %v2928
        %v3029 = vpack.c.b16 %v2933, %v2931
        %v3030 = vpack.c.b16 %v2934, %v2932
        %v3031 = vpack.c.b16 %v2937, %v2935
        %v3032 = vpack.c.b16 %v2938, %v2936
        %v3033 = vpack.c.b16 %v2941, %v2939
        %v3034 = vpack.c.b16 %v2942, %v2940
        %v3035 = vpack.c.b16 %v2945, %v2943
        %v3036 = vpack.c.b16 %v2946, %v2944
        %v3037 = vpack.c.b16 %v2949, %v2947
        %v3038 = vpack.c.b16 %v2950, %v2948
        %v3039 = vpack.c.b16 %v2953, %v2951
        %v3040 = vpack.c.b16 %v2954, %v2952
        %v3041 = vpack.c.b16 %v2957, %v2955
        %v3042 = vpack.c.b16 %v2958, %v2956
        %v3043 = vpack.c.b16 %v2961, %v2959
        %v3044 = vpack.c.b16 %v2962, %v2960
        %v3045 = vpack.c.b16 %v2965, %v2963
        %v3046 = vpack.c.b16 %v2966, %v2964
        %v3047 = vpack.c.b16 %v2969, %v2967
        %v3048 = vpack.c.b16 %v2970, %v2968
        %v3049 = vpack.c.b16 %v2973, %v2971
        %v3050 = vpack.c.b16 %v2974, %v2972
        %v3051 = vpack.c.b16 %v2977, %v2975
        %v3052 = vpack.c.b16 %v2978, %v2976
        %v3053 = vpack.c.b16 %v2981, %v2979
        %v3054 = vpack.c.b16 %v2982, %v2980
        %v3055 = vpack.c.b16 %v2985, %v2983
        %v3056 = vpack.c.b16 %v2986, %v2984
        %v3057 = vpack.c.b16 %v2989, %v2987
        %v3058 = vpack.c.b16 %v2990, %v2988
        %v3059 = vpack.c.b16 %v2993, %v2991
        %v3060 = vpack.c.b16 %v2994, %v2992
        %v3061 = vpack.c.b16 %v2997, %v2995
        %v3062 = vpack.c.b16 %v2998, %v2996
        %3127 = vmatprep.subr.bf16.mxu0 %v3000
        %3128 = vmatpush1.bf16.msra.mxu0 %v2999
        %3129 = vmatprep.subr.bf16.mxu0 %v3002
        %3130 = vmatpush1.bf16.msra.mxu0 %v3001
        %3131 = vmatprep.subr.bf16.mxu0 %v3004
        %3132 = vmatpush1.bf16.msra.mxu0 %v3003
        %3133 = vmatprep.subr.bf16.mxu0 %v3006
        %3134 = vmatpush1.bf16.msra.mxu0 %v3005
        %3135 = vmatprep.subr.bf16.mxu0 %v3008
        %3136 = vmatpush1.bf16.msra.mxu0 %v3007
        %3137 = vmatprep.subr.bf16.mxu0 %v3010
        %3138 = vmatpush1.bf16.msra.mxu0 %v3009
        %3139 = vmatprep.subr.bf16.mxu0 %v3012
        %3140 = vmatpush1.bf16.msra.mxu0 %v3011
        %3141 = vmatprep.subr.bf16.mxu0 %v3014
        %3142 = vmatpush1.bf16.msra.mxu0 %v3013
        %3143 = vmatprep.subr.bf16.mxu0 %v3016
        %3144 = vmatpush1.bf16.msra.mxu0 %v3015
        %3145 = vmatprep.subr.bf16.mxu0 %v3018
        %3146 = vmatpush1.bf16.msra.mxu0 %v3017
        %3147 = vmatprep.subr.bf16.mxu0 %v3020
        %3148 = vmatpush1.bf16.msra.mxu0 %v3019
        %3149 = vmatprep.subr.bf16.mxu0 %v3022
        %3150 = vmatpush1.bf16.msra.mxu0 %v3021
        %3151 = vmatprep.subr.bf16.mxu0 %v3024
        %3152 = vmatpush1.bf16.msra.mxu0 %v3023
        %3153 = vmatprep.subr.bf16.mxu0 %v3026
        %3154 = vmatpush1.bf16.msra.mxu0 %v3025
        %3155 = vmatprep.subr.bf16.mxu0 %v3028
        %3156 = vmatpush1.bf16.msra.mxu0 %v3027
        %3157 = vmatprep.subr.bf16.mxu0 %v3030
        %3158 = vmatpush1.bf16.msra.mxu0 %v3029
        %3159 = vmatprep.mubr.bf16.mxu0 %v2680
        %3160 = vmatmul.mubr.bf16.gmra.mrb[0].mxu0 %v2679
        %v3161 = vpop.f32.mrb[0].mxu0
        %v3162 = vadd.f32 0.0, %v3161
        %v3163 = vpop.f32.mrb[0].mxu0
        %v3164 = vadd.f32 0.0, %v3163
        %v3165 = vpop.f32.mrb[0].mxu0
        %v3166 = vadd.f32 0.0, %v3165
        %v3167 = vpop.f32.mrb[0].mxu0
        %v3168 = vadd.f32 0.0, %v3167
        %3169 = vmatprep.mubr.bf16.mxu0 %v2684
        %3170 = vmatmul.mubr.bf16.gmra.mrb[0].mxu0 %v2683
        %v3171 = vpop.f32.mrb[0].mxu0
        %v3172 = vadd.f32 0.0, %v3171
        %v3173 = vpop.f32.mrb[0].mxu0
        %v3174 = vadd.f32 0.0, %v3173
        %v3175 = vpop.f32.mrb[0].mxu0
        %v3176 = vadd.f32 0.0, %v3175
        %v3177 = vpop.f32.mrb[0].mxu0
        %v3178 = vadd.f32 0.0, %v3177
        %3179 = vmatprep.mubr.bf16.mxu0 %v2688
        %3180 = vmatmul.mubr.bf16.gmra.mrb[0].mxu0 %v2687
        %v3181 = vpop.f32.mrb[0].mxu0
        %v3182 = vadd.f32 0.0, %v3181
        %v3183 = vpop.f32.mrb[0].mxu0
        %v3184 = vadd.f32 0.0, %v3183
        %v3185 = vpop.f32.mrb[0].mxu0
        %v3186 = vadd.f32 0.0, %v3185
        %v3187 = vpop.f32.mrb[0].mxu0
        %v3188 = vadd.f32 0.0, %v3187
        %3189 = vmatprep.mubr.bf16.mxu0 %v2692
        %3190 = vmatmul.mubr.bf16.gmra.mrb[0].mxu0 %v2691
        %v3191 = vpop.f32.mrb[0].mxu0
        %v3192 = vadd.f32 0.0, %v3191
        %v3193 = vpop.f32.mrb[0].mxu0
        %v3194 = vadd.f32 0.0, %v3193
        %v3195 = vpop.f32.mrb[0].mxu0
        %v3196 = vadd.f32 0.0, %v3195
        %v3197 = vpop.f32.mrb[0].mxu0
        %v3198 = vadd.f32 0.0, %v3197
        %3199 = vmatprep.mubr.bf16.mxu0 %v2696
        %3200 = vmatmul.mubr.bf16.gmra.mrb[0].mxu0 %v2695
        %v3201 = vpop.f32.mrb[0].mxu0
        %v3202 = vadd.f32 0.0, %v3201
        %v3203 = vpop.f32.mrb[0].mxu0
        %v3204 = vadd.f32 0.0, %v3203
        %v3205 = vpop.f32.mrb[0].mxu0
        %v3206 = vadd.f32 0.0, %v3205
        %v3207 = vpop.f32.mrb[0].mxu0
        %v3208 = vadd.f32 0.0, %v3207
        %3209 = vmatprep.mubr.bf16.mxu0 %v2700
        %3210 = vmatmul.mubr.bf16.gmra.mrb[0].mxu0 %v2699
        %v3211 = vpop.f32.mrb[0].mxu0
        %v3212 = vadd.f32 0.0, %v3211
        %v3213 = vpop.f32.mrb[0].mxu0
        %v3214 = vadd.f32 0.0, %v3213
        %v3215 = vpop.f32.mrb[0].mxu0
        %v3216 = vadd.f32 0.0, %v3215
        %v3217 = vpop.f32.mrb[0].mxu0
        %v3218 = vadd.f32 0.0, %v3217
        %3219 = vmatprep.mubr.bf16.mxu0 %v2704
        %3220 = vmatmul.mubr.bf16.gmra.mrb[0].mxu0 %v2703
        %v3221 = vpop.f32.mrb[0].mxu0
        %v3222 = vadd.f32 0.0, %v3221
        %v3223 = vpop.f32.mrb[0].mxu0
        %v3224 = vadd.f32 0.0, %v3223
        %v3225 = vpop.f32.mrb[0].mxu0
        %v3226 = vadd.f32 0.0, %v3225
        %v3227 = vpop.f32.mrb[0].mxu0
        %v3228 = vadd.f32 0.0, %v3227
        %3229 = vmatprep.mubr.bf16.mxu0 %v2708
        %3230 = vmatmul.mubr.bf16.gmra.mrb[0].mxu0 %v2707
        %v3231 = vpop.f32.mrb[0].mxu0
        %v3232 = vadd.f32 0.0, %v3231
        %v3233 = vpop.f32.mrb[0].mxu0
        %v3234 = vadd.f32 0.0, %v3233
        %v3235 = vpop.f32.mrb[0].mxu0
        %v3236 = vadd.f32 0.0, %v3235
        %v3237 = vpop.f32.mrb[0].mxu0
        %v3238 = vadd.f32 0.0, %v3237
        %3239 = vmatprep.mubr.bf16.mxu0 %v2712
        %3240 = vmatmul.mubr.bf16.gmra.mrb[0].mxu0 %v2711
        %v3241 = vpop.f32.mrb[0].mxu0
        %v3242 = vadd.f32 0.0, %v3241
        %v3243 = vpop.f32.mrb[0].mxu0
        %v3244 = vadd.f32 0.0, %v3243
        %v3245 = vpop.f32.mrb[0].mxu0
        %v3246 = vadd.f32 0.0, %v3245
        %v3247 = vpop.f32.mrb[0].mxu0
        %v3248 = vadd.f32 0.0, %v3247
        %3249 = vmatprep.mubr.bf16.mxu0 %v2716
        %3250 = vmatmul.mubr.bf16.gmra.mrb[0].mxu0 %v2715
        %v3251 = vpop.f32.mrb[0].mxu0
        %v3252 = vadd.f32 0.0, %v3251
        %v3253 = vpop.f32.mrb[0].mxu0
        %v3254 = vadd.f32 0.0, %v3253
        %v3255 = vpop.f32.mrb[0].mxu0
        %v3256 = vadd.f32 0.0, %v3255
        %v3257 = vpop.f32.mrb[0].mxu0
        %v3258 = vadd.f32 0.0, %v3257
        %3259 = vmatprep.mubr.bf16.mxu0 %v2720
        %3260 = vmatmul.mubr.bf16.gmra.mrb[0].mxu0 %v2719
        %v3261 = vpop.f32.mrb[0].mxu0
        %v3262 = vadd.f32 0.0, %v3261
        %v3263 = vpop.f32.mrb[0].mxu0
        %v3264 = vadd.f32 0.0, %v3263
        %v3265 = vpop.f32.mrb[0].mxu0
        %v3266 = vadd.f32 0.0, %v3265
        %v3267 = vpop.f32.mrb[0].mxu0
        %v3268 = vadd.f32 0.0, %v3267
        %3269 = vmatprep.mubr.bf16.mxu0 %v2724
        %3270 = vmatmul.mubr.bf16.gmra.mrb[0].mxu0 %v2723
        %v3271 = vpop.f32.mrb[0].mxu0
        %v3272 = vadd.f32 0.0, %v3271
        %v3273 = vpop.f32.mrb[0].mxu0
        %v3274 = vadd.f32 0.0, %v3273
        %v3275 = vpop.f32.mrb[0].mxu0
        %v3276 = vadd.f32 0.0, %v3275
        %v3277 = vpop.f32.mrb[0].mxu0
        %v3278 = vadd.f32 0.0, %v3277
        %3279 = vmatprep.mubr.bf16.mxu0 %v2728
        %3280 = vmatmul.mubr.bf16.gmra.mrb[0].mxu0 %v2727
        %v3281 = vpop.f32.mrb[0].mxu0
        %v3282 = vadd.f32 0.0, %v3281
        %v3283 = vpop.f32.mrb[0].mxu0
        %v3284 = vadd.f32 0.0, %v3283
        %v3285 = vpop.f32.mrb[0].mxu0
        %v3286 = vadd.f32 0.0, %v3285
        %v3287 = vpop.f32.mrb[0].mxu0
        %v3288 = vadd.f32 0.0, %v3287
        %3289 = vmatprep.mubr.bf16.mxu0 %v2732
        %3290 = vmatmul.mubr.bf16.gmra.mrb[0].mxu0 %v2731
        %v3291 = vpop.f32.mrb[0].mxu0
        %v3292 = vadd.f32 0.0, %v3291
        %v3293 = vpop.f32.mrb[0].mxu0
        %v3294 = vadd.f32 0.0, %v3293
        %v3295 = vpop.f32.mrb[0].mxu0
        %v3296 = vadd.f32 0.0, %v3295
        %v3297 = vpop.f32.mrb[0].mxu0
        %v3298 = vadd.f32 0.0, %v3297
        %3299 = vmatprep.mubr.bf16.mxu0 %v2736
        %3300 = vmatmul.mubr.bf16.gmra.mrb[0].mxu0 %v2735
        %v3301 = vpop.f32.mrb[0].mxu0
        %v3302 = vadd.f32 0.0, %v3301
        %v3303 = vpop.f32.mrb[0].mxu0
        %v3304 = vadd.f32 0.0, %v3303
        %v3305 = vpop.f32.mrb[0].mxu0
        %v3306 = vadd.f32 0.0, %v3305
        %v3307 = vpop.f32.mrb[0].mxu0
        %v3308 = vadd.f32 0.0, %v3307
        %3309 = vmatprep.mubr.bf16.mxu0 %v2740
        %3310 = vmatmul.mubr.bf16.gmra.mrb[0].mxu0 %v2739
        %v3311 = vpop.f32.mrb[0].mxu0
        %v3312 = vadd.f32 0.0, %v3311
        %v3313 = vpop.f32.mrb[0].mxu0
        %v3314 = vadd.f32 0.0, %v3313
        %v3315 = vpop.f32.mrb[0].mxu0
        %v3316 = vadd.f32 0.0, %v3315
        %v3317 = vpop.f32.mrb[0].mxu0
        %v3318 = vadd.f32 0.0, %v3317
        %3319 = vdwg.mxu0
        %3320 = vmatprep.subr.bf16.mxu0 %v3032
        %3321 = vmatpush1.bf16.msra.mxu0 %v3031
        %3322 = vmatprep.subr.bf16.mxu0 %v3034
        %3323 = vmatpush1.bf16.msra.mxu0 %v3033
        %3324 = vmatprep.subr.bf16.mxu0 %v3036
        %3325 = vmatpush1.bf16.msra.mxu0 %v3035
        %3326 = vmatprep.subr.bf16.mxu0 %v3038
        %3327 = vmatpush1.bf16.msra.mxu0 %v3037
        %3328 = vmatprep.subr.bf16.mxu0 %v3040
        %3329 = vmatpush1.bf16.msra.mxu0 %v3039
        %3330 = vmatprep.subr.bf16.mxu0 %v3042
        %3331 = vmatpush1.bf16.msra.mxu0 %v3041
        %3332 = vmatprep.subr.bf16.mxu0 %v3044
        %3333 = vmatpush1.bf16.msra.mxu0 %v3043
        %3334 = vmatprep.subr.bf16.mxu0 %v3046
        %3335 = vmatpush1.bf16.msra.mxu0 %v3045
        %3336 = vmatprep.subr.bf16.mxu0 %v3048
        %3337 = vmatpush1.bf16.msra.mxu0 %v3047
        %3338 = vmatprep.subr.bf16.mxu0 %v3050
        %3339 = vmatpush1.bf16.msra.mxu0 %v3049
        %3340 = vmatprep.subr.bf16.mxu0 %v3052
        %3341 = vmatpush1.bf16.msra.mxu0 %v3051
        %3342 = vmatprep.subr.bf16.mxu0 %v3054
        %3343 = vmatpush1.bf16.msra.mxu0 %v3053
        %3344 = vmatprep.subr.bf16.mxu0 %v3056
        %3345 = vmatpush1.bf16.msra.mxu0 %v3055
        %3346 = vmatprep.subr.bf16.mxu0 %v3058
        %3347 = vmatpush1.bf16.msra.mxu0 %v3057
        %3348 = vmatprep.subr.bf16.mxu0 %v3060
        %3349 = vmatpush1.bf16.msra.mxu0 %v3059
        %3350 = vmatprep.subr.bf16.mxu0 %v3062
        %3351 = vmatpush1.bf16.msra.mxu0 %v3061
        %3352 = vmatprep.mubr.bf16.mxu0 %v2682
        %3353 = vmatmul.mubr.bf16.gmra.mrb[0].mxu0 %v2681
        %v3354 = vpop.f32.mrb[0].mxu0
        %v3355 = vadd.f32 %v3162, %v3354
        %v3356 = vpop.f32.mrb[0].mxu0
        %v3357 = vadd.f32 %v3164, %v3356
        %v3358 = vpop.f32.mrb[0].mxu0
        %v3359 = vadd.f32 %v3166, %v3358
        %v3360 = vpop.f32.mrb[0].mxu0
        %v3361 = vadd.f32 %v3168, %v3360
        %3362 = vmatprep.mubr.bf16.mxu0 %v2686
        %3363 = vmatmul.mubr.bf16.gmra.mrb[0].mxu0 %v2685
        %v3364 = vpop.f32.mrb[0].mxu0
        %v3365 = vadd.f32 %v3172, %v3364
        %v3366 = vpop.f32.mrb[0].mxu0
        %v3367 = vadd.f32 %v3174, %v3366
        %v3368 = vpop.f32.mrb[0].mxu0
        %v3369 = vadd.f32 %v3176, %v3368
        %v3370 = vpop.f32.mrb[0].mxu0
        %v3371 = vadd.f32 %v3178, %v3370
        %3372 = vmatprep.mubr.bf16.mxu0 %v2690
        %3373 = vmatmul.mubr.bf16.gmra.mrb[0].mxu0 %v2689
        %v3374 = vpop.f32.mrb[0].mxu0
        %v3375 = vadd.f32 %v3182, %v3374
        %v3376 = vpop.f32.mrb[0].mxu0
        %v3377 = vadd.f32 %v3184, %v3376
        %v3378 = vpop.f32.mrb[0].mxu0
        %v3379 = vadd.f32 %v3186, %v3378
        %v3380 = vpop.f32.mrb[0].mxu0
        %v3381 = vadd.f32 %v3188, %v3380
        %3382 = vmatprep.mubr.bf16.mxu0 %v2694
        %3383 = vmatmul.mubr.bf16.gmra.mrb[0].mxu0 %v2693
        %v3384 = vpop.f32.mrb[0].mxu0
        %v3385 = vadd.f32 %v3192, %v3384
        %v3386 = vpop.f32.mrb[0].mxu0
        %v3387 = vadd.f32 %v3194, %v3386
        %v3388 = vpop.f32.mrb[0].mxu0
        %v3389 = vadd.f32 %v3196, %v3388
        %v3390 = vpop.f32.mrb[0].mxu0
        %v3391 = vadd.f32 %v3198, %v3390
        %3392 = vmatprep.mubr.bf16.mxu0 %v2698
        %3393 = vmatmul.mubr.bf16.gmra.mrb[0].mxu0 %v2697
        %v3394 = vpop.f32.mrb[0].mxu0
        %v3395 = vadd.f32 %v3202, %v3394
        %v3396 = vpop.f32.mrb[0].mxu0
        %v3397 = vadd.f32 %v3204, %v3396
        %v3398 = vpop.f32.mrb[0].mxu0
        %v3399 = vadd.f32 %v3206, %v3398
        %v3400 = vpop.f32.mrb[0].mxu0
        %v3401 = vadd.f32 %v3208, %v3400
        %3402 = vmatprep.mubr.bf16.mxu0 %v2702
        %3403 = vmatmul.mubr.bf16.gmra.mrb[0].mxu0 %v2701
        %v3404 = vpop.f32.mrb[0].mxu0
        %v3405 = vadd.f32 %v3212, %v3404
        %v3406 = vpop.f32.mrb[0].mxu0
        %v3407 = vadd.f32 %v3214, %v3406
        %v3408 = vpop.f32.mrb[0].mxu0
        %v3409 = vadd.f32 %v3216, %v3408
        %v3410 = vpop.f32.mrb[0].mxu0
        %v3411 = vadd.f32 %v3218, %v3410
        %3412 = vmatprep.mubr.bf16.mxu0 %v2706
        %3413 = vmatmul.mubr.bf16.gmra.mrb[0].mxu0 %v2705
        %v3414 = vpop.f32.mrb[0].mxu0
        %v3415 = vadd.f32 %v3222, %v3414
        %v3416 = vpop.f32.mrb[0].mxu0
        %v3417 = vadd.f32 %v3224, %v3416
        %v3418 = vpop.f32.mrb[0].mxu0
        %v3419 = vadd.f32 %v3226, %v3418
        %v3420 = vpop.f32.mrb[0].mxu0
        %v3421 = vadd.f32 %v3228, %v3420
        %3422 = vmatprep.mubr.bf16.mxu0 %v2710
        %3423 = vmatmul.mubr.bf16.gmra.mrb[0].mxu0 %v2709
        %v3424 = vpop.f32.mrb[0].mxu0
        %v3425 = vadd.f32 %v3232, %v3424
        %v3426 = vpop.f32.mrb[0].mxu0
        %v3427 = vadd.f32 %v3234, %v3426
        %v3428 = vpop.f32.mrb[0].mxu0
        %v3429 = vadd.f32 %v3236, %v3428
        %v3430 = vpop.f32.mrb[0].mxu0
        %v3431 = vadd.f32 %v3238, %v3430
        %3432 = vmatprep.mubr.bf16.mxu0 %v2714
        %3433 = vmatmul.mubr.bf16.gmra.mrb[0].mxu0 %v2713
        %v3434 = vpop.f32.mrb[0].mxu0
        %v3435 = vadd.f32 %v3242, %v3434
        %v3436 = vpop.f32.mrb[0].mxu0
        %v3437 = vadd.f32 %v3244, %v3436
        %v3438 = vpop.f32.mrb[0].mxu0
        %v3439 = vadd.f32 %v3246, %v3438
        %v3440 = vpop.f32.mrb[0].mxu0
        %v3441 = vadd.f32 %v3248, %v3440
        %3442 = vmatprep.mubr.bf16.mxu0 %v2718
        %3443 = vmatmul.mubr.bf16.gmra.mrb[0].mxu0 %v2717
        %v3444 = vpop.f32.mrb[0].mxu0
        %v3445 = vadd.f32 %v3252, %v3444
        %v3446 = vpop.f32.mrb[0].mxu0
        %v3447 = vadd.f32 %v3254, %v3446
        %v3448 = vpop.f32.mrb[0].mxu0
        %v3449 = vadd.f32 %v3256, %v3448
        %v3450 = vpop.f32.mrb[0].mxu0
        %v3451 = vadd.f32 %v3258, %v3450
        %3452 = vmatprep.mubr.bf16.mxu0 %v2722
        %3453 = vmatmul.mubr.bf16.gmra.mrb[0].mxu0 %v2721
        %v3454 = vpop.f32.mrb[0].mxu0
        %v3455 = vadd.f32 %v3262, %v3454
        %v3456 = vpop.f32.mrb[0].mxu0
        %v3457 = vadd.f32 %v3264, %v3456
        %v3458 = vpop.f32.mrb[0].mxu0
        %v3459 = vadd.f32 %v3266, %v3458
        %v3460 = vpop.f32.mrb[0].mxu0
        %v3461 = vadd.f32 %v3268, %v3460
        %3462 = vmatprep.mubr.bf16.mxu0 %v2726
        %3463 = vmatmul.mubr.bf16.gmra.mrb[0].mxu0 %v2725
        %v3464 = vpop.f32.mrb[0].mxu0
        %v3465 = vadd.f32 %v3272, %v3464
        %v3466 = vpop.f32.mrb[0].mxu0
        %v3467 = vadd.f32 %v3274, %v3466
        %v3468 = vpop.f32.mrb[0].mxu0
        %v3469 = vadd.f32 %v3276, %v3468
        %v3470 = vpop.f32.mrb[0].mxu0
        %v3471 = vadd.f32 %v3278, %v3470
        %3472 = vmatprep.mubr.bf16.mxu0 %v2730
        %3473 = vmatmul.mubr.bf16.gmra.mrb[0].mxu0 %v2729
        %v3474 = vpop.f32.mrb[0].mxu0
        %v3475 = vadd.f32 %v3282, %v3474
        %v3476 = vpop.f32.mrb[0].mxu0
        %v3477 = vadd.f32 %v3284, %v3476
        %v3478 = vpop.f32.mrb[0].mxu0
        %v3479 = vadd.f32 %v3286, %v3478
        %v3480 = vpop.f32.mrb[0].mxu0
        %v3481 = vadd.f32 %v3288, %v3480
        %3482 = vmatprep.mubr.bf16.mxu0 %v2734
        %3483 = vmatmul.mubr.bf16.gmra.mrb[0].mxu0 %v2733
        %v3484 = vpop.f32.mrb[0].mxu0
        %v3485 = vadd.f32 %v3292, %v3484
        %v3486 = vpop.f32.mrb[0].mxu0
        %v3487 = vadd.f32 %v3294, %v3486
        %v3488 = vpop.f32.mrb[0].mxu0
        %v3489 = vadd.f32 %v3296, %v3488
        %v3490 = vpop.f32.mrb[0].mxu0
        %v3491 = vadd.f32 %v3298, %v3490
        %3492 = vmatprep.mubr.bf16.mxu0 %v2738
        %3493 = vmatmul.mubr.bf16.gmra.mrb[0].mxu0 %v2737
        %v3494 = vpop.f32.mrb[0].mxu0
        %v3495 = vadd.f32 %v3302, %v3494
        %v3496 = vpop.f32.mrb[0].mxu0
        %v3497 = vadd.f32 %v3304, %v3496
        %v3498 = vpop.f32.mrb[0].mxu0
        %v3499 = vadd.f32 %v3306, %v3498
        %v3500 = vpop.f32.mrb[0].mxu0
        %v3501 = vadd.f32 %v3308, %v3500
        %3502 = vmatprep.mubr.bf16.mxu0 %v2742
        %3503 = vmatmul.mubr.bf16.gmra.mrb[0].mxu0 %v2741
        %v3504 = vpop.f32.mrb[0].mxu0
        %v3505 = vadd.f32 %v3312, %v3504
        %v3506 = vpop.f32.mrb[0].mxu0
        %v3507 = vadd.f32 %v3314, %v3506
        %v3508 = vpop.f32.mrb[0].mxu0
        %v3509 = vadd.f32 %v3316, %v3508
        %v3510 = vpop.f32.mrb[0].mxu0
        %v3511 = vadd.f32 %v3318, %v3510
        %3512 = vdwg.mxu0
        %v3513 = vmax.f32 %v3355, 0.0
        %v3514 = vmax.f32 %v3357, 0.0
        %v3515 = vmax.f32 %v3359, 0.0
        %v3516 = vmax.f32 %v3361, 0.0
        %v3517 = vmax.f32 %v3365, 0.0
        %v3518 = vmax.f32 %v3367, 0.0
        %v3519 = vmax.f32 %v3369, 0.0
        %v3520 = vmax.f32 %v3371, 0.0
        %v3521 = vmax.f32 %v3375, 0.0
        %v3522 = vmax.f32 %v3377, 0.0
        %v3523 = vmax.f32 %v3379, 0.0
        %v3524 = vmax.f32 %v3381, 0.0
        %v3525 = vmax.f32 %v3385, 0.0
        %v3526 = vmax.f32 %v3387, 0.0
        %v3527 = vmax.f32 %v3389, 0.0
        %v3528 = vmax.f32 %v3391, 0.0
        %v3529 = vmax.f32 %v3395, 0.0
        %v3530 = vmax.f32 %v3397, 0.0
        %v3531 = vmax.f32 %v3399, 0.0
        %v3532 = vmax.f32 %v3401, 0.0
        %v3533 = vmax.f32 %v3405, 0.0
        %v3534 = vmax.f32 %v3407, 0.0
        %v3535 = vmax.f32 %v3409, 0.0
        %v3536 = vmax.f32 %v3411, 0.0
        %v3537 = vmax.f32 %v3415, 0.0
        %v3538 = vmax.f32 %v3417, 0.0
        %v3539 = vmax.f32 %v3419, 0.0
        %v3540 = vmax.f32 %v3421, 0.0
        %v3541 = vmax.f32 %v3425, 0.0
        %v3542 = vmax.f32 %v3427, 0.0
        %v3543 = vmax.f32 %v3429, 0.0
        %v3544 = vmax.f32 %v3431, 0.0
        %v3545 = vmax.f32 %v3435, 0.0
        %v3546 = vmax.f32 %v3437, 0.0
        %v3547 = vmax.f32 %v3439, 0.0
        %v3548 = vmax.f32 %v3441, 0.0
        %v3549 = vmax.f32 %v3445, 0.0
        %v3550 = vmax.f32 %v3447, 0.0
        %v3551 = vmax.f32 %v3449, 0.0
        %v3552 = vmax.f32 %v3451, 0.0
        %v3553 = vmax.f32 %v3455, 0.0
        %v3554 = vmax.f32 %v3457, 0.0
        %v3555 = vmax.f32 %v3459, 0.0
        %v3556 = vmax.f32 %v3461, 0.0
        %v3557 = vmax.f32 %v3465, 0.0
        %v3558 = vmax.f32 %v3467, 0.0
        %v3559 = vmax.f32 %v3469, 0.0
        %v3560 = vmax.f32 %v3471, 0.0
        %v3561 = vmax.f32 %v3475, 0.0
        %v3562 = vmax.f32 %v3477, 0.0
        %v3563 = vmax.f32 %v3479, 0.0
        %v3564 = vmax.f32 %v3481, 0.0
        %v3565 = vmax.f32 %v3485, 0.0
        %v3566 = vmax.f32 %v3487, 0.0
        %v3567 = vmax.f32 %v3489, 0.0
        %v3568 = vmax.f32 %v3491, 0.0
        %v3569 = vmax.f32 %v3495, 0.0
        %v3570 = vmax.f32 %v3497, 0.0
        %v3571 = vmax.f32 %v3499, 0.0
        %v3572 = vmax.f32 %v3501, 0.0
        %v3573 = vmax.f32 %v3505, 0.0
        %v3574 = vmax.f32 %v3507, 0.0
        %v3575 = vmax.f32 %v3509, 0.0
        %v3576 = vmax.f32 %v3511, 0.0
        %v3577 = vld [vmem:[%s394] sm:$0xff]
        %v3578 = vld [vmem:[%s394 + $0x8] sm:$0xff]
        %v3579 = vld [vmem:[%s394 + $0x10] sm:$0xff]
        %v3580 = vld [vmem:[%s394 + $0x18] sm:$0xff]
        %v3581 = vld [vmem:[%s394 + $0x20] sm:$0xff]
        %v3582 = vld [vmem:[%s394 + $0x28] sm:$0xff]
        %v3583 = vld [vmem:[%s394 + $0x30] sm:$0xff]
        %v3584 = vld [vmem:[%s394 + $0x38] sm:$0xff]
        %v3585 = vld [vmem:[%s394 + $0x40] sm:$0xff]
        %v3586 = vld [vmem:[%s394 + $0x48] sm:$0xff]
        %v3587 = vld [vmem:[%s394 + $0x50] sm:$0xff]
        %v3588 = vld [vmem:[%s394 + $0x58] sm:$0xff]
        %v3589 = vld [vmem:[%s394 + $0x60] sm:$0xff]
        %v3590 = vld [vmem:[%s394 + $0x68] sm:$0xff]
        %v3591 = vld [vmem:[%s394 + $0x70] sm:$0xff]
        %v3592 = vld [vmem:[%s394 + $0x78] sm:$0xff]
        %v3593 = vld [vmem:[%s394 + $0x80] sm:$0xff]
        %v3594 = vld [vmem:[%s394 + $0x88] sm:$0xff]
        %v3595 = vld [vmem:[%s394 + $0x90] sm:$0xff]
        %v3596 = vld [vmem:[%s394 + $0x98] sm:$0xff]
        %v3597 = vld [vmem:[%s394 + $0xa0] sm:$0xff]
        %v3598 = vld [vmem:[%s394 + $0xa8] sm:$0xff]
        %v3599 = vld [vmem:[%s394 + $0xb0] sm:$0xff]
        %v3600 = vld [vmem:[%s394 + $0xb8] sm:$0xff]
        %v3601 = vld [vmem:[%s394 + $0xc0] sm:$0xff]
        %v3602 = vld [vmem:[%s394 + $0xc8] sm:$0xff]
        %v3603 = vld [vmem:[%s394 + $0xd0] sm:$0xff]
        %v3604 = vld [vmem:[%s394 + $0xd8] sm:$0xff]
        %v3605 = vld [vmem:[%s394 + $0xe0] sm:$0xff]
        %v3606 = vld [vmem:[%s394 + $0xe8] sm:$0xff]
        %v3607 = vld [vmem:[%s394 + $0xf0] sm:$0xff]
        %v3608 = vld [vmem:[%s394 + $0xf8] sm:$0xff]
        %v3609 = vld [vmem:[%s394 + $0x100] sm:$0xff]
        %v3610 = vld [vmem:[%s394 + $0x108] sm:$0xff]
        %v3611 = vld [vmem:[%s394 + $0x110] sm:$0xff]
        %v3612 = vld [vmem:[%s394 + $0x118] sm:$0xff]
        %v3613 = vld [vmem:[%s394 + $0x120] sm:$0xff]
        %v3614 = vld [vmem:[%s394 + $0x128] sm:$0xff]
        %v3615 = vld [vmem:[%s394 + $0x130] sm:$0xff]
        %v3616 = vld [vmem:[%s394 + $0x138] sm:$0xff]
        %v3617 = vld [vmem:[%s394 + $0x140] sm:$0xff]
        %v3618 = vld [vmem:[%s394 + $0x148] sm:$0xff]
        %v3619 = vld [vmem:[%s394 + $0x150] sm:$0xff]
        %v3620 = vld [vmem:[%s394 + $0x158] sm:$0xff]
        %v3621 = vld [vmem:[%s394 + $0x160] sm:$0xff]
        %v3622 = vld [vmem:[%s394 + $0x168] sm:$0xff]
        %v3623 = vld [vmem:[%s394 + $0x170] sm:$0xff]
        %v3624 = vld [vmem:[%s394 + $0x178] sm:$0xff]
        %v3625 = vld [vmem:[%s394 + $0x180] sm:$0xff]
        %v3626 = vld [vmem:[%s394 + $0x188] sm:$0xff]
        %v3627 = vld [vmem:[%s394 + $0x190] sm:$0xff]
        %v3628 = vld [vmem:[%s394 + $0x198] sm:$0xff]
        %v3629 = vld [vmem:[%s394 + $0x1a0] sm:$0xff]
        %v3630 = vld [vmem:[%s394 + $0x1a8] sm:$0xff]
        %v3631 = vld [vmem:[%s394 + $0x1b0] sm:$0xff]
        %v3632 = vld [vmem:[%s394 + $0x1b8] sm:$0xff]
        %v3633 = vld [vmem:[%s394 + $0x1c0] sm:$0xff]
        %v3634 = vld [vmem:[%s394 + $0x1c8] sm:$0xff]
        %v3635 = vld [vmem:[%s394 + $0x1d0] sm:$0xff]
        %v3636 = vld [vmem:[%s394 + $0x1d8] sm:$0xff]
        %v3637 = vld [vmem:[%s394 + $0x1e0] sm:$0xff]
        %v3638 = vld [vmem:[%s394 + $0x1e8] sm:$0xff]
        %v3639 = vld [vmem:[%s394 + $0x1f0] sm:$0xff]
        %v3640 = vld [vmem:[%s394 + $0x1f8] sm:$0xff]
        %v3641 = vadd.f32 %v3577, %v3513
        %v3642 = vadd.f32 %v3578, %v3514
        %v3643 = vadd.f32 %v3579, %v3515
        %v3644 = vadd.f32 %v3580, %v3516
        %v3645 = vadd.f32 %v3581, %v3517
        %v3646 = vadd.f32 %v3582, %v3518
        %v3647 = vadd.f32 %v3583, %v3519
        %v3648 = vadd.f32 %v3584, %v3520
        %v3649 = vadd.f32 %v3585, %v3521
        %v3650 = vadd.f32 %v3586, %v3522
        %v3651 = vadd.f32 %v3587, %v3523
        %v3652 = vadd.f32 %v3588, %v3524
        %v3653 = vadd.f32 %v3589, %v3525
        %v3654 = vadd.f32 %v3590, %v3526
        %v3655 = vadd.f32 %v3591, %v3527
        %v3656 = vadd.f32 %v3592, %v3528
        %v3657 = vadd.f32 %v3593, %v3529
        %v3658 = vadd.f32 %v3594, %v3530
        %v3659 = vadd.f32 %v3595, %v3531
        %v3660 = vadd.f32 %v3596, %v3532
        %v3661 = vadd.f32 %v3597, %v3533
        %v3662 = vadd.f32 %v3598, %v3534
        %v3663 = vadd.f32 %v3599, %v3535
        %v3664 = vadd.f32 %v3600, %v3536
        %v3665 = vadd.f32 %v3601, %v3537
        %v3666 = vadd.f32 %v3602, %v3538
        %v3667 = vadd.f32 %v3603, %v3539
        %v3668 = vadd.f32 %v3604, %v3540
        %v3669 = vadd.f32 %v3605, %v3541
        %v3670 = vadd.f32 %v3606, %v3542
        %v3671 = vadd.f32 %v3607, %v3543
        %v3672 = vadd.f32 %v3608, %v3544
        %v3673 = vadd.f32 %v3609, %v3545
        %v3674 = vadd.f32 %v3610, %v3546
        %v3675 = vadd.f32 %v3611, %v3547
        %v3676 = vadd.f32 %v3612, %v3548
        %v3677 = vadd.f32 %v3613, %v3549
        %v3678 = vadd.f32 %v3614, %v3550
        %v3679 = vadd.f32 %v3615, %v3551
        %v3680 = vadd.f32 %v3616, %v3552
        %v3681 = vadd.f32 %v3617, %v3553
        %v3682 = vadd.f32 %v3618, %v3554
        %v3683 = vadd.f32 %v3619, %v3555
        %v3684 = vadd.f32 %v3620, %v3556
        %v3685 = vadd.f32 %v3621, %v3557
        %v3686 = vadd.f32 %v3622, %v3558
        %v3687 = vadd.f32 %v3623, %v3559
        %v3688 = vadd.f32 %v3624, %v3560
        %v3689 = vadd.f32 %v3625, %v3561
        %v3690 = vadd.f32 %v3626, %v3562
        %v3691 = vadd.f32 %v3627, %v3563
        %v3692 = vadd.f32 %v3628, %v3564
        %v3693 = vadd.f32 %v3629, %v3565
        %v3694 = vadd.f32 %v3630, %v3566
        %v3695 = vadd.f32 %v3631, %v3567
        %v3696 = vadd.f32 %v3632, %v3568
        %v3697 = vadd.f32 %v3633, %v3569
        %v3698 = vadd.f32 %v3634, %v3570
        %v3699 = vadd.f32 %v3635, %v3571
        %v3700 = vadd.f32 %v3636, %v3572
        %v3701 = vadd.f32 %v3637, %v3573
        %v3702 = vadd.f32 %v3638, %v3574
        %v3703 = vadd.f32 %v3639, %v3575
        %v3704 = vadd.f32 %v3640, %v3576
        %3705 = vst [vmem:[%s488] sm:$0xff] %v3641
        %3706 = vst [vmem:[%s488 + $0x8] sm:$0xff] %v3642
        %3707 = vst [vmem:[%s488 + $0x10] sm:$0xff] %v3643
        %3708 = vst [vmem:[%s488 + $0x18] sm:$0xff] %v3644
        %3709 = vst [vmem:[%s488 + $0x20] sm:$0xff] %v3645
        %3710 = vst [vmem:[%s488 + $0x28] sm:$0xff] %v3646
        %3711 = vst [vmem:[%s488 + $0x30] sm:$0xff] %v3647
        %3712 = vst [vmem:[%s488 + $0x38] sm:$0xff] %v3648
        %3713 = vst [vmem:[%s488 + $0x40] sm:$0xff] %v3649
        %3714 = vst [vmem:[%s488 + $0x48] sm:$0xff] %v3650
        %3715 = vst [vmem:[%s488 + $0x50] sm:$0xff] %v3651
        %3716 = vst [vmem:[%s488 + $0x58] sm:$0xff] %v3652
        %3717 = vst [vmem:[%s488 + $0x60] sm:$0xff] %v3653
        %3718 = vst [vmem:[%s488 + $0x68] sm:$0xff] %v3654
        %3719 = vst [vmem:[%s488 + $0x70] sm:$0xff] %v3655
        %3720 = vst [vmem:[%s488 + $0x78] sm:$0xff] %v3656
        %3721 = vst [vmem:[%s488 + $0x80] sm:$0xff] %v3657
        %3722 = vst [vmem:[%s488 + $0x88] sm:$0xff] %v3658
        %3723 = vst [vmem:[%s488 + $0x90] sm:$0xff] %v3659
        %3724 = vst [vmem:[%s488 + $0x98] sm:$0xff] %v3660
        %3725 = vst [vmem:[%s488 + $0xa0] sm:$0xff] %v3661
        %3726 = vst [vmem:[%s488 + $0xa8] sm:$0xff] %v3662
        %3727 = vst [vmem:[%s488 + $0xb0] sm:$0xff] %v3663
        %3728 = vst [vmem:[%s488 + $0xb8] sm:$0xff] %v3664
        %3729 = vst [vmem:[%s488 + $0xc0] sm:$0xff] %v3665
        %3730 = vst [vmem:[%s488 + $0xc8] sm:$0xff] %v3666
        %3731 = vst [vmem:[%s488 + $0xd0] sm:$0xff] %v3667
        %3732 = vst [vmem:[%s488 + $0xd8] sm:$0xff] %v3668
        %3733 = vst [vmem:[%s488 + $0xe0] sm:$0xff] %v3669
        %3734 = vst [vmem:[%s488 + $0xe8] sm:$0xff] %v3670
        %3735 = vst [vmem:[%s488 + $0xf0] sm:$0xff] %v3671
        %3736 = vst [vmem:[%s488 + $0xf8] sm:$0xff] %v3672
        %3737 = vst [vmem:[%s488 + $0x100] sm:$0xff] %v3673
        %3738 = vst [vmem:[%s488 + $0x108] sm:$0xff] %v3674
        %3739 = vst [vmem:[%s488 + $0x110] sm:$0xff] %v3675
        %3740 = vst [vmem:[%s488 + $0x118] sm:$0xff] %v3676
        %3741 = vst [vmem:[%s488 + $0x120] sm:$0xff] %v3677
        %3742 = vst [vmem:[%s488 + $0x128] sm:$0xff] %v3678
        %3743 = vst [vmem:[%s488 + $0x130] sm:$0xff] %v3679
        %3744 = vst [vmem:[%s488 + $0x138] sm:$0xff] %v3680
        %3745 = vst [vmem:[%s488 + $0x140] sm:$0xff] %v3681
        %3746 = vst [vmem:[%s488 + $0x148] sm:$0xff] %v3682
        %3747 = vst [vmem:[%s488 + $0x150] sm:$0xff] %v3683
        %3748 = vst [vmem:[%s488 + $0x158] sm:$0xff] %v3684
        %3749 = vst [vmem:[%s488 + $0x160] sm:$0xff] %v3685
        %3750 = vst [vmem:[%s488 + $0x168] sm:$0xff] %v3686
        %3751 = vst [vmem:[%s488 + $0x170] sm:$0xff] %v3687
        %3752 = vst [vmem:[%s488 + $0x178] sm:$0xff] %v3688
        %3753 = vst [vmem:[%s488 + $0x180] sm:$0xff] %v3689
        %3754 = vst [vmem:[%s488 + $0x188] sm:$0xff] %v3690
        %3755 = vst [vmem:[%s488 + $0x190] sm:$0xff] %v3691
        %3756 = vst [vmem:[%s488 + $0x198] sm:$0xff] %v3692
        %3757 = vst [vmem:[%s488 + $0x1a0] sm:$0xff] %v3693
        %3758 = vst [vmem:[%s488 + $0x1a8] sm:$0xff] %v3694
        %3759 = vst [vmem:[%s488 + $0x1b0] sm:$0xff] %v3695
        %3760 = vst [vmem:[%s488 + $0x1b8] sm:$0xff] %v3696
        %3761 = vst [vmem:[%s488 + $0x1c0] sm:$0xff] %v3697
        %3762 = vst [vmem:[%s488 + $0x1c8] sm:$0xff] %v3698
        %3763 = vst [vmem:[%s488 + $0x1d0] sm:$0xff] %v3699
        %3764 = vst [vmem:[%s488 + $0x1d8] sm:$0xff] %v3700
        %3765 = vst [vmem:[%s488 + $0x1e0] sm:$0xff] %v3701
        %3766 = vst [vmem:[%s488 + $0x1e8] sm:$0xff] %v3702
        %3767 = vst [vmem:[%s488 + $0x1f0] sm:$0xff] %v3703
        %3768 = vst [vmem:[%s488 + $0x1f8] sm:$0xff] %v3704
        %s3769 = sand.u32 %s211, 1
        %s3770 = scalar_lea.sflag [#allocation5], %s3769
        %s3771 = sand.u32 %s211, 1
        %s3772 = smul.addr %s3771, 512
        %s3773 = scalar_lea.vmem [#allocation15], %s3772
        // Predicated region
        $region77: #{tpu_custom_call.1} parent=47 // pred_check
          %p3774 = pneg %p221
        $region78: #{tpu_custom_call.1} parent=47 // pred_check_branch
          %3776 = sbr.rel (%p3774) target = $region80
        $region79: #{tpu_custom_call.1} parent=47 // pred_region
          %s3777 = smul.u32 32, %s31
          %s3779 = ssub.s32 8192, 8192
          %3780 = vsyncadd %s3770, %s3779
          %s3781 = smul.addr %s3777, 2
          %s3782 = smul.addr %s3781, 128
          %s3783 = scalar_lea.hbm %s7, %s3782
          %s3784 = sshll.u32 %s3773, 4
          %s3785 = int_to_ptr.vmem [resolvable:$true] %s3784
          %3790 = dma.vmem_to_hbm [thread:$0]  %s3785, 8192, %s3783, %s3770, 256, 256, 16
        $region80: #{tpu_custom_call.1} parent=47 // pred_fallthru
          _
      $region48: #{tpu_custom_call.1} parent=5 // pred_fallthru
        _
      %p3791 = scmp.le.s32.totalorder 2, %s26
      // Predicated region
      $region81: #{tpu_custom_call.1} parent=5 // pred_check
        %p3792 = pneg %p3791
      $region82: #{tpu_custom_call.1} parent=5 // pred_check_branch
        %3794 = sbr.rel (%p3792) target = $region84
      $region83: #{tpu_custom_call.1} parent=5 // pred_region
        %s3795 = ssub.s32 %s26, 2
        // Predicated region
        $region85: #{tpu_custom_call.1} parent=83 // pred_check
          %p3796 = pneg %p227
        $region86: #{tpu_custom_call.1} parent=83 // pred_check_branch
          %3798 = sbr.rel (%p3796) target = $region88
        $region87: #{tpu_custom_call.1} parent=83 // pred_region
          %s3799 = sand.u32 %s212, 1
          %s3800 = scalar_lea.sflag [#allocation5], %s3799
          %s3801 = sand.u32 %s212, 1
          %s3802 = smul.addr %s3801, 512
          %s3803 = scalar_lea.vmem [#allocation15], %s3802
          %3804 = dma.done %s3800, 8192
        $region88: #{tpu_custom_call.1} parent=83 // pred_fallthru
          _
      $region84: #{tpu_custom_call.1} parent=5 // pred_fallthru
        _
    $region6: #{tpu_custom_call.1} parent=1 // loop_footer
      %s30 = sadd.s32 1, %s26
    $region7: #{tpu_custom_call.1} parent=1 // loop_footer_branch
      %25 = sbr.rel target = $region3
    $region8: #{tpu_custom_call.1} parent=1 // loop_exit
      _
    %3805 = vsyncpa [#allocation4], 1
    %s3806 = scalar_lea.sflag [#allocation4], 1
    %3807 = vsyncpa %s3806, 1
    %3808 = vsyncpa [#allocation7], 1
    %s3809 = scalar_lea.sflag [#allocation7], 1
    %3810 = vsyncpa %s3809, 1
    %3811 = vsyncpa [#allocation10], 1
    %s3812 = scalar_lea.sflag [#allocation10], 1
    %3813 = vsyncpa %s3812, 1
    %3814 = vsyncpa [#allocation13], 1
    %3815 = vsyncpa [#allocation5], 1
    %s3816 = scalar_lea.sflag [#allocation5], 1
    %3817 = vsyncpa %s3816, 1

</llo_original>
